<compile_context>
chip_gen: v5e
topology: v5e:2x2
jax: 0.10.0
libtpu: 0.0.40
codegen_flags: <defaults>
</compile_context>

<pallas_src>
import functools

import numpy as np
import jax
import jax.numpy as jnp
from jax.experimental import pallas as pl
from jax.experimental.pallas import tpu as pltpu


# ----------------------------------------------------------------------------
# Static LeNet geometry (32x32 RGB input, as implied by fc1 = 16*5*5)
# ----------------------------------------------------------------------------
_C0, _H0, _W0 = 3, 32, 32
_OC1, _K1 = 6, 5
_H1, _W1 = _H0 - _K1 + 1, _W0 - _K1 + 1          # 28, 28
_PH1, _PW1 = _H1 // 2, _W1 // 2                  # 14, 14
_OC2, _K2 = 16, 5
_H2, _W2 = _PH1 - _K2 + 1, _PW1 - _K2 + 1        # 10, 10
_PH2, _PW2 = _H2 // 2, _W2 // 2                  # 5, 5
_FC1, _FC2 = 256, 128

_LANE = 128                 # TPU lane width
_NBLK = 2 * _LANE           # conv output block width: [even-ox | odd-ox] parity split
_RPI = _H0 // 2             # packed LHS rows per image (2 image rows / LHS row) = 16


# ----------------------------------------------------------------------------
# The fused Pallas kernel (entire forward pass, everything register/VMEM resident)
# ----------------------------------------------------------------------------
def _lenet_kernel(a1_ref, w1_ref, b1_ref, w2_ref, b2_ref,
                  fc1w_ref, fc1b_ref, fc2w_ref, fc2b_ref, fc3w_ref, fc3b_ref,
                  out_ref, *, batch):
    f32, bf16 = jnp.float32, jnp.bfloat16
    rows = batch * _RPI                                   # 16 packed rows / image

    def band(p, m, s):
        """Block m of a banded-matmul result, shifted so row r holds p[r+s, m]."""
        blk = p[:, m * _NBLK:(m + 1) * _NBLK]
        return blk if s == 0 else pltpu.roll(blk, shift=rows - s, axis=0)

    # ---- conv1 (5x5, 3->6) + ReLU + 2x2 max-pool: ONE wide MXU matmul --------
    # LHS rows pack image rows (2q, 2q+1); output blocks 0..2 = even conv rows,
    # blocks 3..5 = odd conv rows (per LHS-row offset s), parity-split over ox.
    p1 = jnp.dot(a1_ref[...], w1_ref[...], preferred_element_type=f32)  # (16N, 1536)
    conv_e = band(p1, 0, 0) + band(p1, 1, 1) + band(p1, 2, 2)   # conv rows 2q
    conv_o = band(p1, 3, 0) + band(p1, 4, 1) + band(p1, 5, 2)   # conv rows 2q+1
    hmax = jnp.maximum(conv_e, conv_o)                          # pool over H
    pool1 = jnp.maximum(                                        # pool over W + bias + ReLU
        jnp.maximum(hmax[:, :_LANE], hmax[:, _LANE:]) + b1_ref[...], 0.0)  # (16N, 128)

    # ---- conv2 (5x5, 6->16) + ReLU + 2x2 max-pool: ONE banded matmul ---------
    p2 = jnp.dot(pool1.astype(bf16), w2_ref[...], preferred_element_type=f32)  # (16N, 1280)
    conv2 = band(p2, 0, 0)
    for i in range(1, _K2):                                     # shift-add in registers
        conv2 = conv2 + band(p2, i, i)
    hmax2 = jnp.maximum(conv2, pltpu.roll(conv2, shift=rows - 1, axis=0))
    pool2 = jnp.maximum(
        jnp.maximum(hmax2[:, :_LANE], hmax2[:, _LANE:]) + b2_ref[...], 0.0)    # (16N, 128)

    # ---- flatten (gather 5 pooled rows / image into lane blocks) + fc1/2/3 ---
    imgs = []
    for n in range(batch):
        r0 = n * _RPI
        imgs.append(jnp.concatenate(
            [pool2[r0 + 2 * h:r0 + 2 * h + 1, :] for h in range(_PH2)], axis=-1))
    flat = jnp.concatenate(imgs, axis=0).astype(bf16)           # (N, 640)

    h1 = jnp.maximum(jnp.dot(flat, fc1w_ref[...], preferred_element_type=f32)
                     + fc1b_ref[...], 0.0)                      # (N, 256)
    h2 = jnp.maximum(jnp.dot(h1.astype(bf16), fc2w_ref[...], preferred_element_type=f32)
                     + fc2b_ref[...], 0.0)                      # (N, 128)
    out_ref[...] = (jnp.dot(h2.astype(bf16), fc3w_ref[...], preferred_element_type=f32)
                    + fc3b_ref[...])                            # (N, 128) lane-dense


# ----------------------------------------------------------------------------
# One-time host-side repacking of PyTorch-style params into kernel operands
# ----------------------------------------------------------------------------
def _conv1_operands(w, b, dtype):
    """Conv1 as ONE (256, 6*256) matmul on row-pair-packed inputs.

    LHS row q:  lanes [0,96)    = image row 2q    (layout x*C + c)
                lanes [128,224) = image row 2q+1
    Output block m = t*3 + s  (t = conv-row parity, s = LHS-row offset),
    block column  = (ox%2)*128 + (ox//2)*OC + oc  (W-parity split for pooling).
    """
    w = np.asarray(w, np.float32)
    b = np.asarray(b, np.float32)
    OC, C, KH, KW = w.shape
    OW = _W1
    ox, j, c, oc = np.meshgrid(np.arange(OW), np.arange(KW),
                               np.arange(C), np.arange(OC), indexing="ij")
    wk = np.zeros((2 * _LANE, 6 * _NBLK), np.float32)
    for t in range(2):
        for i in range(KH):
            s, h = divmod(t + i, 2)          # packed-LHS row offset, lane half
            rows = h * _LANE + (ox + j) * C + c
            cols = (t * 3 + s) * _NBLK + (ox % 2) * _LANE + (ox // 2) * OC + oc
            wk[rows, cols] = w[oc, c, i, j]
    px, oc2 = np.meshgrid(np.arange(OW // 2), np.arange(OC), indexing="ij")
    brow = np.zeros((1, _LANE), np.float32)
    brow[0, px * OC + oc2] = b[oc2]          # bias applied post-pool (commutes with max)
    return jnp.asarray(wk, dtype), jnp.asarray(brow)


def _conv2_operands(w, b, dtype):
    """Conv2 as ONE (128, 5*256) banded matmul (kernel rows concatenated along N)."""
    w = np.asarray(w, np.float32)
    b = np.asarray(b, np.float32)
    OC, C, KH, KW = w.shape
    OW = _W2
    ox, j, c, oc = np.meshgrid(np.arange(OW), np.arange(KW),
                               np.arange(C), np.arange(OC), indexing="ij")
    wk = np.zeros((_LANE, KH * _NBLK), np.float32)
    for i in range(KH):
        rows = (ox + j) * C + c
        cols = i * _NBLK + (ox % 2) * _LANE + (ox // 2) * OC + oc
        wk[rows, cols] = w[oc, c, i, j]
    px, oc2 = np.meshgrid(np.arange(OW // 2), np.arange(OC), indexing="ij")
    brow = np.zeros((1, _LANE), np.float32)
    brow[0, px * OC + oc2] = b[oc2]
    return jnp.asarray(wk, dtype), jnp.asarray(brow)


def _fc1_operand(fc1_w, dtype):
    """fc1 as ONE K=640 matmul: lhs lane h*128 + pw*16 + oc <-> torch flat oc*25+h*5+pw."""
    fc1_w = np.asarray(fc1_w, np.float32)                      # (400, 256), (in, out)
    h, pw, oc = np.meshgrid(np.arange(_PH2), np.arange(_PW2),
                            np.arange(_OC2), indexing="ij")
    wk = np.zeros((_PH2 * _LANE, _FC1), np.float32)
    wk[(h * _LANE + pw * _OC2 + oc).ravel(), :] = \
        fc1_w[(oc * _PH2 * _PW2 + h * _PW2 + pw).ravel(), :]
    return jnp.asarray(wk, dtype)


def prepare_params(params, dtype=jnp.bfloat16):
    w1, b1 = _conv1_operands(params["conv1_w"], params["conv1_b"], dtype)
    w2, b2 = _conv2_operands(params["conv2_w"], params["conv2_b"], dtype)
    num_classes = params["fc3_w"].shape[1]
    ncp = ((num_classes + _LANE - 1) // _LANE) * _LANE          # lane-dense fc3 output
    fc3w = np.zeros((_FC2, ncp), np.float32)
    fc3w[:, :num_classes] = np.asarray(params["fc3_w"], np.float32)
    fc3b = np.zeros((1, ncp), np.float32)
    fc3b[0, :num_classes] = np.asarray(params["fc3_b"], np.float32)
    return {
        "w1": w1, "b1": b1, "w2": w2, "b2": b2,
        "fc1w": _fc1_operand(params["fc1_w"], dtype),
        "fc1b": jnp.asarray(params["fc1_b"], jnp.float32).reshape(1, _FC1),
        "fc2w": jnp.asarray(params["fc2_w"], dtype),
        "fc2b": jnp.asarray(params["fc2_b"], jnp.float32).reshape(1, _FC2),
        "fc3w": jnp.asarray(fc3w, dtype),
        "fc3b": jnp.asarray(fc3b),
    }


# ----------------------------------------------------------------------------
# Forward
# ----------------------------------------------------------------------------
@functools.partial(jax.jit, static_argnames=("num_classes",))
def _lenet_logits(prepped, x, *, num_classes):
    n = x.shape[0]
    # NCHW -> row-pair-packed (N*16, 256) LHS: row q = [img row 2q | img row 2q+1],
    # each image row laid out x*C + c and lane-padded to 128.  Tiny XLA fusion on
    # the 12 KB input; everything downstream is one Pallas kernel.
    a1 = x.transpose(0, 2, 3, 1).reshape(n, _H0, _W0 * _C0)
    a1 = jnp.pad(a1, ((0, 0), (0, 0), (0, _LANE - _W0 * _C0)))
    a1 = a1.reshape(n * _RPI, 2 * _LANE).astype(jnp.bfloat16)

    ncp = prepped["fc3w"].shape[1]
    vmem = pl.BlockSpec(memory_space=pltpu.MemorySpace.VMEM)
    flops = 2 * n * (_RPI * 256 * 6 * _NBLK + _RPI * _LANE * _K2 * _NBLK
                     + _PH2 * _LANE * _FC1 + _FC1 * _FC2 + _FC2 * ncp)
    bytes_accessed = int(
        a1.size * 2 + n * ncp * 4
        + sum(int(np.prod(prepped[k].shape)) * prepped[k].dtype.itemsize
              for k in prepped))
    out = pl.pallas_call(
        functools.partial(_lenet_kernel, batch=n),
        out_shape=jax.ShapeDtypeStruct((n, ncp), jnp.float32),
        in_specs=[vmem] * 11,
        out_specs=vmem,
        cost_estimate=pl.CostEstimate(flops=flops, transcendentals=0,
                                      bytes_accessed=bytes_accessed),
        compiler_params=pltpu.CompilerParams(vmem_limit_bytes=32 * 1024 * 1024),
    )(a1, prepped["w1"], prepped["b1"], prepped["w2"], prepped["b2"],
      prepped["fc1w"], prepped["fc1b"], prepped["fc2w"], prepped["fc2b"],
      prepped["fc3w"], prepped["fc3b"])
    return out[:, :num_classes]


def lenet_forward(prepped, x, num_classes=100):
    n = x.shape[0]
    logits = _lenet_logits(prepped, x, num_classes=num_classes)
    shape_dict = {
        1: (n, _OC1, _PH1, _PW1),
        2: (n, _OC2, _PH2, _PW2),
        3: (n, _OC2 * _PH2 * _PW2),
        4: (n, _FC1),
        5: (n, _FC2),
        6: (n, num_classes),
    }
    return logits, shape_dict


# ----------------------------------------------------------------------------
# Params (mirrors the PyTorch module's shapes) + pure-XLA reference for checking
# ----------------------------------------------------------------------------
def init_params(key, num_classes=100):
    ks = jax.random.split(key, 10)

    def w(k, shape, fan_in):
        return jax.random.normal(k, shape, jnp.float32) * (1.0 / jnp.sqrt(fan_in))

    return {
        "conv1_w": w(ks[0], (6, 3, 5, 5), 3 * 5 * 5),
        "conv1_b": w(ks[1], (6,), 3 * 5 * 5),
        "conv2_w": w(ks[2], (16, 6, 5, 5), 6 * 5 * 5),
        "conv2_b": w(ks[3], (16,), 6 * 5 * 5),
        "fc1_w": w(ks[4], (16 * 5 * 5, 256), 16 * 5 * 5),
        "fc1_b": w(ks[5], (256,), 16 * 5 * 5),
        "fc2_w": w(ks[6], (256, 128), 256),
        "fc2_b": w(ks[7], (128,), 256),
        "fc3_w": w(ks[8], (128, num_classes), 128),
        "fc3_b": w(ks[9], (num_classes,), 128),
    }


def _reference_forward(params, x):
    dn = ("NCHW", "OIHW", "NCHW")
    a = jax.lax.conv_general_dilated(x, params["conv1_w"], (1, 1), "VALID",
                                     dimension_numbers=dn)
    a = jnp.maximum(a + params["conv1_b"][None, :, None, None], 0.0)
    a = jax.lax.reduce_window(a, -jnp.inf, jax.lax.max, (1, 1, 2, 2), (1, 1, 2, 2), "VALID")
    a = jax.lax.conv_general_dilated(a, params["conv2_w"], (1, 1), "VALID",
                                     dimension_numbers=dn)
    a = jnp.maximum(a + params["conv2_b"][None, :, None, None], 0.0)
    a = jax.lax.reduce_window(a, -jnp.inf, jax.lax.max, (1, 1, 2, 2), (1, 1, 2, 2), "VALID")
    a = a.reshape(a.shape[0], -1)
    a = jnp.maximum(a @ params["fc1_w"] + params["fc1_b"], 0.0)
    a = jnp.maximum(a @ params["fc2_w"] + params["fc2_b"], 0.0)
    return a @ params["fc3_w"] + params["fc3_b"]


if __name__ == "__main__":
    key = jax.random.PRNGKey(0)
    pkey, xkey = jax.random.split(key)
    params = init_params(pkey, num_classes=100)
    prepped = prepare_params(params)
    # LeNet's fc1 (16*5*5) implies a 32x32 RGB input; batch kept small.
    x = jax.random.normal(xkey, (2, 3, 32, 32), jnp.float32)

    out, shape_dict = lenet_forward(prepped, x, num_classes=100)
    out = jax.block_until_ready(out)

    assert out.shape == (2, 100), out.shape
    assert shape_dict == {
        1: (2, 6, 14, 14),
        2: (2, 16, 5, 5),
        3: (2, 400),
        4: (2, 256),
        5: (2, 128),
        6: (2, 100),
    }, shape_dict
    assert bool(jnp.all(jnp.isfinite(out)))

    # Numerical cross-check vs. a pure-XLA f32 reference (loose tol: bf16 MXU).
    ref = _reference_forward(params, x)
    err = float(jnp.max(jnp.abs(out - ref)))
    scale = float(jnp.max(jnp.abs(ref)))
    assert err <= 0.15 * scale + 0.15, (err, scale)

    print("KERNEL_OK")
</pallas_src>

<mosaic_0001>
module attributes {stable_mosaic.version = 11 : i64} {
  func.func @_lenet_kernel(%arg0: memref<32x256xbf16, #tpu.memory_space<vmem>>, %arg1: memref<256x1536xbf16, #tpu.memory_space<vmem>>, %arg2: memref<1x128xf32, #tpu.memory_space<vmem>>, %arg3: memref<128x1280xbf16, #tpu.memory_space<vmem>>, %arg4: memref<1x128xf32, #tpu.memory_space<vmem>>, %arg5: memref<640x256xbf16, #tpu.memory_space<vmem>>, %arg6: memref<1x256xf32, #tpu.memory_space<vmem>>, %arg7: memref<256x128xbf16, #tpu.memory_space<vmem>>, %arg8: memref<1x128xf32, #tpu.memory_space<vmem>>, %arg9: memref<128x128xbf16, #tpu.memory_space<vmem>>, %arg10: memref<1x128xf32, #tpu.memory_space<vmem>>, %arg11: memref<2x128xf32, #tpu.memory_space<vmem>>) attributes {dimension_semantics = [], scalar_prefetch = 0 : i64, scratch_operands = 0 : i64, tpu.core_type = #tpu.core_type<tc>} {
    %c0 = arith.constant 0 : index
    %c0_0 = arith.constant 0 : index
    %0 = vector.load %arg0[%c0, %c0_0] : memref<32x256xbf16, #tpu.memory_space<vmem>>, vector<32x256xbf16>
    %c0_1 = arith.constant 0 : index
    %c0_2 = arith.constant 0 : index
    %1 = vector.load %arg1[%c0_1, %c0_2] : memref<256x1536xbf16, #tpu.memory_space<vmem>>, vector<256x1536xbf16>
    %cst = arith.constant dense<0.000000e+00> : vector<32x1536xf32>
    %2 = tpu.matmul %0, %1, %cst {dimension_numbers = #tpu.dot_dimension_numbers<[1], [0], [0], [1], [0, 0, 1, 1], [], []>} : vector<32x256xbf16>, vector<256x1536xbf16>, vector<32x1536xf32> -> vector<32x1536xf32>
    %3 = vector.extract_strided_slice %2 {offsets = [0, 0], sizes = [32, 256], strides = [1, 1]} : vector<32x1536xf32> to vector<32x256xf32>
    %4 = vector.extract_strided_slice %2 {offsets = [0, 256], sizes = [32, 256], strides = [1, 1]} : vector<32x1536xf32> to vector<32x256xf32>
    %c31_i32 = arith.constant 31 : i32
    %5 = tpu.dynamic_rotate %4 by %c31_i32 dim 0 : vector<32x256xf32>, i32 -> vector<32x256xf32>
    %6 = arith.addf %3, %5 : vector<32x256xf32>
    %7 = vector.extract_strided_slice %2 {offsets = [0, 512], sizes = [32, 256], strides = [1, 1]} : vector<32x1536xf32> to vector<32x256xf32>
    %c30_i32 = arith.constant 30 : i32
    %8 = tpu.dynamic_rotate %7 by %c30_i32 dim 0 : vector<32x256xf32>, i32 -> vector<32x256xf32>
    %9 = arith.addf %6, %8 : vector<32x256xf32>
    %10 = vector.extract_strided_slice %2 {offsets = [0, 768], sizes = [32, 256], strides = [1, 1]} : vector<32x1536xf32> to vector<32x256xf32>
    %11 = vector.extract_strided_slice %2 {offsets = [0, 1024], sizes = [32, 256], strides = [1, 1]} : vector<32x1536xf32> to vector<32x256xf32>
    %c31_i32_3 = arith.constant 31 : i32
    %12 = tpu.dynamic_rotate %11 by %c31_i32_3 dim 0 : vector<32x256xf32>, i32 -> vector<32x256xf32>
    %13 = arith.addf %10, %12 : vector<32x256xf32>
    %14 = vector.extract_strided_slice %2 {offsets = [0, 1280], sizes = [32, 256], strides = [1, 1]} : vector<32x1536xf32> to vector<32x256xf32>
    %c30_i32_4 = arith.constant 30 : i32
    %15 = tpu.dynamic_rotate %14 by %c30_i32_4 dim 0 : vector<32x256xf32>, i32 -> vector<32x256xf32>
    %16 = arith.addf %13, %15 : vector<32x256xf32>
    %17 = arith.maximumf %9, %16 : vector<32x256xf32>
    %18 = vector.extract_strided_slice %17 {offsets = [0, 0], sizes = [32, 128], strides = [1, 1]} : vector<32x256xf32> to vector<32x128xf32>
    %19 = vector.extract_strided_slice %17 {offsets = [0, 128], sizes = [32, 128], strides = [1, 1]} : vector<32x256xf32> to vector<32x128xf32>
    %20 = arith.maximumf %18, %19 : vector<32x128xf32>
    %c0_5 = arith.constant 0 : index
    %c0_6 = arith.constant 0 : index
    %21 = vector.load %arg2[%c0_5, %c0_6] : memref<1x128xf32, #tpu.memory_space<vmem>>, vector<1x128xf32>
    %22 = vector.broadcast %21 : vector<1x128xf32> to vector<32x128xf32>
    %23 = arith.addf %20, %22 : vector<32x128xf32>
    %cst_7 = arith.constant 0.000000e+00 : f32
    %24 = vector.broadcast %cst_7 : f32 to vector<32x128xf32>
    %25 = arith.maximumf %23, %24 : vector<32x128xf32>
    %26 = arith.truncf %25 : vector<32x128xf32> to vector<32x128xbf16>
    %c0_8 = arith.constant 0 : index
    %c0_9 = arith.constant 0 : index
    %27 = vector.load %arg3[%c0_8, %c0_9] : memref<128x1280xbf16, #tpu.memory_space<vmem>>, vector<128x1280xbf16>
    %cst_10 = arith.constant dense<0.000000e+00> : vector<32x1280xf32>
    %28 = tpu.matmul %26, %27, %cst_10 {dimension_numbers = #tpu.dot_dimension_numbers<[1], [0], [0], [1], [0, 0, 1, 1], [], []>} : vector<32x128xbf16>, vector<128x1280xbf16>, vector<32x1280xf32> -> vector<32x1280xf32>
    %29 = vector.extract_strided_slice %28 {offsets = [0, 0], sizes = [32, 256], strides = [1, 1]} : vector<32x1280xf32> to vector<32x256xf32>
    %30 = vector.extract_strided_slice %28 {offsets = [0, 256], sizes = [32, 256], strides = [1, 1]} : vector<32x1280xf32> to vector<32x256xf32>
    %c31_i32_11 = arith.constant 31 : i32
    %31 = tpu.dynamic_rotate %30 by %c31_i32_11 dim 0 : vector<32x256xf32>, i32 -> vector<32x256xf32>
    %32 = arith.addf %29, %31 : vector<32x256xf32>
    %33 = vector.extract_strided_slice %28 {offsets = [0, 512], sizes = [32, 256], strides = [1, 1]} : vector<32x1280xf32> to vector<32x256xf32>
    %c30_i32_12 = arith.constant 30 : i32
    %34 = tpu.dynamic_rotate %33 by %c30_i32_12 dim 0 : vector<32x256xf32>, i32 -> vector<32x256xf32>
    %35 = arith.addf %32, %34 : vector<32x256xf32>
    %36 = vector.extract_strided_slice %28 {offsets = [0, 768], sizes = [32, 256], strides = [1, 1]} : vector<32x1280xf32> to vector<32x256xf32>
    %c29_i32 = arith.constant 29 : i32
    %37 = tpu.dynamic_rotate %36 by %c29_i32 dim 0 : vector<32x256xf32>, i32 -> vector<32x256xf32>
    %38 = arith.addf %35, %37 : vector<32x256xf32>
    %39 = vector.extract_strided_slice %28 {offsets = [0, 1024], sizes = [32, 256], strides = [1, 1]} : vector<32x1280xf32> to vector<32x256xf32>
    %c28_i32 = arith.constant 28 : i32
    %40 = tpu.dynamic_rotate %39 by %c28_i32 dim 0 : vector<32x256xf32>, i32 -> vector<32x256xf32>
    %41 = arith.addf %38, %40 : vector<32x256xf32>
    %c31_i32_13 = arith.constant 31 : i32
    %42 = tpu.dynamic_rotate %41 by %c31_i32_13 dim 0 : vector<32x256xf32>, i32 -> vector<32x256xf32>
    %43 = arith.maximumf %41, %42 : vector<32x256xf32>
    %44 = vector.extract_strided_slice %43 {offsets = [0, 0], sizes = [32, 128], strides = [1, 1]} : vector<32x256xf32> to vector<32x128xf32>
    %45 = vector.extract_strided_slice %43 {offsets = [0, 128], sizes = [32, 128], strides = [1, 1]} : vector<32x256xf32> to vector<32x128xf32>
    %46 = arith.maximumf %44, %45 : vector<32x128xf32>
    %c0_14 = arith.constant 0 : index
    %c0_15 = arith.constant 0 : index
    %47 = vector.load %arg4[%c0_14, %c0_15] : memref<1x128xf32, #tpu.memory_space<vmem>>, vector<1x128xf32>
    %48 = vector.broadcast %47 : vector<1x128xf32> to vector<32x128xf32>
    %49 = arith.addf %46, %48 : vector<32x128xf32>
    %cst_16 = arith.constant 0.000000e+00 : f32
    %50 = vector.broadcast %cst_16 : f32 to vector<32x128xf32>
    %51 = arith.maximumf %49, %50 : vector<32x128xf32>
    %52 = vector.extract_strided_slice %51 {offsets = [0, 0], sizes = [1, 128], strides = [1, 1]} : vector<32x128xf32> to vector<1x128xf32>
    %53 = vector.extract_strided_slice %51 {offsets = [2, 0], sizes = [1, 128], strides = [1, 1]} : vector<32x128xf32> to vector<1x128xf32>
    %54 = vector.extract_strided_slice %51 {offsets = [4, 0], sizes = [1, 128], strides = [1, 1]} : vector<32x128xf32> to vector<1x128xf32>
    %55 = vector.extract_strided_slice %51 {offsets = [6, 0], sizes = [1, 128], strides = [1, 1]} : vector<32x128xf32> to vector<1x128xf32>
    %56 = vector.extract_strided_slice %51 {offsets = [8, 0], sizes = [1, 128], strides = [1, 1]} : vector<32x128xf32> to vector<1x128xf32>
    %57 = tpu.concatenate %52, %53, %54, %55, %56 in 1 : vector<1x128xf32>, vector<1x128xf32>, vector<1x128xf32>, vector<1x128xf32>, vector<1x128xf32> -> vector<1x640xf32>
    %58 = vector.extract_strided_slice %51 {offsets = [16, 0], sizes = [1, 128], strides = [1, 1]} : vector<32x128xf32> to vector<1x128xf32>
    %59 = vector.extract_strided_slice %51 {offsets = [18, 0], sizes = [1, 128], strides = [1, 1]} : vector<32x128xf32> to vector<1x128xf32>
    %60 = vector.extract_strided_slice %51 {offsets = [20, 0], sizes = [1, 128], strides = [1, 1]} : vector<32x128xf32> to vector<1x128xf32>
    %61 = vector.extract_strided_slice %51 {offsets = [22, 0], sizes = [1, 128], strides = [1, 1]} : vector<32x128xf32> to vector<1x128xf32>
    %62 = vector.extract_strided_slice %51 {offsets = [24, 0], sizes = [1, 128], strides = [1, 1]} : vector<32x128xf32> to vector<1x128xf32>
    %63 = tpu.concatenate %58, %59, %60, %61, %62 in 1 : vector<1x128xf32>, vector<1x128xf32>, vector<1x128xf32>, vector<1x128xf32>, vector<1x128xf32> -> vector<1x640xf32>
    %64 = tpu.concatenate %57, %63 in 0 : vector<1x640xf32>, vector<1x640xf32> -> vector<2x640xf32>
    %65 = arith.truncf %64 : vector<2x640xf32> to vector<2x640xbf16>
    %c0_17 = arith.constant 0 : index
    %c0_18 = arith.constant 0 : index
    %66 = vector.load %arg5[%c0_17, %c0_18] : memref<640x256xbf16, #tpu.memory_space<vmem>>, vector<640x256xbf16>
    %cst_19 = arith.constant dense<0.000000e+00> : vector<2x256xf32>
    %67 = tpu.matmul %65, %66, %cst_19 {dimension_numbers = #tpu.dot_dimension_numbers<[1], [0], [0], [1], [0, 0, 1, 1], [], []>} : vector<2x640xbf16>, vector<640x256xbf16>, vector<2x256xf32> -> vector<2x256xf32>
    %c0_20 = arith.constant 0 : index
    %c0_21 = arith.constant 0 : index
    %68 = vector.load %arg6[%c0_20, %c0_21] : memref<1x256xf32, #tpu.memory_space<vmem>>, vector<1x256xf32>
    %69 = vector.broadcast %68 : vector<1x256xf32> to vector<2x256xf32>
    %70 = arith.addf %67, %69 : vector<2x256xf32>
    %cst_22 = arith.constant 0.000000e+00 : f32
    %71 = vector.broadcast %cst_22 : f32 to vector<2x256xf32>
    %72 = arith.maximumf %70, %71 : vector<2x256xf32>
    %73 = arith.truncf %72 : vector<2x256xf32> to vector<2x256xbf16>
    %c0_23 = arith.constant 0 : index
    %c0_24 = arith.constant 0 : index
    %74 = vector.load %arg7[%c0_23, %c0_24] : memref<256x128xbf16, #tpu.memory_space<vmem>>, vector<256x128xbf16>
    %cst_25 = arith.constant dense<0.000000e+00> : vector<2x128xf32>
    %75 = tpu.matmul %73, %74, %cst_25 {dimension_numbers = #tpu.dot_dimension_numbers<[1], [0], [0], [1], [0, 0, 1, 1], [], []>} : vector<2x256xbf16>, vector<256x128xbf16>, vector<2x128xf32> -> vector<2x128xf32>
    %c0_26 = arith.constant 0 : index
    %c0_27 = arith.constant 0 : index
    %76 = vector.load %arg8[%c0_26, %c0_27] : memref<1x128xf32, #tpu.memory_space<vmem>>, vector<1x128xf32>
    %77 = vector.broadcast %76 : vector<1x128xf32> to vector<2x128xf32>
    %78 = arith.addf %75, %77 : vector<2x128xf32>
    %cst_28 = arith.constant 0.000000e+00 : f32
    %79 = vector.broadcast %cst_28 : f32 to vector<2x128xf32>
    %80 = arith.maximumf %78, %79 : vector<2x128xf32>
    %81 = arith.truncf %80 : vector<2x128xf32> to vector<2x128xbf16>
    %c0_29 = arith.constant 0 : index
    %c0_30 = arith.constant 0 : index
    %82 = vector.load %arg9[%c0_29, %c0_30] : memref<128x128xbf16, #tpu.memory_space<vmem>>, vector<128x128xbf16>
    %cst_31 = arith.constant dense<0.000000e+00> : vector<2x128xf32>
    %83 = tpu.matmul %81, %82, %cst_31 {dimension_numbers = #tpu.dot_dimension_numbers<[1], [0], [0], [1], [0, 0, 1, 1], [], []>} : vector<2x128xbf16>, vector<128x128xbf16>, vector<2x128xf32> -> vector<2x128xf32>
    %c0_32 = arith.constant 0 : index
    %c0_33 = arith.constant 0 : index
    %84 = vector.load %arg10[%c0_32, %c0_33] : memref<1x128xf32, #tpu.memory_space<vmem>>, vector<1x128xf32>
    %85 = vector.broadcast %84 : vector<1x128xf32> to vector<2x128xf32>
    %86 = arith.addf %83, %85 : vector<2x128xf32>
    %c0_34 = arith.constant 0 : index
    %c0_35 = arith.constant 0 : index
    %87 = vector.load %arg11[%c0_34, %c0_35] : memref<2x128xf32, #tpu.memory_space<vmem>>, vector<2x128xf32>
    tpu.vector_store %arg11[%c0_34, %c0_35], %86 {strides = array<i32>} : memref<2x128xf32, #tpu.memory_space<vmem>>, vector<2x128xf32>,
    return
  }
}

</mosaic_0001>

<llo_original>
// kernel: _lenet_logits.1
$region0: #{_lenet_logits.1}
  #allocation0 [shape = 'u32[]', space=smem, size = 0x4, offset = 0x4, fixed_abs, tag = 'smem constant byte address 0x4 - core index']
  #allocation1 [shape = 'u32[72,128]{1,0:T(1,128)}', space=vmem, size = 0x9000, scoped, tag = 'internal scratch']
  %s0 = inlined_call_operand.vmem [shape: bf16[32,256], index: 0, kind: input, shape index: {}]
  %s1 = inlined_call_operand.hbm [shape: bf16[256,1536], index: 1, kind: input, shape index: {}]
  %s2 = inlined_call_operand.vmem [shape: f32[1,128], index: 2, kind: input, shape index: {}]
  %s3 = inlined_call_operand.vmem [shape: bf16[128,1280], index: 3, kind: input, shape index: {}]
  %s4 = inlined_call_operand.vmem [shape: f32[1,128], index: 4, kind: input, shape index: {}]
  %s5 = inlined_call_operand.hbm [shape: bf16[640,256], index: 5, kind: input, shape index: {}]
  %s6 = inlined_call_operand.vmem [shape: f32[1,256], index: 6, kind: input, shape index: {}]
  %s7 = inlined_call_operand.hbm [shape: bf16[256,128], index: 7, kind: input, shape index: {}]
  %s8 = inlined_call_operand.vmem [shape: f32[1,128], index: 8, kind: input, shape index: {}]
  %s9 = inlined_call_operand.vmem [shape: bf16[128,128], index: 9, kind: input, shape index: {}]
  %s10 = inlined_call_operand.vmem [shape: f32[1,128], index: 10, kind: input, shape index: {}]
  %s11 = inlined_call_operand.hbm [shape: f32[2,128], index: 11, kind: output, shape index: {}]
  %s12 = sld [smem:[#allocation0]]
  $region66: #{_lenet_logits.1} parent=0
    _
  %s14 = ssub.s32 1, %s12
  %s15 = scalar_select 0, %s14, %s12
  $region1: #{_lenet_logits.1} parent=0
    #allocation2 [shape = 'u8[786432]{0}', space=vmem, size = 0xc0000, scoped, tag = 'input window, operand 1, single buffered']
    #allocation3 [shape = 's32[1]{0}', space=sflag, size = 0x4, scoped, tag = 'scoped memory for _lenet_logits.1']
    #allocation4 [shape = 's32[1]{0}', space=sflag, size = 0x4, scoped, tag = 'scoped memory for _lenet_logits.1']
    #allocation5 [shape = 'u8[327680]{0}', space=vmem, size = 0x50000, scoped, tag = 'input window, operand 5, single buffered']
    #allocation6 [shape = 's32[1]{0}', space=sflag, size = 0x4, scoped, tag = 'scoped memory for _lenet_logits.1']
    #allocation7 [shape = 'u8[65536]{0}', space=vmem, size = 0x10000, scoped, tag = 'input window, operand 7, single buffered']
    #allocation8 [shape = 'u8[1024]{0}', space=vmem, size = 0x400, scoped, tag = 'output window, operand 0, single buffered']
    %16 = vsyncpa [#allocation3], 0
    %17 = vsyncpa [#allocation6], 0
    %18 = vsyncpa [#allocation4], 0
    // Predicated region
    $region2: #{_lenet_logits.1} parent=1 // pred_check
      _
    $region3: #{_lenet_logits.1} parent=1 // pred_check_branch
      %20 = sbr.rel (0) target = $region5
    $region4: #{_lenet_logits.1} parent=1 // pred_region
      _
    $region5: #{_lenet_logits.1} parent=1 // pred_fallthru
      _
    // Predicated region
    $region6: #{_lenet_logits.1} parent=1 // pred_check
      _
    $region7: #{_lenet_logits.1} parent=1 // pred_check_branch
      %22 = sbr.rel (0) target = $region9
    $region8: #{_lenet_logits.1} parent=1 // pred_region
      %24 = vsyncadd [#allocation3], 0
      %s25 = sshll.u32 %s1, 4
      %s26 = int_to_ptr.hbm [resolvable:$true] %s25
      %s27 = sshll.u32 [#allocation2], 4
      %s28 = int_to_ptr.vmem [resolvable:$true] %s27
      %33 = dma.hbm_to_vmem [thread:$0]  %s26, 24576, %s28, [#allocation3], 768, 768, 48
    $region9: #{_lenet_logits.1} parent=1 // pred_fallthru
      _
    // Predicated region
    $region10: #{_lenet_logits.1} parent=1 // pred_check
      _
    $region11: #{_lenet_logits.1} parent=1 // pred_check_branch
      %35 = sbr.rel (0) target = $region13
    $region12: #{_lenet_logits.1} parent=1 // pred_region
      _
    $region13: #{_lenet_logits.1} parent=1 // pred_fallthru
      _
    // Predicated region
    $region14: #{_lenet_logits.1} parent=1 // pred_check
      _
    $region15: #{_lenet_logits.1} parent=1 // pred_check_branch
      %37 = sbr.rel (0) target = $region17
    $region16: #{_lenet_logits.1} parent=1 // pred_region
      _
    $region17: #{_lenet_logits.1} parent=1 // pred_fallthru
      _
    // Predicated region
    $region18: #{_lenet_logits.1} parent=1 // pred_check
      _
    $region19: #{_lenet_logits.1} parent=1 // pred_check_branch
      %39 = sbr.rel (0) target = $region21
    $region20: #{_lenet_logits.1} parent=1 // pred_region
      _
    $region21: #{_lenet_logits.1} parent=1 // pred_fallthru
      _
    // Predicated region
    $region22: #{_lenet_logits.1} parent=1 // pred_check
      _
    $region23: #{_lenet_logits.1} parent=1 // pred_check_branch
      %41 = sbr.rel (0) target = $region25
    $region24: #{_lenet_logits.1} parent=1 // pred_region
      %43 = vsyncadd [#allocation6], 0
      %s44 = sshll.u32 %s5, 4
      %s45 = int_to_ptr.hbm [resolvable:$true] %s44
      %s46 = sshll.u32 [#allocation5], 4
      %s47 = int_to_ptr.vmem [resolvable:$true] %s46
      %52 = dma.hbm_to_vmem [thread:$0]  %s45, 10240, %s47, [#allocation6], 128, 128, 8
    $region25: #{_lenet_logits.1} parent=1 // pred_fallthru
      _
    // Predicated region
    $region26: #{_lenet_logits.1} parent=1 // pred_check
      _
    $region27: #{_lenet_logits.1} parent=1 // pred_check_branch
      %54 = sbr.rel (0) target = $region29
    $region28: #{_lenet_logits.1} parent=1 // pred_region
      _
    $region29: #{_lenet_logits.1} parent=1 // pred_fallthru
      _
    // Predicated region
    $region30: #{_lenet_logits.1} parent=1 // pred_check
      _
    $region31: #{_lenet_logits.1} parent=1 // pred_check_branch
      %56 = sbr.rel (0) target = $region33
    $region32: #{_lenet_logits.1} parent=1 // pred_region
      %58 = vsyncadd [#allocation6], 0
      %s59 = sshll.u32 %s7, 4
      %s60 = int_to_ptr.hbm [resolvable:$true] %s59
      %s61 = sshll.u32 [#allocation7], 4
      %s62 = int_to_ptr.vmem [resolvable:$true] %s61
      %67 = dma.hbm_to_vmem [thread:$0]  %s60, 2048, %s62, [#allocation6], 64, 64, 4
    $region33: #{_lenet_logits.1} parent=1 // pred_fallthru
      _
    // Predicated region
    $region34: #{_lenet_logits.1} parent=1 // pred_check
      _
    $region35: #{_lenet_logits.1} parent=1 // pred_check_branch
      %69 = sbr.rel (0) target = $region37
    $region36: #{_lenet_logits.1} parent=1 // pred_region
      _
    $region37: #{_lenet_logits.1} parent=1 // pred_fallthru
      _
    // Predicated region
    $region38: #{_lenet_logits.1} parent=1 // pred_check
      _
    $region39: #{_lenet_logits.1} parent=1 // pred_check_branch
      %71 = sbr.rel (0) target = $region41
    $region40: #{_lenet_logits.1} parent=1 // pred_region
      _
    $region41: #{_lenet_logits.1} parent=1 // pred_fallthru
      _
    // Predicated region
    $region42: #{_lenet_logits.1} parent=1 // pred_check
      _
    $region43: #{_lenet_logits.1} parent=1 // pred_check_branch
      %73 = sbr.rel (0) target = $region45
    $region44: #{_lenet_logits.1} parent=1 // pred_region
      _
    $region45: #{_lenet_logits.1} parent=1 // pred_fallthru
      _
    // Predicated region
    $region46: #{_lenet_logits.1} parent=1 // pred_check
      _
    $region47: #{_lenet_logits.1} parent=1 // pred_check_branch
      %75 = sbr.rel (0) target = $region49
    $region48: #{_lenet_logits.1} parent=1 // pred_region
      %77 = dma.done [#allocation3], 24576
    $region49: #{_lenet_logits.1} parent=1 // pred_fallthru
      _
    // Predicated region
    $region50: #{_lenet_logits.1} parent=1 // pred_check
      _
    $region51: #{_lenet_logits.1} parent=1 // pred_check_branch
      %79 = sbr.rel (0) target = $region53
    $region52: #{_lenet_logits.1} parent=1 // pred_region
      %81 = dma.done [#allocation6], 10240
    $region53: #{_lenet_logits.1} parent=1 // pred_fallthru
      _
    // Predicated region
    $region54: #{_lenet_logits.1} parent=1 // pred_check
      _
    $region55: #{_lenet_logits.1} parent=1 // pred_check_branch
      %83 = sbr.rel (0) target = $region57
    $region56: #{_lenet_logits.1} parent=1 // pred_region
      %85 = dma.done [#allocation6], 2048
    $region57: #{_lenet_logits.1} parent=1 // pred_fallthru
      _
    %v86 = vld [vmem:[%s0] sm:$0xff]
    %v87 = vld [vmem:[%s0 + $0x8] sm:$0xff]
    %v88 = vld [vmem:[%s0 + $0x10] sm:$0xff]
    %v89 = vld [vmem:[%s0 + $0x18] sm:$0xff]
    %v90 = vld [vmem:[#allocation2] sm:$0xff]
    %v91 = vld [vmem:[#allocation2 + $0x8] sm:$0xff]
    %v92 = vld [vmem:[#allocation2 + $0x10] sm:$0xff]
    %v93 = vld [vmem:[#allocation2 + $0x18] sm:$0xff]
    %v94 = vld [vmem:[#allocation2 + $0x20] sm:$0xff]
    %v95 = vld [vmem:[#allocation2 + $0x28] sm:$0xff]
    %v96 = vld [vmem:[#allocation2 + $0x30] sm:$0xff]
    %v97 = vld [vmem:[#allocation2 + $0x38] sm:$0xff]
    %v98 = vld [vmem:[#allocation2 + $0x40] sm:$0xff]
    %v99 = vld [vmem:[#allocation2 + $0x48] sm:$0xff]
    %v100 = vld [vmem:[#allocation2 + $0x50] sm:$0xff]
    %v101 = vld [vmem:[#allocation2 + $0x58] sm:$0xff]
    %v102 = vld [vmem:[#allocation2 + $0x60] sm:$0xff]
    %v103 = vld [vmem:[#allocation2 + $0x68] sm:$0xff]
    %v104 = vld [vmem:[#allocation2 + $0x70] sm:$0xff]
    %v105 = vld [vmem:[#allocation2 + $0x78] sm:$0xff]
    %v106 = vld [vmem:[#allocation2 + $0x80] sm:$0xff]
    %v107 = vld [vmem:[#allocation2 + $0x88] sm:$0xff]
    %v108 = vld [vmem:[#allocation2 + $0x90] sm:$0xff]
    %v109 = vld [vmem:[#allocation2 + $0x98] sm:$0xff]
    %v110 = vld [vmem:[#allocation2 + $0xa0] sm:$0xff]
    %v111 = vld [vmem:[#allocation2 + $0xa8] sm:$0xff]
    %v112 = vld [vmem:[#allocation2 + $0xb0] sm:$0xff]
    %v113 = vld [vmem:[#allocation2 + $0xb8] sm:$0xff]
    %v114 = vld [vmem:[#allocation2 + $0xc0] sm:$0xff]
    %v115 = vld [vmem:[#allocation2 + $0xc8] sm:$0xff]
    %v116 = vld [vmem:[#allocation2 + $0xd0] sm:$0xff]
    %v117 = vld [vmem:[#allocation2 + $0xd8] sm:$0xff]
    %v118 = vld [vmem:[#allocation2 + $0xe0] sm:$0xff]
    %v119 = vld [vmem:[#allocation2 + $0xe8] sm:$0xff]
    %v120 = vld [vmem:[#allocation2 + $0xf0] sm:$0xff]
    %v121 = vld [vmem:[#allocation2 + $0xf8] sm:$0xff]
    %v122 = vld [vmem:[#allocation2 + $0x100] sm:$0xff]
    %v123 = vld [vmem:[#allocation2 + $0x108] sm:$0xff]
    %v124 = vld [vmem:[#allocation2 + $0x110] sm:$0xff]
    %v125 = vld [vmem:[#allocation2 + $0x118] sm:$0xff]
    %v126 = vld [vmem:[#allocation2 + $0x120] sm:$0xff]
    %v127 = vld [vmem:[#allocation2 + $0x128] sm:$0xff]
    %v128 = vld [vmem:[#allocation2 + $0x130] sm:$0xff]
    %v129 = vld [vmem:[#allocation2 + $0x138] sm:$0xff]
    %v130 = vld [vmem:[#allocation2 + $0x140] sm:$0xff]
    %v131 = vld [vmem:[#allocation2 + $0x148] sm:$0xff]
    %v132 = vld [vmem:[#allocation2 + $0x150] sm:$0xff]
    %v133 = vld [vmem:[#allocation2 + $0x158] sm:$0xff]
    %v134 = vld [vmem:[#allocation2 + $0x160] sm:$0xff]
    %v135 = vld [vmem:[#allocation2 + $0x168] sm:$0xff]
    %v136 = vld [vmem:[#allocation2 + $0x170] sm:$0xff]
    %v137 = vld [vmem:[#allocation2 + $0x178] sm:$0xff]
    %v138 = vld [vmem:[#allocation2 + $0x180] sm:$0xff]
    %v139 = vld [vmem:[#allocation2 + $0x188] sm:$0xff]
    %v140 = vld [vmem:[#allocation2 + $0x190] sm:$0xff]
    %v141 = vld [vmem:[#allocation2 + $0x198] sm:$0xff]
    %v142 = vld [vmem:[#allocation2 + $0x1a0] sm:$0xff]
    %v143 = vld [vmem:[#allocation2 + $0x1a8] sm:$0xff]
    %v144 = vld [vmem:[#allocation2 + $0x1b0] sm:$0xff]
    %v145 = vld [vmem:[#allocation2 + $0x1b8] sm:$0xff]
    %v146 = vld [vmem:[#allocation2 + $0x1c0] sm:$0xff]
    %v147 = vld [vmem:[#allocation2 + $0x1c8] sm:$0xff]
    %v148 = vld [vmem:[#allocation2 + $0x1d0] sm:$0xff]
    %v149 = vld [vmem:[#allocation2 + $0x1d8] sm:$0xff]
    %v150 = vld [vmem:[#allocation2 + $0x1e0] sm:$0xff]
    %v151 = vld [vmem:[#allocation2 + $0x1e8] sm:$0xff]
    %v152 = vld [vmem:[#allocation2 + $0x1f0] sm:$0xff]
    %v153 = vld [vmem:[#allocation2 + $0x1f8] sm:$0xff]
    %v154 = vld [vmem:[#allocation2 + $0x200] sm:$0xff]
    %v155 = vld [vmem:[#allocation2 + $0x208] sm:$0xff]
    %v156 = vld [vmem:[#allocation2 + $0x210] sm:$0xff]
    %v157 = vld [vmem:[#allocation2 + $0x218] sm:$0xff]
    %v158 = vld [vmem:[#allocation2 + $0x220] sm:$0xff]
    %v159 = vld [vmem:[#allocation2 + $0x228] sm:$0xff]
    %v160 = vld [vmem:[#allocation2 + $0x230] sm:$0xff]
    %v161 = vld [vmem:[#allocation2 + $0x238] sm:$0xff]
    %v162 = vld [vmem:[#allocation2 + $0x240] sm:$0xff]
    %v163 = vld [vmem:[#allocation2 + $0x248] sm:$0xff]
    %v164 = vld [vmem:[#allocation2 + $0x250] sm:$0xff]
    %v165 = vld [vmem:[#allocation2 + $0x258] sm:$0xff]
    %v166 = vld [vmem:[#allocation2 + $0x260] sm:$0xff]
    %v167 = vld [vmem:[#allocation2 + $0x268] sm:$0xff]
    %v168 = vld [vmem:[#allocation2 + $0x270] sm:$0xff]
    %v169 = vld [vmem:[#allocation2 + $0x278] sm:$0xff]
    %v170 = vld [vmem:[#allocation2 + $0x280] sm:$0xff]
    %v171 = vld [vmem:[#allocation2 + $0x288] sm:$0xff]
    %v172 = vld [vmem:[#allocation2 + $0x290] sm:$0xff]
    %v173 = vld [vmem:[#allocation2 + $0x298] sm:$0xff]
    %v174 = vld [vmem:[#allocation2 + $0x2a0] sm:$0xff]
    %v175 = vld [vmem:[#allocation2 + $0x2a8] sm:$0xff]
    %v176 = vld [vmem:[#allocation2 + $0x2b0] sm:$0xff]
    %v177 = vld [vmem:[#allocation2 + $0x2b8] sm:$0xff]
    %v178 = vld [vmem:[#allocation2 + $0x2c0] sm:$0xff]
    %v179 = vld [vmem:[#allocation2 + $0x2c8] sm:$0xff]
    %v180 = vld [vmem:[#allocation2 + $0x2d0] sm:$0xff]
    %v181 = vld [vmem:[#allocation2 + $0x2d8] sm:$0xff]
    %v182 = vld [vmem:[#allocation2 + $0x2e0] sm:$0xff]
    %v183 = vld [vmem:[#allocation2 + $0x2e8] sm:$0xff]
    %v184 = vld [vmem:[#allocation2 + $0x2f0] sm:$0xff]
    %v185 = vld [vmem:[#allocation2 + $0x2f8] sm:$0xff]
    %v186 = vld [vmem:[#allocation2 + $0x300] sm:$0xff]
    %v187 = vld [vmem:[#allocation2 + $0x308] sm:$0xff]
    %v188 = vld [vmem:[#allocation2 + $0x310] sm:$0xff]
    %v189 = vld [vmem:[#allocation2 + $0x318] sm:$0xff]
    %v190 = vld [vmem:[#allocation2 + $0x320] sm:$0xff]
    %v191 = vld [vmem:[#allocation2 + $0x328] sm:$0xff]
    %v192 = vld [vmem:[#allocation2 + $0x330] sm:$0xff]
    %v193 = vld [vmem:[#allocation2 + $0x338] sm:$0xff]
    %v194 = vld [vmem:[#allocation2 + $0x340] sm:$0xff]
    %v195 = vld [vmem:[#allocation2 + $0x348] sm:$0xff]
    %v196 = vld [vmem:[#allocation2 + $0x350] sm:$0xff]
    %v197 = vld [vmem:[#allocation2 + $0x358] sm:$0xff]
    %v198 = vld [vmem:[#allocation2 + $0x360] sm:$0xff]
    %v199 = vld [vmem:[#allocation2 + $0x368] sm:$0xff]
    %v200 = vld [vmem:[#allocation2 + $0x370] sm:$0xff]
    %v201 = vld [vmem:[#allocation2 + $0x378] sm:$0xff]
    %v202 = vld [vmem:[#allocation2 + $0x380] sm:$0xff]
    %v203 = vld [vmem:[#allocation2 + $0x388] sm:$0xff]
    %v204 = vld [vmem:[#allocation2 + $0x390] sm:$0xff]
    %v205 = vld [vmem:[#allocation2 + $0x398] sm:$0xff]
    %v206 = vld [vmem:[#allocation2 + $0x3a0] sm:$0xff]
    %v207 = vld [vmem:[#allocation2 + $0x3a8] sm:$0xff]
    %v208 = vld [vmem:[#allocation2 + $0x3b0] sm:$0xff]
    %v209 = vld [vmem:[#allocation2 + $0x3b8] sm:$0xff]
    %v210 = vld [vmem:[#allocation2 + $0x3c0] sm:$0xff]
    %v211 = vld [vmem:[#allocation2 + $0x3c8] sm:$0xff]
    %v212 = vld [vmem:[#allocation2 + $0x3d0] sm:$0xff]
    %v213 = vld [vmem:[#allocation2 + $0x3d8] sm:$0xff]
    %v214 = vld [vmem:[#allocation2 + $0x3e0] sm:$0xff]
    %v215 = vld [vmem:[#allocation2 + $0x3e8] sm:$0xff]
    %v216 = vld [vmem:[#allocation2 + $0x3f0] sm:$0xff]
    %v217 = vld [vmem:[#allocation2 + $0x3f8] sm:$0xff]
    %v218 = vld [vmem:[#allocation2 + $0x400] sm:$0xff]
    %v219 = vld [vmem:[#allocation2 + $0x408] sm:$0xff]
    %v220 = vld [vmem:[#allocation2 + $0x410] sm:$0xff]
    %v221 = vld [vmem:[#allocation2 + $0x418] sm:$0xff]
    %v222 = vld [vmem:[#allocation2 + $0x420] sm:$0xff]
    %v223 = vld [vmem:[#allocation2 + $0x428] sm:$0xff]
    %v224 = vld [vmem:[#allocation2 + $0x430] sm:$0xff]
    %v225 = vld [vmem:[#allocation2 + $0x438] sm:$0xff]
    %v226 = vld [vmem:[#allocation2 + $0x440] sm:$0xff]
    %v227 = vld [vmem:[#allocation2 + $0x448] sm:$0xff]
    %v228 = vld [vmem:[#allocation2 + $0x450] sm:$0xff]
    %v229 = vld [vmem:[#allocation2 + $0x458] sm:$0xff]
    %v230 = vld [vmem:[#allocation2 + $0x460] sm:$0xff]
    %v231 = vld [vmem:[#allocation2 + $0x468] sm:$0xff]
    %v232 = vld [vmem:[#allocation2 + $0x470] sm:$0xff]
    %v233 = vld [vmem:[#allocation2 + $0x478] sm:$0xff]
    %v234 = vld [vmem:[#allocation2 + $0x480] sm:$0xff]
    %v235 = vld [vmem:[#allocation2 + $0x488] sm:$0xff]
    %v236 = vld [vmem:[#allocation2 + $0x490] sm:$0xff]
    %v237 = vld [vmem:[#allocation2 + $0x498] sm:$0xff]
    %v238 = vld [vmem:[#allocation2 + $0x4a0] sm:$0xff]
    %v239 = vld [vmem:[#allocation2 + $0x4a8] sm:$0xff]
    %v240 = vld [vmem:[#allocation2 + $0x4b0] sm:$0xff]
    %v241 = vld [vmem:[#allocation2 + $0x4b8] sm:$0xff]
    %v242 = vld [vmem:[#allocation2 + $0x4c0] sm:$0xff]
    %v243 = vld [vmem:[#allocation2 + $0x4c8] sm:$0xff]
    %v244 = vld [vmem:[#allocation2 + $0x4d0] sm:$0xff]
    %v245 = vld [vmem:[#allocation2 + $0x4d8] sm:$0xff]
    %v246 = vld [vmem:[#allocation2 + $0x4e0] sm:$0xff]
    %v247 = vld [vmem:[#allocation2 + $0x4e8] sm:$0xff]
    %v248 = vld [vmem:[#allocation2 + $0x4f0] sm:$0xff]
    %v249 = vld [vmem:[#allocation2 + $0x4f8] sm:$0xff]
    %v250 = vld [vmem:[#allocation2 + $0x500] sm:$0xff]
    %v251 = vld [vmem:[#allocation2 + $0x508] sm:$0xff]
    %v252 = vld [vmem:[#allocation2 + $0x510] sm:$0xff]
    %v253 = vld [vmem:[#allocation2 + $0x518] sm:$0xff]
    %v254 = vld [vmem:[#allocation2 + $0x520] sm:$0xff]
    %v255 = vld [vmem:[#allocation2 + $0x528] sm:$0xff]
    %v256 = vld [vmem:[#allocation2 + $0x530] sm:$0xff]
    %v257 = vld [vmem:[#allocation2 + $0x538] sm:$0xff]
    %v258 = vld [vmem:[#allocation2 + $0x540] sm:$0xff]
    %v259 = vld [vmem:[#allocation2 + $0x548] sm:$0xff]
    %v260 = vld [vmem:[#allocation2 + $0x550] sm:$0xff]
    %v261 = vld [vmem:[#allocation2 + $0x558] sm:$0xff]
    %v262 = vld [vmem:[#allocation2 + $0x560] sm:$0xff]
    %v263 = vld [vmem:[#allocation2 + $0x568] sm:$0xff]
    %v264 = vld [vmem:[#allocation2 + $0x570] sm:$0xff]
    %v265 = vld [vmem:[#allocation2 + $0x578] sm:$0xff]
    %v266 = vld [vmem:[#allocation2 + $0x580] sm:$0xff]
    %v267 = vld [vmem:[#allocation2 + $0x588] sm:$0xff]
    %v268 = vld [vmem:[#allocation2 + $0x590] sm:$0xff]
    %v269 = vld [vmem:[#allocation2 + $0x598] sm:$0xff]
    %v270 = vld [vmem:[#allocation2 + $0x5a0] sm:$0xff]
    %v271 = vld [vmem:[#allocation2 + $0x5a8] sm:$0xff]
    %v272 = vld [vmem:[#allocation2 + $0x5b0] sm:$0xff]
    %v273 = vld [vmem:[#allocation2 + $0x5b8] sm:$0xff]
    %v274 = vld [vmem:[#allocation2 + $0x5c0] sm:$0xff]
    %v275 = vld [vmem:[#allocation2 + $0x5c8] sm:$0xff]
    %v276 = vld [vmem:[#allocation2 + $0x5d0] sm:$0xff]
    %v277 = vld [vmem:[#allocation2 + $0x5d8] sm:$0xff]
    %v278 = vld [vmem:[#allocation2 + $0x5e0] sm:$0xff]
    %v279 = vld [vmem:[#allocation2 + $0x5e8] sm:$0xff]
    %v280 = vld [vmem:[#allocation2 + $0x5f0] sm:$0xff]
    %v281 = vld [vmem:[#allocation2 + $0x5f8] sm:$0xff]
    %v286 = vunpack.c.l.b16 %v86
    %v287 = vunpack.c.h.b16 %v86
    %v288 = vunpack.c.l.b16 %v87
    %v289 = vunpack.c.h.b16 %v87
    %v290 = vunpack.c.l.b16 %v88
    %v291 = vunpack.c.h.b16 %v88
    %v292 = vunpack.c.l.b16 %v89
    %v293 = vunpack.c.h.b16 %v89
    %v294 = vpack.c.b16 %v288, %v286
    %v295 = vpack.c.b16 %v289, %v287
    %v296 = vpack.c.b16 %v292, %v290
    %v297 = vpack.c.b16 %v293, %v291
    %v494 = vunpack.c.l.b16 %v90
    %v495 = vunpack.c.h.b16 %v90
    %v496 = vunpack.c.l.b16 %v91
    %v497 = vunpack.c.h.b16 %v91
    %v498 = vunpack.c.l.b16 %v92
    %v499 = vunpack.c.h.b16 %v92
    %v500 = vunpack.c.l.b16 %v93
    %v501 = vunpack.c.h.b16 %v93
    %v502 = vunpack.c.l.b16 %v94
    %v503 = vunpack.c.h.b16 %v94
    %v504 = vunpack.c.l.b16 %v95
    %v505 = vunpack.c.h.b16 %v95
    %v506 = vunpack.c.l.b16 %v96
    %v507 = vunpack.c.h.b16 %v96
    %v508 = vunpack.c.l.b16 %v97
    %v509 = vunpack.c.h.b16 %v97
    %v510 = vunpack.c.l.b16 %v98
    %v511 = vunpack.c.h.b16 %v98
    %v512 = vunpack.c.l.b16 %v99
    %v513 = vunpack.c.h.b16 %v99
    %v514 = vunpack.c.l.b16 %v100
    %v515 = vunpack.c.h.b16 %v100
    %v516 = vunpack.c.l.b16 %v101
    %v517 = vunpack.c.h.b16 %v101
    %v518 = vunpack.c.l.b16 %v102
    %v519 = vunpack.c.h.b16 %v102
    %v520 = vunpack.c.l.b16 %v103
    %v521 = vunpack.c.h.b16 %v103
    %v522 = vunpack.c.l.b16 %v104
    %v523 = vunpack.c.h.b16 %v104
    %v524 = vunpack.c.l.b16 %v105
    %v525 = vunpack.c.h.b16 %v105
    %v526 = vunpack.c.l.b16 %v106
    %v527 = vunpack.c.h.b16 %v106
    %v528 = vunpack.c.l.b16 %v107
    %v529 = vunpack.c.h.b16 %v107
    %v530 = vunpack.c.l.b16 %v108
    %v531 = vunpack.c.h.b16 %v108
    %v532 = vunpack.c.l.b16 %v109
    %v533 = vunpack.c.h.b16 %v109
    %v534 = vunpack.c.l.b16 %v110
    %v535 = vunpack.c.h.b16 %v110
    %v536 = vunpack.c.l.b16 %v111
    %v537 = vunpack.c.h.b16 %v111
    %v538 = vunpack.c.l.b16 %v112
    %v539 = vunpack.c.h.b16 %v112
    %v540 = vunpack.c.l.b16 %v113
    %v541 = vunpack.c.h.b16 %v113
    %v542 = vunpack.c.l.b16 %v114
    %v543 = vunpack.c.h.b16 %v114
    %v544 = vunpack.c.l.b16 %v115
    %v545 = vunpack.c.h.b16 %v115
    %v546 = vunpack.c.l.b16 %v116
    %v547 = vunpack.c.h.b16 %v116
    %v548 = vunpack.c.l.b16 %v117
    %v549 = vunpack.c.h.b16 %v117
    %v550 = vunpack.c.l.b16 %v118
    %v551 = vunpack.c.h.b16 %v118
    %v552 = vunpack.c.l.b16 %v119
    %v553 = vunpack.c.h.b16 %v119
    %v554 = vunpack.c.l.b16 %v120
    %v555 = vunpack.c.h.b16 %v120
    %v556 = vunpack.c.l.b16 %v121
    %v557 = vunpack.c.h.b16 %v121
    %v558 = vunpack.c.l.b16 %v122
    %v559 = vunpack.c.h.b16 %v122
    %v560 = vunpack.c.l.b16 %v123
    %v561 = vunpack.c.h.b16 %v123
    %v562 = vunpack.c.l.b16 %v124
    %v563 = vunpack.c.h.b16 %v124
    %v564 = vunpack.c.l.b16 %v125
    %v565 = vunpack.c.h.b16 %v125
    %v566 = vunpack.c.l.b16 %v126
    %v567 = vunpack.c.h.b16 %v126
    %v568 = vunpack.c.l.b16 %v127
    %v569 = vunpack.c.h.b16 %v127
    %v570 = vunpack.c.l.b16 %v128
    %v571 = vunpack.c.h.b16 %v128
    %v572 = vunpack.c.l.b16 %v129
    %v573 = vunpack.c.h.b16 %v129
    %v574 = vunpack.c.l.b16 %v130
    %v575 = vunpack.c.h.b16 %v130
    %v576 = vunpack.c.l.b16 %v131
    %v577 = vunpack.c.h.b16 %v131
    %v578 = vunpack.c.l.b16 %v132
    %v579 = vunpack.c.h.b16 %v132
    %v580 = vunpack.c.l.b16 %v133
    %v581 = vunpack.c.h.b16 %v133
    %v582 = vunpack.c.l.b16 %v134
    %v583 = vunpack.c.h.b16 %v134
    %v584 = vunpack.c.l.b16 %v135
    %v585 = vunpack.c.h.b16 %v135
    %v586 = vunpack.c.l.b16 %v136
    %v587 = vunpack.c.h.b16 %v136
    %v588 = vunpack.c.l.b16 %v137
    %v589 = vunpack.c.h.b16 %v137
    %v590 = vunpack.c.l.b16 %v138
    %v591 = vunpack.c.h.b16 %v138
    %v592 = vunpack.c.l.b16 %v139
    %v593 = vunpack.c.h.b16 %v139
    %v594 = vunpack.c.l.b16 %v140
    %v595 = vunpack.c.h.b16 %v140
    %v596 = vunpack.c.l.b16 %v141
    %v597 = vunpack.c.h.b16 %v141
    %v598 = vunpack.c.l.b16 %v142
    %v599 = vunpack.c.h.b16 %v142
    %v600 = vunpack.c.l.b16 %v143
    %v601 = vunpack.c.h.b16 %v143
    %v602 = vunpack.c.l.b16 %v144
    %v603 = vunpack.c.h.b16 %v144
    %v604 = vunpack.c.l.b16 %v145
    %v605 = vunpack.c.h.b16 %v145
    %v606 = vunpack.c.l.b16 %v146
    %v607 = vunpack.c.h.b16 %v146
    %v608 = vunpack.c.l.b16 %v147
    %v609 = vunpack.c.h.b16 %v147
    %v610 = vunpack.c.l.b16 %v148
    %v611 = vunpack.c.h.b16 %v148
    %v612 = vunpack.c.l.b16 %v149
    %v613 = vunpack.c.h.b16 %v149
    %v614 = vunpack.c.l.b16 %v150
    %v615 = vunpack.c.h.b16 %v150
    %v616 = vunpack.c.l.b16 %v151
    %v617 = vunpack.c.h.b16 %v151
    %v618 = vunpack.c.l.b16 %v152
    %v619 = vunpack.c.h.b16 %v152
    %v620 = vunpack.c.l.b16 %v153
    %v621 = vunpack.c.h.b16 %v153
    %v622 = vunpack.c.l.b16 %v154
    %v623 = vunpack.c.h.b16 %v154
    %v624 = vunpack.c.l.b16 %v155
    %v625 = vunpack.c.h.b16 %v155
    %v626 = vunpack.c.l.b16 %v156
    %v627 = vunpack.c.h.b16 %v156
    %v628 = vunpack.c.l.b16 %v157
    %v629 = vunpack.c.h.b16 %v157
    %v630 = vunpack.c.l.b16 %v158
    %v631 = vunpack.c.h.b16 %v158
    %v632 = vunpack.c.l.b16 %v159
    %v633 = vunpack.c.h.b16 %v159
    %v634 = vunpack.c.l.b16 %v160
    %v635 = vunpack.c.h.b16 %v160
    %v636 = vunpack.c.l.b16 %v161
    %v637 = vunpack.c.h.b16 %v161
    %v638 = vunpack.c.l.b16 %v162
    %v639 = vunpack.c.h.b16 %v162
    %v640 = vunpack.c.l.b16 %v163
    %v641 = vunpack.c.h.b16 %v163
    %v642 = vunpack.c.l.b16 %v164
    %v643 = vunpack.c.h.b16 %v164
    %v644 = vunpack.c.l.b16 %v165
    %v645 = vunpack.c.h.b16 %v165
    %v646 = vunpack.c.l.b16 %v166
    %v647 = vunpack.c.h.b16 %v166
    %v648 = vunpack.c.l.b16 %v167
    %v649 = vunpack.c.h.b16 %v167
    %v650 = vunpack.c.l.b16 %v168
    %v651 = vunpack.c.h.b16 %v168
    %v652 = vunpack.c.l.b16 %v169
    %v653 = vunpack.c.h.b16 %v169
    %v654 = vunpack.c.l.b16 %v170
    %v655 = vunpack.c.h.b16 %v170
    %v656 = vunpack.c.l.b16 %v171
    %v657 = vunpack.c.h.b16 %v171
    %v658 = vunpack.c.l.b16 %v172
    %v659 = vunpack.c.h.b16 %v172
    %v660 = vunpack.c.l.b16 %v173
    %v661 = vunpack.c.h.b16 %v173
    %v662 = vunpack.c.l.b16 %v174
    %v663 = vunpack.c.h.b16 %v174
    %v664 = vunpack.c.l.b16 %v175
    %v665 = vunpack.c.h.b16 %v175
    %v666 = vunpack.c.l.b16 %v176
    %v667 = vunpack.c.h.b16 %v176
    %v668 = vunpack.c.l.b16 %v177
    %v669 = vunpack.c.h.b16 %v177
    %v670 = vunpack.c.l.b16 %v178
    %v671 = vunpack.c.h.b16 %v178
    %v672 = vunpack.c.l.b16 %v179
    %v673 = vunpack.c.h.b16 %v179
    %v674 = vunpack.c.l.b16 %v180
    %v675 = vunpack.c.h.b16 %v180
    %v676 = vunpack.c.l.b16 %v181
    %v677 = vunpack.c.h.b16 %v181
    %v678 = vunpack.c.l.b16 %v182
    %v679 = vunpack.c.h.b16 %v182
    %v680 = vunpack.c.l.b16 %v183
    %v681 = vunpack.c.h.b16 %v183
    %v682 = vunpack.c.l.b16 %v184
    %v683 = vunpack.c.h.b16 %v184
    %v684 = vunpack.c.l.b16 %v185
    %v685 = vunpack.c.h.b16 %v185
    %v686 = vunpack.c.l.b16 %v186
    %v687 = vunpack.c.h.b16 %v186
    %v688 = vunpack.c.l.b16 %v187
    %v689 = vunpack.c.h.b16 %v187
    %v690 = vunpack.c.l.b16 %v188
    %v691 = vunpack.c.h.b16 %v188
    %v692 = vunpack.c.l.b16 %v189
    %v693 = vunpack.c.h.b16 %v189
    %v694 = vunpack.c.l.b16 %v190
    %v695 = vunpack.c.h.b16 %v190
    %v696 = vunpack.c.l.b16 %v191
    %v697 = vunpack.c.h.b16 %v191
    %v698 = vunpack.c.l.b16 %v192
    %v699 = vunpack.c.h.b16 %v192
    %v700 = vunpack.c.l.b16 %v193
    %v701 = vunpack.c.h.b16 %v193
    %v702 = vunpack.c.l.b16 %v194
    %v703 = vunpack.c.h.b16 %v194
    %v704 = vunpack.c.l.b16 %v195
    %v705 = vunpack.c.h.b16 %v195
    %v706 = vunpack.c.l.b16 %v196
    %v707 = vunpack.c.h.b16 %v196
    %v708 = vunpack.c.l.b16 %v197
    %v709 = vunpack.c.h.b16 %v197
    %v710 = vunpack.c.l.b16 %v198
    %v711 = vunpack.c.h.b16 %v198
    %v712 = vunpack.c.l.b16 %v199
    %v713 = vunpack.c.h.b16 %v199
    %v714 = vunpack.c.l.b16 %v200
    %v715 = vunpack.c.h.b16 %v200
    %v716 = vunpack.c.l.b16 %v201
    %v717 = vunpack.c.h.b16 %v201
    %v718 = vunpack.c.l.b16 %v202
    %v719 = vunpack.c.h.b16 %v202
    %v720 = vunpack.c.l.b16 %v203
    %v721 = vunpack.c.h.b16 %v203
    %v722 = vunpack.c.l.b16 %v204
    %v723 = vunpack.c.h.b16 %v204
    %v724 = vunpack.c.l.b16 %v205
    %v725 = vunpack.c.h.b16 %v205
    %v726 = vunpack.c.l.b16 %v206
    %v727 = vunpack.c.h.b16 %v206
    %v728 = vunpack.c.l.b16 %v207
    %v729 = vunpack.c.h.b16 %v207
    %v730 = vunpack.c.l.b16 %v208
    %v731 = vunpack.c.h.b16 %v208
    %v732 = vunpack.c.l.b16 %v209
    %v733 = vunpack.c.h.b16 %v209
    %v734 = vunpack.c.l.b16 %v210
    %v735 = vunpack.c.h.b16 %v210
    %v736 = vunpack.c.l.b16 %v211
    %v737 = vunpack.c.h.b16 %v211
    %v738 = vunpack.c.l.b16 %v212
    %v739 = vunpack.c.h.b16 %v212
    %v740 = vunpack.c.l.b16 %v213
    %v741 = vunpack.c.h.b16 %v213
    %v742 = vunpack.c.l.b16 %v214
    %v743 = vunpack.c.h.b16 %v214
    %v744 = vunpack.c.l.b16 %v215
    %v745 = vunpack.c.h.b16 %v215
    %v746 = vunpack.c.l.b16 %v216
    %v747 = vunpack.c.h.b16 %v216
    %v748 = vunpack.c.l.b16 %v217
    %v749 = vunpack.c.h.b16 %v217
    %v750 = vunpack.c.l.b16 %v218
    %v751 = vunpack.c.h.b16 %v218
    %v752 = vunpack.c.l.b16 %v219
    %v753 = vunpack.c.h.b16 %v219
    %v754 = vunpack.c.l.b16 %v220
    %v755 = vunpack.c.h.b16 %v220
    %v756 = vunpack.c.l.b16 %v221
    %v757 = vunpack.c.h.b16 %v221
    %v758 = vunpack.c.l.b16 %v222
    %v759 = vunpack.c.h.b16 %v222
    %v760 = vunpack.c.l.b16 %v223
    %v761 = vunpack.c.h.b16 %v223
    %v762 = vunpack.c.l.b16 %v224
    %v763 = vunpack.c.h.b16 %v224
    %v764 = vunpack.c.l.b16 %v225
    %v765 = vunpack.c.h.b16 %v225
    %v766 = vunpack.c.l.b16 %v226
    %v767 = vunpack.c.h.b16 %v226
    %v768 = vunpack.c.l.b16 %v227
    %v769 = vunpack.c.h.b16 %v227
    %v770 = vunpack.c.l.b16 %v228
    %v771 = vunpack.c.h.b16 %v228
    %v772 = vunpack.c.l.b16 %v229
    %v773 = vunpack.c.h.b16 %v229
    %v774 = vunpack.c.l.b16 %v230
    %v775 = vunpack.c.h.b16 %v230
    %v776 = vunpack.c.l.b16 %v231
    %v777 = vunpack.c.h.b16 %v231
    %v778 = vunpack.c.l.b16 %v232
    %v779 = vunpack.c.h.b16 %v232
    %v780 = vunpack.c.l.b16 %v233
    %v781 = vunpack.c.h.b16 %v233
    %v782 = vunpack.c.l.b16 %v234
    %v783 = vunpack.c.h.b16 %v234
    %v784 = vunpack.c.l.b16 %v235
    %v785 = vunpack.c.h.b16 %v235
    %v786 = vunpack.c.l.b16 %v236
    %v787 = vunpack.c.h.b16 %v236
    %v788 = vunpack.c.l.b16 %v237
    %v789 = vunpack.c.h.b16 %v237
    %v790 = vunpack.c.l.b16 %v238
    %v791 = vunpack.c.h.b16 %v238
    %v792 = vunpack.c.l.b16 %v239
    %v793 = vunpack.c.h.b16 %v239
    %v794 = vunpack.c.l.b16 %v240
    %v795 = vunpack.c.h.b16 %v240
    %v796 = vunpack.c.l.b16 %v241
    %v797 = vunpack.c.h.b16 %v241
    %v798 = vunpack.c.l.b16 %v242
    %v799 = vunpack.c.h.b16 %v242
    %v800 = vunpack.c.l.b16 %v243
    %v801 = vunpack.c.h.b16 %v243
    %v802 = vunpack.c.l.b16 %v244
    %v803 = vunpack.c.h.b16 %v244
    %v804 = vunpack.c.l.b16 %v245
    %v805 = vunpack.c.h.b16 %v245
    %v806 = vunpack.c.l.b16 %v246
    %v807 = vunpack.c.h.b16 %v246
    %v808 = vunpack.c.l.b16 %v247
    %v809 = vunpack.c.h.b16 %v247
    %v810 = vunpack.c.l.b16 %v248
    %v811 = vunpack.c.h.b16 %v248
    %v812 = vunpack.c.l.b16 %v249
    %v813 = vunpack.c.h.b16 %v249
    %v814 = vunpack.c.l.b16 %v250
    %v815 = vunpack.c.h.b16 %v250
    %v816 = vunpack.c.l.b16 %v251
    %v817 = vunpack.c.h.b16 %v251
    %v818 = vunpack.c.l.b16 %v252
    %v819 = vunpack.c.h.b16 %v252
    %v820 = vunpack.c.l.b16 %v253
    %v821 = vunpack.c.h.b16 %v253
    %v822 = vunpack.c.l.b16 %v254
    %v823 = vunpack.c.h.b16 %v254
    %v824 = vunpack.c.l.b16 %v255
    %v825 = vunpack.c.h.b16 %v255
    %v826 = vunpack.c.l.b16 %v256
    %v827 = vunpack.c.h.b16 %v256
    %v828 = vunpack.c.l.b16 %v257
    %v829 = vunpack.c.h.b16 %v257
    %v830 = vunpack.c.l.b16 %v258
    %v831 = vunpack.c.h.b16 %v258
    %v832 = vunpack.c.l.b16 %v259
    %v833 = vunpack.c.h.b16 %v259
    %v834 = vunpack.c.l.b16 %v260
    %v835 = vunpack.c.h.b16 %v260
    %v836 = vunpack.c.l.b16 %v261
    %v837 = vunpack.c.h.b16 %v261
    %v838 = vunpack.c.l.b16 %v262
    %v839 = vunpack.c.h.b16 %v262
    %v840 = vunpack.c.l.b16 %v263
    %v841 = vunpack.c.h.b16 %v263
    %v842 = vunpack.c.l.b16 %v264
    %v843 = vunpack.c.h.b16 %v264
    %v844 = vunpack.c.l.b16 %v265
    %v845 = vunpack.c.h.b16 %v265
    %v846 = vunpack.c.l.b16 %v266
    %v847 = vunpack.c.h.b16 %v266
    %v848 = vunpack.c.l.b16 %v267
    %v849 = vunpack.c.h.b16 %v267
    %v850 = vunpack.c.l.b16 %v268
    %v851 = vunpack.c.h.b16 %v268
    %v852 = vunpack.c.l.b16 %v269
    %v853 = vunpack.c.h.b16 %v269
    %v854 = vunpack.c.l.b16 %v270
    %v855 = vunpack.c.h.b16 %v270
    %v856 = vunpack.c.l.b16 %v271
    %v857 = vunpack.c.h.b16 %v271
    %v858 = vunpack.c.l.b16 %v272
    %v859 = vunpack.c.h.b16 %v272
    %v860 = vunpack.c.l.b16 %v273
    %v861 = vunpack.c.h.b16 %v273
    %v862 = vunpack.c.l.b16 %v274
    %v863 = vunpack.c.h.b16 %v274
    %v864 = vunpack.c.l.b16 %v275
    %v865 = vunpack.c.h.b16 %v275
    %v866 = vunpack.c.l.b16 %v276
    %v867 = vunpack.c.h.b16 %v276
    %v868 = vunpack.c.l.b16 %v277
    %v869 = vunpack.c.h.b16 %v277
    %v870 = vunpack.c.l.b16 %v278
    %v871 = vunpack.c.h.b16 %v278
    %v872 = vunpack.c.l.b16 %v279
    %v873 = vunpack.c.h.b16 %v279
    %v874 = vunpack.c.l.b16 %v280
    %v875 = vunpack.c.h.b16 %v280
    %v876 = vunpack.c.l.b16 %v281
    %v877 = vunpack.c.h.b16 %v281
    %v878 = vpack.c.b16 %v506, %v494
    %v879 = vpack.c.b16 %v507, %v495
    %v880 = vpack.c.b16 %v508, %v496
    %v881 = vpack.c.b16 %v509, %v497
    %v882 = vpack.c.b16 %v510, %v498
    %v883 = vpack.c.b16 %v511, %v499
    %v884 = vpack.c.b16 %v512, %v500
    %v885 = vpack.c.b16 %v513, %v501
    %v886 = vpack.c.b16 %v514, %v502
    %v887 = vpack.c.b16 %v515, %v503
    %v888 = vpack.c.b16 %v516, %v504
    %v889 = vpack.c.b16 %v517, %v505
    %v890 = vpack.c.b16 %v530, %v518
    %v891 = vpack.c.b16 %v531, %v519
    %v892 = vpack.c.b16 %v532, %v520
    %v893 = vpack.c.b16 %v533, %v521
    %v894 = vpack.c.b16 %v534, %v522
    %v895 = vpack.c.b16 %v535, %v523
    %v896 = vpack.c.b16 %v536, %v524
    %v897 = vpack.c.b16 %v537, %v525
    %v898 = vpack.c.b16 %v538, %v526
    %v899 = vpack.c.b16 %v539, %v527
    %v900 = vpack.c.b16 %v540, %v528
    %v901 = vpack.c.b16 %v541, %v529
    %v902 = vpack.c.b16 %v554, %v542
    %v903 = vpack.c.b16 %v555, %v543
    %v904 = vpack.c.b16 %v556, %v544
    %v905 = vpack.c.b16 %v557, %v545
    %v906 = vpack.c.b16 %v558, %v546
    %v907 = vpack.c.b16 %v559, %v547
    %v908 = vpack.c.b16 %v560, %v548
    %v909 = vpack.c.b16 %v561, %v549
    %v910 = vpack.c.b16 %v562, %v550
    %v911 = vpack.c.b16 %v563, %v551
    %v912 = vpack.c.b16 %v564, %v552
    %v913 = vpack.c.b16 %v565, %v553
    %v914 = vpack.c.b16 %v578, %v566
    %v915 = vpack.c.b16 %v579, %v567
    %v916 = vpack.c.b16 %v580, %v568
    %v917 = vpack.c.b16 %v581, %v569
    %v918 = vpack.c.b16 %v582, %v570
    %v919 = vpack.c.b16 %v583, %v571
    %v920 = vpack.c.b16 %v584, %v572
    %v921 = vpack.c.b16 %v585, %v573
    %v922 = vpack.c.b16 %v586, %v574
    %v923 = vpack.c.b16 %v587, %v575
    %v924 = vpack.c.b16 %v588, %v576
    %v925 = vpack.c.b16 %v589, %v577
    %v926 = vpack.c.b16 %v602, %v590
    %v927 = vpack.c.b16 %v603, %v591
    %v928 = vpack.c.b16 %v604, %v592
    %v929 = vpack.c.b16 %v605, %v593
    %v930 = vpack.c.b16 %v606, %v594
    %v931 = vpack.c.b16 %v607, %v595
    %v932 = vpack.c.b16 %v608, %v596
    %v933 = vpack.c.b16 %v609, %v597
    %v934 = vpack.c.b16 %v610, %v598
    %v935 = vpack.c.b16 %v611, %v599
    %v936 = vpack.c.b16 %v612, %v600
    %v937 = vpack.c.b16 %v613, %v601
    %v938 = vpack.c.b16 %v626, %v614
    %v939 = vpack.c.b16 %v627, %v615
    %v940 = vpack.c.b16 %v628, %v616
    %v941 = vpack.c.b16 %v629, %v617
    %v942 = vpack.c.b16 %v630, %v618
    %v943 = vpack.c.b16 %v631, %v619
    %v944 = vpack.c.b16 %v632, %v620
    %v945 = vpack.c.b16 %v633, %v621
    %v946 = vpack.c.b16 %v634, %v622
    %v947 = vpack.c.b16 %v635, %v623
    %v948 = vpack.c.b16 %v636, %v624
    %v949 = vpack.c.b16 %v637, %v625
    %v950 = vpack.c.b16 %v650, %v638
    %v951 = vpack.c.b16 %v651, %v639
    %v952 = vpack.c.b16 %v652, %v640
    %v953 = vpack.c.b16 %v653, %v641
    %v954 = vpack.c.b16 %v654, %v642
    %v955 = vpack.c.b16 %v655, %v643
    %v956 = vpack.c.b16 %v656, %v644
    %v957 = vpack.c.b16 %v657, %v645
    %v958 = vpack.c.b16 %v658, %v646
    %v959 = vpack.c.b16 %v659, %v647
    %v960 = vpack.c.b16 %v660, %v648
    %v961 = vpack.c.b16 %v661, %v649
    %v962 = vpack.c.b16 %v674, %v662
    %v963 = vpack.c.b16 %v675, %v663
    %v964 = vpack.c.b16 %v676, %v664
    %v965 = vpack.c.b16 %v677, %v665
    %v966 = vpack.c.b16 %v678, %v666
    %v967 = vpack.c.b16 %v679, %v667
    %v968 = vpack.c.b16 %v680, %v668
    %v969 = vpack.c.b16 %v681, %v669
    %v970 = vpack.c.b16 %v682, %v670
    %v971 = vpack.c.b16 %v683, %v671
    %v972 = vpack.c.b16 %v684, %v672
    %v973 = vpack.c.b16 %v685, %v673
    %v974 = vpack.c.b16 %v698, %v686
    %v975 = vpack.c.b16 %v699, %v687
    %v976 = vpack.c.b16 %v700, %v688
    %v977 = vpack.c.b16 %v701, %v689
    %v978 = vpack.c.b16 %v702, %v690
    %v979 = vpack.c.b16 %v703, %v691
    %v980 = vpack.c.b16 %v704, %v692
    %v981 = vpack.c.b16 %v705, %v693
    %v982 = vpack.c.b16 %v706, %v694
    %v983 = vpack.c.b16 %v707, %v695
    %v984 = vpack.c.b16 %v708, %v696
    %v985 = vpack.c.b16 %v709, %v697
    %v986 = vpack.c.b16 %v722, %v710
    %v987 = vpack.c.b16 %v723, %v711
    %v988 = vpack.c.b16 %v724, %v712
    %v989 = vpack.c.b16 %v725, %v713
    %v990 = vpack.c.b16 %v726, %v714
    %v991 = vpack.c.b16 %v727, %v715
    %v992 = vpack.c.b16 %v728, %v716
    %v993 = vpack.c.b16 %v729, %v717
    %v994 = vpack.c.b16 %v730, %v718
    %v995 = vpack.c.b16 %v731, %v719
    %v996 = vpack.c.b16 %v732, %v720
    %v997 = vpack.c.b16 %v733, %v721
    %v998 = vpack.c.b16 %v746, %v734
    %v999 = vpack.c.b16 %v747, %v735
    %v1000 = vpack.c.b16 %v748, %v736
    %v1001 = vpack.c.b16 %v749, %v737
    %v1002 = vpack.c.b16 %v750, %v738
    %v1003 = vpack.c.b16 %v751, %v739
    %v1004 = vpack.c.b16 %v752, %v740
    %v1005 = vpack.c.b16 %v753, %v741
    %v1006 = vpack.c.b16 %v754, %v742
    %v1007 = vpack.c.b16 %v755, %v743
    %v1008 = vpack.c.b16 %v756, %v744
    %v1009 = vpack.c.b16 %v757, %v745
    %v1010 = vpack.c.b16 %v770, %v758
    %v1011 = vpack.c.b16 %v771, %v759
    %v1012 = vpack.c.b16 %v772, %v760
    %v1013 = vpack.c.b16 %v773, %v761
    %v1014 = vpack.c.b16 %v774, %v762
    %v1015 = vpack.c.b16 %v775, %v763
    %v1016 = vpack.c.b16 %v776, %v764
    %v1017 = vpack.c.b16 %v777, %v765
    %v1018 = vpack.c.b16 %v778, %v766
    %v1019 = vpack.c.b16 %v779, %v767
    %v1020 = vpack.c.b16 %v780, %v768
    %v1021 = vpack.c.b16 %v781, %v769
    %v1022 = vpack.c.b16 %v794, %v782
    %v1023 = vpack.c.b16 %v795, %v783
    %v1024 = vpack.c.b16 %v796, %v784
    %v1025 = vpack.c.b16 %v797, %v785
    %v1026 = vpack.c.b16 %v798, %v786
    %v1027 = vpack.c.b16 %v799, %v787
    %v1028 = vpack.c.b16 %v800, %v788
    %v1029 = vpack.c.b16 %v801, %v789
    %v1030 = vpack.c.b16 %v802, %v790
    %v1031 = vpack.c.b16 %v803, %v791
    %v1032 = vpack.c.b16 %v804, %v792
    %v1033 = vpack.c.b16 %v805, %v793
    %v1034 = vpack.c.b16 %v818, %v806
    %v1035 = vpack.c.b16 %v819, %v807
    %v1036 = vpack.c.b16 %v820, %v808
    %v1037 = vpack.c.b16 %v821, %v809
    %v1038 = vpack.c.b16 %v822, %v810
    %v1039 = vpack.c.b16 %v823, %v811
    %v1040 = vpack.c.b16 %v824, %v812
    %v1041 = vpack.c.b16 %v825, %v813
    %v1042 = vpack.c.b16 %v826, %v814
    %v1043 = vpack.c.b16 %v827, %v815
    %v1044 = vpack.c.b16 %v828, %v816
    %v1045 = vpack.c.b16 %v829, %v817
    %v1046 = vpack.c.b16 %v842, %v830
    %v1047 = vpack.c.b16 %v843, %v831
    %v1048 = vpack.c.b16 %v844, %v832
    %v1049 = vpack.c.b16 %v845, %v833
    %v1050 = vpack.c.b16 %v846, %v834
    %v1051 = vpack.c.b16 %v847, %v835
    %v1052 = vpack.c.b16 %v848, %v836
    %v1053 = vpack.c.b16 %v849, %v837
    %v1054 = vpack.c.b16 %v850, %v838
    %v1055 = vpack.c.b16 %v851, %v839
    %v1056 = vpack.c.b16 %v852, %v840
    %v1057 = vpack.c.b16 %v853, %v841
    %v1058 = vpack.c.b16 %v866, %v854
    %v1059 = vpack.c.b16 %v867, %v855
    %v1060 = vpack.c.b16 %v868, %v856
    %v1061 = vpack.c.b16 %v869, %v857
    %v1062 = vpack.c.b16 %v870, %v858
    %v1063 = vpack.c.b16 %v871, %v859
    %v1064 = vpack.c.b16 %v872, %v860
    %v1065 = vpack.c.b16 %v873, %v861
    %v1066 = vpack.c.b16 %v874, %v862
    %v1067 = vpack.c.b16 %v875, %v863
    %v1068 = vpack.c.b16 %v876, %v864
    %v1069 = vpack.c.b16 %v877, %v865
    %1262 = vmatpush.bf16.msra.mxu0 %v962
    %1263 = vmatpush.bf16.msra.mxu0 %v950
    %1264 = vmatpush.bf16.msra.mxu0 %v938
    %1265 = vmatpush.bf16.msra.mxu0 %v926
    %1266 = vmatpush.bf16.msra.mxu0 %v914
    %1267 = vmatpush.bf16.msra.mxu0 %v902
    %1268 = vmatpush.bf16.msra.mxu0 %v890
    %1269 = vmatpush.bf16.msra.mxu0 %v878
    %1270 = vmatmul.bf16.gmra.mxu0 %v294
    %v1271 = vpop.f32.mrf.mxu0
    %v1272 = vadd.f32 0.0, %v1271
    %v1273 = vpop.f32.mrf.mxu0
    %v1274 = vadd.f32 0.0, %v1273
    %1275 = vmatmul.bf16.gmra.mxu0 %v296
    %v1276 = vpop.f32.mrf.mxu0
    %v1277 = vadd.f32 0.0, %v1276
    %v1278 = vpop.f32.mrf.mxu0
    %v1279 = vadd.f32 0.0, %v1278
    %1280 = vdwg.mxu0
    %1281 = vmatpush.bf16.msra.mxu0 %v1058
    %1282 = vmatpush.bf16.msra.mxu0 %v1046
    %1283 = vmatpush.bf16.msra.mxu0 %v1034
    %1284 = vmatpush.bf16.msra.mxu0 %v1022
    %1285 = vmatpush.bf16.msra.mxu0 %v1010
    %1286 = vmatpush.bf16.msra.mxu0 %v998
    %1287 = vmatpush.bf16.msra.mxu0 %v986
    %1288 = vmatpush.bf16.msra.mxu0 %v974
    %1289 = vmatmul.bf16.gmra.mxu0 %v295
    %v1290 = vpop.f32.mrf.mxu0
    %v1291 = vadd.f32 %v1272, %v1290
    %v1292 = vpop.f32.mrf.mxu0
    %v1293 = vadd.f32 %v1274, %v1292
    %1294 = vmatmul.bf16.gmra.mxu0 %v297
    %v1295 = vpop.f32.mrf.mxu0
    %v1296 = vadd.f32 %v1277, %v1295
    %v1297 = vpop.f32.mrf.mxu0
    %v1298 = vadd.f32 %v1279, %v1297
    %1299 = vdwg.mxu0
    %1300 = vmatpush.bf16.msra.mxu0 %v963
    %1301 = vmatpush.bf16.msra.mxu0 %v951
    %1302 = vmatpush.bf16.msra.mxu0 %v939
    %1303 = vmatpush.bf16.msra.mxu0 %v927
    %1304 = vmatpush.bf16.msra.mxu0 %v915
    %1305 = vmatpush.bf16.msra.mxu0 %v903
    %1306 = vmatpush.bf16.msra.mxu0 %v891
    %1307 = vmatpush.bf16.msra.mxu0 %v879
    %1308 = vmatmul.bf16.gmra.mxu0 %v294
    %v1309 = vpop.f32.mrf.mxu0
    %v1310 = vadd.f32 0.0, %v1309
    %v1311 = vpop.f32.mrf.mxu0
    %v1312 = vadd.f32 0.0, %v1311
    %1313 = vmatmul.bf16.gmra.mxu0 %v296
    %v1314 = vpop.f32.mrf.mxu0
    %v1315 = vadd.f32 0.0, %v1314
    %v1316 = vpop.f32.mrf.mxu0
    %v1317 = vadd.f32 0.0, %v1316
    %1318 = vdwg.mxu0
    %1319 = vmatpush.bf16.msra.mxu0 %v1059
    %1320 = vmatpush.bf16.msra.mxu0 %v1047
    %1321 = vmatpush.bf16.msra.mxu0 %v1035
    %1322 = vmatpush.bf16.msra.mxu0 %v1023
    %1323 = vmatpush.bf16.msra.mxu0 %v1011
    %1324 = vmatpush.bf16.msra.mxu0 %v999
    %1325 = vmatpush.bf16.msra.mxu0 %v987
    %1326 = vmatpush.bf16.msra.mxu0 %v975
    %1327 = vmatmul.bf16.gmra.mxu0 %v295
    %v1328 = vpop.f32.mrf.mxu0
    %v1329 = vadd.f32 %v1310, %v1328
    %v1330 = vpop.f32.mrf.mxu0
    %v1331 = vadd.f32 %v1312, %v1330
    %1332 = vmatmul.bf16.gmra.mxu0 %v297
    %v1333 = vpop.f32.mrf.mxu0
    %v1334 = vadd.f32 %v1315, %v1333
    %v1335 = vpop.f32.mrf.mxu0
    %v1336 = vadd.f32 %v1317, %v1335
    %1337 = vdwg.mxu0
    %1338 = vmatpush.bf16.msra.mxu0 %v964
    %1339 = vmatpush.bf16.msra.mxu0 %v952
    %1340 = vmatpush.bf16.msra.mxu0 %v940
    %1341 = vmatpush.bf16.msra.mxu0 %v928
    %1342 = vmatpush.bf16.msra.mxu0 %v916
    %1343 = vmatpush.bf16.msra.mxu0 %v904
    %1344 = vmatpush.bf16.msra.mxu0 %v892
    %1345 = vmatpush.bf16.msra.mxu0 %v880
    %1346 = vmatmul.bf16.gmra.mxu0 %v294
    %v1347 = vpop.f32.mrf.mxu0
    %v1348 = vadd.f32 0.0, %v1347
    %v1349 = vpop.f32.mrf.mxu0
    %v1350 = vadd.f32 0.0, %v1349
    %1351 = vmatmul.bf16.gmra.mxu0 %v296
    %v1352 = vpop.f32.mrf.mxu0
    %v1353 = vadd.f32 0.0, %v1352
    %v1354 = vpop.f32.mrf.mxu0
    %v1355 = vadd.f32 0.0, %v1354
    %1356 = vdwg.mxu0
    %1357 = vmatpush.bf16.msra.mxu0 %v1060
    %1358 = vmatpush.bf16.msra.mxu0 %v1048
    %1359 = vmatpush.bf16.msra.mxu0 %v1036
    %1360 = vmatpush.bf16.msra.mxu0 %v1024
    %1361 = vmatpush.bf16.msra.mxu0 %v1012
    %1362 = vmatpush.bf16.msra.mxu0 %v1000
    %1363 = vmatpush.bf16.msra.mxu0 %v988
    %1364 = vmatpush.bf16.msra.mxu0 %v976
    %1365 = vmatmul.bf16.gmra.mxu0 %v295
    %v1366 = vpop.f32.mrf.mxu0
    %v1367 = vadd.f32 %v1348, %v1366
    %v1368 = vpop.f32.mrf.mxu0
    %v1369 = vadd.f32 %v1350, %v1368
    %1370 = vmatmul.bf16.gmra.mxu0 %v297
    %v1371 = vpop.f32.mrf.mxu0
    %v1372 = vadd.f32 %v1353, %v1371
    %v1373 = vpop.f32.mrf.mxu0
    %v1374 = vadd.f32 %v1355, %v1373
    %1375 = vdwg.mxu0
    %1376 = vmatpush.bf16.msra.mxu0 %v965
    %1377 = vmatpush.bf16.msra.mxu0 %v953
    %1378 = vmatpush.bf16.msra.mxu0 %v941
    %1379 = vmatpush.bf16.msra.mxu0 %v929
    %1380 = vmatpush.bf16.msra.mxu0 %v917
    %1381 = vmatpush.bf16.msra.mxu0 %v905
    %1382 = vmatpush.bf16.msra.mxu0 %v893
    %1383 = vmatpush.bf16.msra.mxu0 %v881
    %1384 = vmatmul.bf16.gmra.mxu0 %v294
    %v1385 = vpop.f32.mrf.mxu0
    %v1386 = vadd.f32 0.0, %v1385
    %v1387 = vpop.f32.mrf.mxu0
    %v1388 = vadd.f32 0.0, %v1387
    %1389 = vmatmul.bf16.gmra.mxu0 %v296
    %v1390 = vpop.f32.mrf.mxu0
    %v1391 = vadd.f32 0.0, %v1390
    %v1392 = vpop.f32.mrf.mxu0
    %v1393 = vadd.f32 0.0, %v1392
    %1394 = vdwg.mxu0
    %1395 = vmatpush.bf16.msra.mxu0 %v1061
    %1396 = vmatpush.bf16.msra.mxu0 %v1049
    %1397 = vmatpush.bf16.msra.mxu0 %v1037
    %1398 = vmatpush.bf16.msra.mxu0 %v1025
    %1399 = vmatpush.bf16.msra.mxu0 %v1013
    %1400 = vmatpush.bf16.msra.mxu0 %v1001
    %1401 = vmatpush.bf16.msra.mxu0 %v989
    %1402 = vmatpush.bf16.msra.mxu0 %v977
    %1403 = vmatmul.bf16.gmra.mxu0 %v295
    %v1404 = vpop.f32.mrf.mxu0
    %v1405 = vadd.f32 %v1386, %v1404
    %v1406 = vpop.f32.mrf.mxu0
    %v1407 = vadd.f32 %v1388, %v1406
    %1408 = vmatmul.bf16.gmra.mxu0 %v297
    %v1409 = vpop.f32.mrf.mxu0
    %v1410 = vadd.f32 %v1391, %v1409
    %v1411 = vpop.f32.mrf.mxu0
    %v1412 = vadd.f32 %v1393, %v1411
    %1413 = vdwg.mxu0
    %1414 = vmatpush.bf16.msra.mxu0 %v966
    %1415 = vmatpush.bf16.msra.mxu0 %v954
    %1416 = vmatpush.bf16.msra.mxu0 %v942
    %1417 = vmatpush.bf16.msra.mxu0 %v930
    %1418 = vmatpush.bf16.msra.mxu0 %v918
    %1419 = vmatpush.bf16.msra.mxu0 %v906
    %1420 = vmatpush.bf16.msra.mxu0 %v894
    %1421 = vmatpush.bf16.msra.mxu0 %v882
    %1422 = vmatmul.bf16.gmra.mxu0 %v294
    %v1423 = vpop.f32.mrf.mxu0
    %v1424 = vadd.f32 0.0, %v1423
    %v1425 = vpop.f32.mrf.mxu0
    %v1426 = vadd.f32 0.0, %v1425
    %1427 = vmatmul.bf16.gmra.mxu0 %v296
    %v1428 = vpop.f32.mrf.mxu0
    %v1429 = vadd.f32 0.0, %v1428
    %v1430 = vpop.f32.mrf.mxu0
    %v1431 = vadd.f32 0.0, %v1430
    %1432 = vdwg.mxu0
    %1433 = vmatpush.bf16.msra.mxu0 %v1062
    %1434 = vmatpush.bf16.msra.mxu0 %v1050
    %1435 = vmatpush.bf16.msra.mxu0 %v1038
    %1436 = vmatpush.bf16.msra.mxu0 %v1026
    %1437 = vmatpush.bf16.msra.mxu0 %v1014
    %1438 = vmatpush.bf16.msra.mxu0 %v1002
    %1439 = vmatpush.bf16.msra.mxu0 %v990
    %1440 = vmatpush.bf16.msra.mxu0 %v978
    %1441 = vmatmul.bf16.gmra.mxu0 %v295
    %v1442 = vpop.f32.mrf.mxu0
    %v1443 = vadd.f32 %v1424, %v1442
    %v1444 = vpop.f32.mrf.mxu0
    %v1445 = vadd.f32 %v1426, %v1444
    %1446 = vmatmul.bf16.gmra.mxu0 %v297
    %v1447 = vpop.f32.mrf.mxu0
    %v1448 = vadd.f32 %v1429, %v1447
    %v1449 = vpop.f32.mrf.mxu0
    %v1450 = vadd.f32 %v1431, %v1449
    %1451 = vdwg.mxu0
    %1452 = vmatpush.bf16.msra.mxu0 %v967
    %1453 = vmatpush.bf16.msra.mxu0 %v955
    %1454 = vmatpush.bf16.msra.mxu0 %v943
    %1455 = vmatpush.bf16.msra.mxu0 %v931
    %1456 = vmatpush.bf16.msra.mxu0 %v919
    %1457 = vmatpush.bf16.msra.mxu0 %v907
    %1458 = vmatpush.bf16.msra.mxu0 %v895
    %1459 = vmatpush.bf16.msra.mxu0 %v883
    %1460 = vmatmul.bf16.gmra.mxu0 %v294
    %v1461 = vpop.f32.mrf.mxu0
    %v1462 = vadd.f32 0.0, %v1461
    %v1463 = vpop.f32.mrf.mxu0
    %v1464 = vadd.f32 0.0, %v1463
    %1465 = vmatmul.bf16.gmra.mxu0 %v296
    %v1466 = vpop.f32.mrf.mxu0
    %v1467 = vadd.f32 0.0, %v1466
    %v1468 = vpop.f32.mrf.mxu0
    %v1469 = vadd.f32 0.0, %v1468
    %1470 = vdwg.mxu0
    %1471 = vmatpush.bf16.msra.mxu0 %v1063
    %1472 = vmatpush.bf16.msra.mxu0 %v1051
    %1473 = vmatpush.bf16.msra.mxu0 %v1039
    %1474 = vmatpush.bf16.msra.mxu0 %v1027
    %1475 = vmatpush.bf16.msra.mxu0 %v1015
    %1476 = vmatpush.bf16.msra.mxu0 %v1003
    %1477 = vmatpush.bf16.msra.mxu0 %v991
    %1478 = vmatpush.bf16.msra.mxu0 %v979
    %1479 = vmatmul.bf16.gmra.mxu0 %v295
    %v1480 = vpop.f32.mrf.mxu0
    %v1481 = vadd.f32 %v1462, %v1480
    %v1482 = vpop.f32.mrf.mxu0
    %v1483 = vadd.f32 %v1464, %v1482
    %1484 = vmatmul.bf16.gmra.mxu0 %v297
    %v1485 = vpop.f32.mrf.mxu0
    %v1486 = vadd.f32 %v1467, %v1485
    %v1487 = vpop.f32.mrf.mxu0
    %v1488 = vadd.f32 %v1469, %v1487
    %1489 = vdwg.mxu0
    %1490 = vmatpush.bf16.msra.mxu0 %v968
    %1491 = vmatpush.bf16.msra.mxu0 %v956
    %1492 = vmatpush.bf16.msra.mxu0 %v944
    %1493 = vmatpush.bf16.msra.mxu0 %v932
    %1494 = vmatpush.bf16.msra.mxu0 %v920
    %1495 = vmatpush.bf16.msra.mxu0 %v908
    %1496 = vmatpush.bf16.msra.mxu0 %v896
    %1497 = vmatpush.bf16.msra.mxu0 %v884
    %1498 = vmatmul.bf16.gmra.mxu0 %v294
    %v1499 = vpop.f32.mrf.mxu0
    %v1500 = vadd.f32 0.0, %v1499
    %v1501 = vpop.f32.mrf.mxu0
    %v1502 = vadd.f32 0.0, %v1501
    %1503 = vmatmul.bf16.gmra.mxu0 %v296
    %v1504 = vpop.f32.mrf.mxu0
    %v1505 = vadd.f32 0.0, %v1504
    %v1506 = vpop.f32.mrf.mxu0
    %v1507 = vadd.f32 0.0, %v1506
    %1508 = vdwg.mxu0
    %1509 = vmatpush.bf16.msra.mxu0 %v1064
    %1510 = vmatpush.bf16.msra.mxu0 %v1052
    %1511 = vmatpush.bf16.msra.mxu0 %v1040
    %1512 = vmatpush.bf16.msra.mxu0 %v1028
    %1513 = vmatpush.bf16.msra.mxu0 %v1016
    %1514 = vmatpush.bf16.msra.mxu0 %v1004
    %1515 = vmatpush.bf16.msra.mxu0 %v992
    %1516 = vmatpush.bf16.msra.mxu0 %v980
    %1517 = vmatmul.bf16.gmra.mxu0 %v295
    %v1518 = vpop.f32.mrf.mxu0
    %v1519 = vadd.f32 %v1500, %v1518
    %v1520 = vpop.f32.mrf.mxu0
    %v1521 = vadd.f32 %v1502, %v1520
    %1522 = vmatmul.bf16.gmra.mxu0 %v297
    %v1523 = vpop.f32.mrf.mxu0
    %v1524 = vadd.f32 %v1505, %v1523
    %v1525 = vpop.f32.mrf.mxu0
    %v1526 = vadd.f32 %v1507, %v1525
    %1527 = vdwg.mxu0
    %1528 = vmatpush.bf16.msra.mxu0 %v969
    %1529 = vmatpush.bf16.msra.mxu0 %v957
    %1530 = vmatpush.bf16.msra.mxu0 %v945
    %1531 = vmatpush.bf16.msra.mxu0 %v933
    %1532 = vmatpush.bf16.msra.mxu0 %v921
    %1533 = vmatpush.bf16.msra.mxu0 %v909
    %1534 = vmatpush.bf16.msra.mxu0 %v897
    %1535 = vmatpush.bf16.msra.mxu0 %v885
    %1536 = vmatmul.bf16.gmra.mxu0 %v294
    %v1537 = vpop.f32.mrf.mxu0
    %v1538 = vadd.f32 0.0, %v1537
    %v1539 = vpop.f32.mrf.mxu0
    %v1540 = vadd.f32 0.0, %v1539
    %1541 = vmatmul.bf16.gmra.mxu0 %v296
    %v1542 = vpop.f32.mrf.mxu0
    %v1543 = vadd.f32 0.0, %v1542
    %v1544 = vpop.f32.mrf.mxu0
    %v1545 = vadd.f32 0.0, %v1544
    %1546 = vdwg.mxu0
    %1547 = vmatpush.bf16.msra.mxu0 %v1065
    %1548 = vmatpush.bf16.msra.mxu0 %v1053
    %1549 = vmatpush.bf16.msra.mxu0 %v1041
    %1550 = vmatpush.bf16.msra.mxu0 %v1029
    %1551 = vmatpush.bf16.msra.mxu0 %v1017
    %1552 = vmatpush.bf16.msra.mxu0 %v1005
    %1553 = vmatpush.bf16.msra.mxu0 %v993
    %1554 = vmatpush.bf16.msra.mxu0 %v981
    %1555 = vmatmul.bf16.gmra.mxu0 %v295
    %v1556 = vpop.f32.mrf.mxu0
    %v1557 = vadd.f32 %v1538, %v1556
    %v1558 = vpop.f32.mrf.mxu0
    %v1559 = vadd.f32 %v1540, %v1558
    %1560 = vmatmul.bf16.gmra.mxu0 %v297
    %v1561 = vpop.f32.mrf.mxu0
    %v1562 = vadd.f32 %v1543, %v1561
    %v1563 = vpop.f32.mrf.mxu0
    %v1564 = vadd.f32 %v1545, %v1563
    %1565 = vdwg.mxu0
    %1566 = vmatpush.bf16.msra.mxu0 %v970
    %1567 = vmatpush.bf16.msra.mxu0 %v958
    %1568 = vmatpush.bf16.msra.mxu0 %v946
    %1569 = vmatpush.bf16.msra.mxu0 %v934
    %1570 = vmatpush.bf16.msra.mxu0 %v922
    %1571 = vmatpush.bf16.msra.mxu0 %v910
    %1572 = vmatpush.bf16.msra.mxu0 %v898
    %1573 = vmatpush.bf16.msra.mxu0 %v886
    %1574 = vmatmul.bf16.gmra.mxu0 %v294
    %v1575 = vpop.f32.mrf.mxu0
    %v1576 = vadd.f32 0.0, %v1575
    %v1577 = vpop.f32.mrf.mxu0
    %v1578 = vadd.f32 0.0, %v1577
    %1579 = vmatmul.bf16.gmra.mxu0 %v296
    %v1580 = vpop.f32.mrf.mxu0
    %v1581 = vadd.f32 0.0, %v1580
    %v1582 = vpop.f32.mrf.mxu0
    %v1583 = vadd.f32 0.0, %v1582
    %1584 = vdwg.mxu0
    %1585 = vmatpush.bf16.msra.mxu0 %v1066
    %1586 = vmatpush.bf16.msra.mxu0 %v1054
    %1587 = vmatpush.bf16.msra.mxu0 %v1042
    %1588 = vmatpush.bf16.msra.mxu0 %v1030
    %1589 = vmatpush.bf16.msra.mxu0 %v1018
    %1590 = vmatpush.bf16.msra.mxu0 %v1006
    %1591 = vmatpush.bf16.msra.mxu0 %v994
    %1592 = vmatpush.bf16.msra.mxu0 %v982
    %1593 = vmatmul.bf16.gmra.mxu0 %v295
    %v1594 = vpop.f32.mrf.mxu0
    %v1595 = vadd.f32 %v1576, %v1594
    %v1596 = vpop.f32.mrf.mxu0
    %v1597 = vadd.f32 %v1578, %v1596
    %1598 = vmatmul.bf16.gmra.mxu0 %v297
    %v1599 = vpop.f32.mrf.mxu0
    %v1600 = vadd.f32 %v1581, %v1599
    %v1601 = vpop.f32.mrf.mxu0
    %v1602 = vadd.f32 %v1583, %v1601
    %1603 = vdwg.mxu0
    %1604 = vmatpush.bf16.msra.mxu0 %v971
    %1605 = vmatpush.bf16.msra.mxu0 %v959
    %1606 = vmatpush.bf16.msra.mxu0 %v947
    %1607 = vmatpush.bf16.msra.mxu0 %v935
    %1608 = vmatpush.bf16.msra.mxu0 %v923
    %1609 = vmatpush.bf16.msra.mxu0 %v911
    %1610 = vmatpush.bf16.msra.mxu0 %v899
    %1611 = vmatpush.bf16.msra.mxu0 %v887
    %1612 = vmatmul.bf16.gmra.mxu0 %v294
    %v1613 = vpop.f32.mrf.mxu0
    %v1614 = vadd.f32 0.0, %v1613
    %v1615 = vpop.f32.mrf.mxu0
    %v1616 = vadd.f32 0.0, %v1615
    %1617 = vmatmul.bf16.gmra.mxu0 %v296
    %v1618 = vpop.f32.mrf.mxu0
    %v1619 = vadd.f32 0.0, %v1618
    %v1620 = vpop.f32.mrf.mxu0
    %v1621 = vadd.f32 0.0, %v1620
    %1622 = vdwg.mxu0
    %1623 = vmatpush.bf16.msra.mxu0 %v1067
    %1624 = vmatpush.bf16.msra.mxu0 %v1055
    %1625 = vmatpush.bf16.msra.mxu0 %v1043
    %1626 = vmatpush.bf16.msra.mxu0 %v1031
    %1627 = vmatpush.bf16.msra.mxu0 %v1019
    %1628 = vmatpush.bf16.msra.mxu0 %v1007
    %1629 = vmatpush.bf16.msra.mxu0 %v995
    %1630 = vmatpush.bf16.msra.mxu0 %v983
    %1631 = vmatmul.bf16.gmra.mxu0 %v295
    %v1632 = vpop.f32.mrf.mxu0
    %v1633 = vadd.f32 %v1614, %v1632
    %v1634 = vpop.f32.mrf.mxu0
    %v1635 = vadd.f32 %v1616, %v1634
    %1636 = vmatmul.bf16.gmra.mxu0 %v297
    %v1637 = vpop.f32.mrf.mxu0
    %v1638 = vadd.f32 %v1619, %v1637
    %v1639 = vpop.f32.mrf.mxu0
    %v1640 = vadd.f32 %v1621, %v1639
    %1641 = vdwg.mxu0
    %1642 = vmatpush.bf16.msra.mxu0 %v972
    %1643 = vmatpush.bf16.msra.mxu0 %v960
    %1644 = vmatpush.bf16.msra.mxu0 %v948
    %1645 = vmatpush.bf16.msra.mxu0 %v936
    %1646 = vmatpush.bf16.msra.mxu0 %v924
    %1647 = vmatpush.bf16.msra.mxu0 %v912
    %1648 = vmatpush.bf16.msra.mxu0 %v900
    %1649 = vmatpush.bf16.msra.mxu0 %v888
    %1650 = vmatmul.bf16.gmra.mxu0 %v294
    %v1651 = vpop.f32.mrf.mxu0
    %v1652 = vadd.f32 0.0, %v1651
    %v1653 = vpop.f32.mrf.mxu0
    %v1654 = vadd.f32 0.0, %v1653
    %1655 = vmatmul.bf16.gmra.mxu0 %v296
    %v1656 = vpop.f32.mrf.mxu0
    %v1657 = vadd.f32 0.0, %v1656
    %v1658 = vpop.f32.mrf.mxu0
    %v1659 = vadd.f32 0.0, %v1658
    %1660 = vdwg.mxu0
    %1661 = vmatpush.bf16.msra.mxu0 %v1068
    %1662 = vmatpush.bf16.msra.mxu0 %v1056
    %1663 = vmatpush.bf16.msra.mxu0 %v1044
    %1664 = vmatpush.bf16.msra.mxu0 %v1032
    %1665 = vmatpush.bf16.msra.mxu0 %v1020
    %1666 = vmatpush.bf16.msra.mxu0 %v1008
    %1667 = vmatpush.bf16.msra.mxu0 %v996
    %1668 = vmatpush.bf16.msra.mxu0 %v984
    %1669 = vmatmul.bf16.gmra.mxu0 %v295
    %v1670 = vpop.f32.mrf.mxu0
    %v1671 = vadd.f32 %v1652, %v1670
    %v1672 = vpop.f32.mrf.mxu0
    %v1673 = vadd.f32 %v1654, %v1672
    %1674 = vmatmul.bf16.gmra.mxu0 %v297
    %v1675 = vpop.f32.mrf.mxu0
    %v1676 = vadd.f32 %v1657, %v1675
    %v1677 = vpop.f32.mrf.mxu0
    %v1678 = vadd.f32 %v1659, %v1677
    %1679 = vdwg.mxu0
    %1680 = vmatpush.bf16.msra.mxu0 %v973
    %1681 = vmatpush.bf16.msra.mxu0 %v961
    %1682 = vmatpush.bf16.msra.mxu0 %v949
    %1683 = vmatpush.bf16.msra.mxu0 %v937
    %1684 = vmatpush.bf16.msra.mxu0 %v925
    %1685 = vmatpush.bf16.msra.mxu0 %v913
    %1686 = vmatpush.bf16.msra.mxu0 %v901
    %1687 = vmatpush.bf16.msra.mxu0 %v889
    %1688 = vmatmul.bf16.gmra.mxu0 %v294
    %v1689 = vpop.f32.mrf.mxu0
    %v1690 = vadd.f32 0.0, %v1689
    %v1691 = vpop.f32.mrf.mxu0
    %v1692 = vadd.f32 0.0, %v1691
    %1693 = vmatmul.bf16.gmra.mxu0 %v296
    %v1694 = vpop.f32.mrf.mxu0
    %v1695 = vadd.f32 0.0, %v1694
    %v1696 = vpop.f32.mrf.mxu0
    %v1697 = vadd.f32 0.0, %v1696
    %1698 = vdwg.mxu0
    %1699 = vmatpush.bf16.msra.mxu0 %v1069
    %1700 = vmatpush.bf16.msra.mxu0 %v1057
    %1701 = vmatpush.bf16.msra.mxu0 %v1045
    %1702 = vmatpush.bf16.msra.mxu0 %v1033
    %1703 = vmatpush.bf16.msra.mxu0 %v1021
    %1704 = vmatpush.bf16.msra.mxu0 %v1009
    %1705 = vmatpush.bf16.msra.mxu0 %v997
    %1706 = vmatpush.bf16.msra.mxu0 %v985
    %1707 = vmatmul.bf16.gmra.mxu0 %v295
    %v1708 = vpop.f32.mrf.mxu0
    %v1709 = vadd.f32 %v1690, %v1708
    %v1710 = vpop.f32.mrf.mxu0
    %v1711 = vadd.f32 %v1692, %v1710
    %1712 = vmatmul.bf16.gmra.mxu0 %v297
    %v1713 = vpop.f32.mrf.mxu0
    %v1714 = vadd.f32 %v1695, %v1713
    %v1715 = vpop.f32.mrf.mxu0
    %v1716 = vadd.f32 %v1697, %v1715
    %1717 = vdwg.mxu0
    %v1718 = vrot.slane %v1367, 1
    %v1719 = vrot.slane %v1405, 1
    %v1720 = vrot.slane %v1369, 1
    %v1721 = vrot.slane %v1407, 1
    %v1722 = vrot.slane %v1372, 1
    %v1723 = vrot.slane %v1410, 1
    %v1724 = vrot.slane %v1374, 1
    %v1725 = vrot.slane %v1412, 1
    %v1726 = vlaneseq
    %v1727 = vshrl.u32 %v1726, 7
    %vm1728 = vcmp.lt.s32.totalorder %v1727, 7
    %v1729 = vsel %vm1728, %v1722, %v1724
    %v1730 = vsel %vm1728, %v1723, %v1725
    %v1731 = vsel %vm1728, %v1720, %v1722
    %v1732 = vsel %vm1728, %v1721, %v1723
    %v1733 = vsel %vm1728, %v1718, %v1720
    %v1734 = vsel %vm1728, %v1719, %v1721
    %v1735 = vsel %vm1728, %v1724, %v1718
    %v1736 = vsel %vm1728, %v1725, %v1719
    %v1737 = vadd.f32 %v1291, %v1733
    %v1738 = vadd.f32 %v1329, %v1734
    %v1739 = vadd.f32 %v1293, %v1731
    %v1740 = vadd.f32 %v1331, %v1732
    %v1741 = vadd.f32 %v1296, %v1729
    %v1742 = vadd.f32 %v1334, %v1730
    %v1743 = vadd.f32 %v1298, %v1735
    %v1744 = vadd.f32 %v1336, %v1736
    %v1745 = vrot.slane %v1443, 2
    %v1746 = vrot.slane %v1481, 2
    %v1747 = vrot.slane %v1445, 2
    %v1748 = vrot.slane %v1483, 2
    %v1749 = vrot.slane %v1448, 2
    %v1750 = vrot.slane %v1486, 2
    %v1751 = vrot.slane %v1450, 2
    %v1752 = vrot.slane %v1488, 2
    %vm1753 = vcmp.lt.s32.totalorder %v1727, 6
    %v1754 = vsel %vm1753, %v1749, %v1751
    %v1755 = vsel %vm1753, %v1750, %v1752
    %v1756 = vsel %vm1753, %v1747, %v1749
    %v1757 = vsel %vm1753, %v1748, %v1750
    %v1758 = vsel %vm1753, %v1745, %v1747
    %v1759 = vsel %vm1753, %v1746, %v1748
    %v1760 = vsel %vm1753, %v1751, %v1745
    %v1761 = vsel %vm1753, %v1752, %v1746
    %v1762 = vadd.f32 %v1737, %v1758
    %v1763 = vadd.f32 %v1738, %v1759
    %v1764 = vadd.f32 %v1739, %v1756
    %v1765 = vadd.f32 %v1740, %v1757
    %v1766 = vadd.f32 %v1741, %v1754
    %v1767 = vadd.f32 %v1742, %v1755
    %v1768 = vadd.f32 %v1743, %v1760
    %v1769 = vadd.f32 %v1744, %v1761
    %v1770 = vrot.slane %v1595, 1
    %v1771 = vrot.slane %v1633, 1
    %v1772 = vrot.slane %v1597, 1
    %v1773 = vrot.slane %v1635, 1
    %v1774 = vrot.slane %v1600, 1
    %v1775 = vrot.slane %v1638, 1
    %v1776 = vrot.slane %v1602, 1
    %v1777 = vrot.slane %v1640, 1
    %v1778 = vsel %vm1728, %v1774, %v1776
    %v1779 = vsel %vm1728, %v1775, %v1777
    %v1780 = vsel %vm1728, %v1772, %v1774
    %v1781 = vsel %vm1728, %v1773, %v1775
    %v1782 = vsel %vm1728, %v1770, %v1772
    %v1783 = vsel %vm1728, %v1771, %v1773
    %v1784 = vsel %vm1728, %v1776, %v1770
    %v1785 = vsel %vm1728, %v1777, %v1771
    %v1786 = vadd.f32 %v1519, %v1782
    %v1787 = vadd.f32 %v1557, %v1783
    %v1788 = vadd.f32 %v1521, %v1780
    %v1789 = vadd.f32 %v1559, %v1781
    %v1790 = vadd.f32 %v1524, %v1778
    %v1791 = vadd.f32 %v1562, %v1779
    %v1792 = vadd.f32 %v1526, %v1784
    %v1793 = vadd.f32 %v1564, %v1785
    %v1794 = vrot.slane %v1671, 2
    %v1795 = vrot.slane %v1709, 2
    %v1796 = vrot.slane %v1673, 2
    %v1797 = vrot.slane %v1711, 2
    %v1798 = vrot.slane %v1676, 2
    %v1799 = vrot.slane %v1714, 2
    %v1800 = vrot.slane %v1678, 2
    %v1801 = vrot.slane %v1716, 2
    %v1802 = vsel %vm1753, %v1798, %v1800
    %v1803 = vsel %vm1753, %v1799, %v1801
    %v1804 = vsel %vm1753, %v1796, %v1798
    %v1805 = vsel %vm1753, %v1797, %v1799
    %v1806 = vsel %vm1753, %v1794, %v1796
    %v1807 = vsel %vm1753, %v1795, %v1797
    %v1808 = vsel %vm1753, %v1800, %v1794
    %v1809 = vsel %vm1753, %v1801, %v1795
    %v1810 = vadd.f32 %v1786, %v1806
    %v1811 = vadd.f32 %v1787, %v1807
    %v1812 = vadd.f32 %v1788, %v1804
    %v1813 = vadd.f32 %v1789, %v1805
    %v1814 = vadd.f32 %v1790, %v1802
    %v1815 = vadd.f32 %v1791, %v1803
    %v1816 = vadd.f32 %v1792, %v1808
    %v1817 = vadd.f32 %v1793, %v1809
    %v1818 = vmax.f32 %v1762, %v1810
    %v1819 = vmax.f32 %v1763, %v1811
    %v1820 = vmax.f32 %v1764, %v1812
    %v1821 = vmax.f32 %v1765, %v1813
    %v1822 = vmax.f32 %v1766, %v1814
    %v1823 = vmax.f32 %v1767, %v1815
    %v1824 = vmax.f32 %v1768, %v1816
    %v1825 = vmax.f32 %v1769, %v1817
    %v1826 = vmax.f32 %v1818, %v1819
    %v1827 = vmax.f32 %v1820, %v1821
    %v1828 = vmax.f32 %v1822, %v1823
    %v1829 = vmax.f32 %v1824, %v1825
    %v1830 = vld [vmem:[%s2] sm:$0x1]
    %v1832 = vperm.slane %v1830, 0
    %v1834 = vadd.f32 %v1826, %v1832
    %v1835 = vadd.f32 %v1827, %v1832
    %v1836 = vadd.f32 %v1828, %v1832
    %v1837 = vadd.f32 %v1829, %v1832
    %v1838 = vmax.f32 %v1834, 0.0
    %v1839 = vmax.f32 %v1835, 0.0
    %v1840 = vmax.f32 %v1836, 0.0
    %v1841 = vmax.f32 %v1837, 0.0
    %v1842 = vpack.c.bf16 %v1839, %v1838
    %v1843 = vpack.c.bf16 %v1841, %v1840
    %v1844 = vld [vmem:[%s3] sm:$0xff]
    %v1845 = vld [vmem:[%s3 + $0x8] sm:$0xff]
    %v1846 = vld [vmem:[%s3 + $0x10] sm:$0xff]
    %v1847 = vld [vmem:[%s3 + $0x18] sm:$0xff]
    %v1848 = vld [vmem:[%s3 + $0x20] sm:$0xff]
    %v1849 = vld [vmem:[%s3 + $0x28] sm:$0xff]
    %v1850 = vld [vmem:[%s3 + $0x30] sm:$0xff]
    %v1851 = vld [vmem:[%s3 + $0x38] sm:$0xff]
    %v1852 = vld [vmem:[%s3 + $0x40] sm:$0xff]
    %v1853 = vld [vmem:[%s3 + $0x48] sm:$0xff]
    %v1854 = vld [vmem:[%s3 + $0x50] sm:$0xff]
    %v1855 = vld [vmem:[%s3 + $0x58] sm:$0xff]
    %v1856 = vld [vmem:[%s3 + $0x60] sm:$0xff]
    %v1857 = vld [vmem:[%s3 + $0x68] sm:$0xff]
    %v1858 = vld [vmem:[%s3 + $0x70] sm:$0xff]
    %v1859 = vld [vmem:[%s3 + $0x78] sm:$0xff]
    %v1860 = vld [vmem:[%s3 + $0x80] sm:$0xff]
    %v1861 = vld [vmem:[%s3 + $0x88] sm:$0xff]
    %v1862 = vld [vmem:[%s3 + $0x90] sm:$0xff]
    %v1863 = vld [vmem:[%s3 + $0x98] sm:$0xff]
    %v1864 = vld [vmem:[%s3 + $0xa0] sm:$0xff]
    %v1865 = vld [vmem:[%s3 + $0xa8] sm:$0xff]
    %v1866 = vld [vmem:[%s3 + $0xb0] sm:$0xff]
    %v1867 = vld [vmem:[%s3 + $0xb8] sm:$0xff]
    %v1868 = vld [vmem:[%s3 + $0xc0] sm:$0xff]
    %v1869 = vld [vmem:[%s3 + $0xc8] sm:$0xff]
    %v1870 = vld [vmem:[%s3 + $0xd0] sm:$0xff]
    %v1871 = vld [vmem:[%s3 + $0xd8] sm:$0xff]
    %v1872 = vld [vmem:[%s3 + $0xe0] sm:$0xff]
    %v1873 = vld [vmem:[%s3 + $0xe8] sm:$0xff]
    %v1874 = vld [vmem:[%s3 + $0xf0] sm:$0xff]
    %v1875 = vld [vmem:[%s3 + $0xf8] sm:$0xff]
    %v1876 = vld [vmem:[%s3 + $0x100] sm:$0xff]
    %v1877 = vld [vmem:[%s3 + $0x108] sm:$0xff]
    %v1878 = vld [vmem:[%s3 + $0x110] sm:$0xff]
    %v1879 = vld [vmem:[%s3 + $0x118] sm:$0xff]
    %v1880 = vld [vmem:[%s3 + $0x120] sm:$0xff]
    %v1881 = vld [vmem:[%s3 + $0x128] sm:$0xff]
    %v1882 = vld [vmem:[%s3 + $0x130] sm:$0xff]
    %v1883 = vld [vmem:[%s3 + $0x138] sm:$0xff]
    %v1884 = vld [vmem:[%s3 + $0x140] sm:$0xff]
    %v1885 = vld [vmem:[%s3 + $0x148] sm:$0xff]
    %v1886 = vld [vmem:[%s3 + $0x150] sm:$0xff]
    %v1887 = vld [vmem:[%s3 + $0x158] sm:$0xff]
    %v1888 = vld [vmem:[%s3 + $0x160] sm:$0xff]
    %v1889 = vld [vmem:[%s3 + $0x168] sm:$0xff]
    %v1890 = vld [vmem:[%s3 + $0x170] sm:$0xff]
    %v1891 = vld [vmem:[%s3 + $0x178] sm:$0xff]
    %v1892 = vld [vmem:[%s3 + $0x180] sm:$0xff]
    %v1893 = vld [vmem:[%s3 + $0x188] sm:$0xff]
    %v1894 = vld [vmem:[%s3 + $0x190] sm:$0xff]
    %v1895 = vld [vmem:[%s3 + $0x198] sm:$0xff]
    %v1896 = vld [vmem:[%s3 + $0x1a0] sm:$0xff]
    %v1897 = vld [vmem:[%s3 + $0x1a8] sm:$0xff]
    %v1898 = vld [vmem:[%s3 + $0x1b0] sm:$0xff]
    %v1899 = vld [vmem:[%s3 + $0x1b8] sm:$0xff]
    %v1900 = vld [vmem:[%s3 + $0x1c0] sm:$0xff]
    %v1901 = vld [vmem:[%s3 + $0x1c8] sm:$0xff]
    %v1902 = vld [vmem:[%s3 + $0x1d0] sm:$0xff]
    %v1903 = vld [vmem:[%s3 + $0x1d8] sm:$0xff]
    %v1904 = vld [vmem:[%s3 + $0x1e0] sm:$0xff]
    %v1905 = vld [vmem:[%s3 + $0x1e8] sm:$0xff]
    %v1906 = vld [vmem:[%s3 + $0x1f0] sm:$0xff]
    %v1907 = vld [vmem:[%s3 + $0x1f8] sm:$0xff]
    %v1908 = vld [vmem:[%s3 + $0x200] sm:$0xff]
    %v1909 = vld [vmem:[%s3 + $0x208] sm:$0xff]
    %v1910 = vld [vmem:[%s3 + $0x210] sm:$0xff]
    %v1911 = vld [vmem:[%s3 + $0x218] sm:$0xff]
    %v1912 = vld [vmem:[%s3 + $0x220] sm:$0xff]
    %v1913 = vld [vmem:[%s3 + $0x228] sm:$0xff]
    %v1914 = vld [vmem:[%s3 + $0x230] sm:$0xff]
    %v1915 = vld [vmem:[%s3 + $0x238] sm:$0xff]
    %v1916 = vld [vmem:[%s3 + $0x240] sm:$0xff]
    %v1917 = vld [vmem:[%s3 + $0x248] sm:$0xff]
    %v1918 = vld [vmem:[%s3 + $0x250] sm:$0xff]
    %v1919 = vld [vmem:[%s3 + $0x258] sm:$0xff]
    %v1920 = vld [vmem:[%s3 + $0x260] sm:$0xff]
    %v1921 = vld [vmem:[%s3 + $0x268] sm:$0xff]
    %v1922 = vld [vmem:[%s3 + $0x270] sm:$0xff]
    %v1923 = vld [vmem:[%s3 + $0x278] sm:$0xff]
    %v2004 = vunpack.c.l.b16 %v1844
    %v2005 = vunpack.c.h.b16 %v1844
    %v2006 = vunpack.c.l.b16 %v1845
    %v2007 = vunpack.c.h.b16 %v1845
    %v2008 = vunpack.c.l.b16 %v1846
    %v2009 = vunpack.c.h.b16 %v1846
    %v2010 = vunpack.c.l.b16 %v1847
    %v2011 = vunpack.c.h.b16 %v1847
    %v2012 = vunpack.c.l.b16 %v1848
    %v2013 = vunpack.c.h.b16 %v1848
    %v2014 = vunpack.c.l.b16 %v1849
    %v2015 = vunpack.c.h.b16 %v1849
    %v2016 = vunpack.c.l.b16 %v1850
    %v2017 = vunpack.c.h.b16 %v1850
    %v2018 = vunpack.c.l.b16 %v1851
    %v2019 = vunpack.c.h.b16 %v1851
    %v2020 = vunpack.c.l.b16 %v1852
    %v2021 = vunpack.c.h.b16 %v1852
    %v2022 = vunpack.c.l.b16 %v1853
    %v2023 = vunpack.c.h.b16 %v1853
    %v2024 = vunpack.c.l.b16 %v1854
    %v2025 = vunpack.c.h.b16 %v1854
    %v2026 = vunpack.c.l.b16 %v1855
    %v2027 = vunpack.c.h.b16 %v1855
    %v2028 = vunpack.c.l.b16 %v1856
    %v2029 = vunpack.c.h.b16 %v1856
    %v2030 = vunpack.c.l.b16 %v1857
    %v2031 = vunpack.c.h.b16 %v1857
    %v2032 = vunpack.c.l.b16 %v1858
    %v2033 = vunpack.c.h.b16 %v1858
    %v2034 = vunpack.c.l.b16 %v1859
    %v2035 = vunpack.c.h.b16 %v1859
    %v2036 = vunpack.c.l.b16 %v1860
    %v2037 = vunpack.c.h.b16 %v1860
    %v2038 = vunpack.c.l.b16 %v1861
    %v2039 = vunpack.c.h.b16 %v1861
    %v2040 = vunpack.c.l.b16 %v1862
    %v2041 = vunpack.c.h.b16 %v1862
    %v2042 = vunpack.c.l.b16 %v1863
    %v2043 = vunpack.c.h.b16 %v1863
    %v2044 = vunpack.c.l.b16 %v1864
    %v2045 = vunpack.c.h.b16 %v1864
    %v2046 = vunpack.c.l.b16 %v1865
    %v2047 = vunpack.c.h.b16 %v1865
    %v2048 = vunpack.c.l.b16 %v1866
    %v2049 = vunpack.c.h.b16 %v1866
    %v2050 = vunpack.c.l.b16 %v1867
    %v2051 = vunpack.c.h.b16 %v1867
    %v2052 = vunpack.c.l.b16 %v1868
    %v2053 = vunpack.c.h.b16 %v1868
    %v2054 = vunpack.c.l.b16 %v1869
    %v2055 = vunpack.c.h.b16 %v1869
    %v2056 = vunpack.c.l.b16 %v1870
    %v2057 = vunpack.c.h.b16 %v1870
    %v2058 = vunpack.c.l.b16 %v1871
    %v2059 = vunpack.c.h.b16 %v1871
    %v2060 = vunpack.c.l.b16 %v1872
    %v2061 = vunpack.c.h.b16 %v1872
    %v2062 = vunpack.c.l.b16 %v1873
    %v2063 = vunpack.c.h.b16 %v1873
    %v2064 = vunpack.c.l.b16 %v1874
    %v2065 = vunpack.c.h.b16 %v1874
    %v2066 = vunpack.c.l.b16 %v1875
    %v2067 = vunpack.c.h.b16 %v1875
    %v2068 = vunpack.c.l.b16 %v1876
    %v2069 = vunpack.c.h.b16 %v1876
    %v2070 = vunpack.c.l.b16 %v1877
    %v2071 = vunpack.c.h.b16 %v1877
    %v2072 = vunpack.c.l.b16 %v1878
    %v2073 = vunpack.c.h.b16 %v1878
    %v2074 = vunpack.c.l.b16 %v1879
    %v2075 = vunpack.c.h.b16 %v1879
    %v2076 = vunpack.c.l.b16 %v1880
    %v2077 = vunpack.c.h.b16 %v1880
    %v2078 = vunpack.c.l.b16 %v1881
    %v2079 = vunpack.c.h.b16 %v1881
    %v2080 = vunpack.c.l.b16 %v1882
    %v2081 = vunpack.c.h.b16 %v1882
    %v2082 = vunpack.c.l.b16 %v1883
    %v2083 = vunpack.c.h.b16 %v1883
    %v2084 = vunpack.c.l.b16 %v1884
    %v2085 = vunpack.c.h.b16 %v1884
    %v2086 = vunpack.c.l.b16 %v1885
    %v2087 = vunpack.c.h.b16 %v1885
    %v2088 = vunpack.c.l.b16 %v1886
    %v2089 = vunpack.c.h.b16 %v1886
    %v2090 = vunpack.c.l.b16 %v1887
    %v2091 = vunpack.c.h.b16 %v1887
    %v2092 = vunpack.c.l.b16 %v1888
    %v2093 = vunpack.c.h.b16 %v1888
    %v2094 = vunpack.c.l.b16 %v1889
    %v2095 = vunpack.c.h.b16 %v1889
    %v2096 = vunpack.c.l.b16 %v1890
    %v2097 = vunpack.c.h.b16 %v1890
    %v2098 = vunpack.c.l.b16 %v1891
    %v2099 = vunpack.c.h.b16 %v1891
    %v2100 = vunpack.c.l.b16 %v1892
    %v2101 = vunpack.c.h.b16 %v1892
    %v2102 = vunpack.c.l.b16 %v1893
    %v2103 = vunpack.c.h.b16 %v1893
    %v2104 = vunpack.c.l.b16 %v1894
    %v2105 = vunpack.c.h.b16 %v1894
    %v2106 = vunpack.c.l.b16 %v1895
    %v2107 = vunpack.c.h.b16 %v1895
    %v2108 = vunpack.c.l.b16 %v1896
    %v2109 = vunpack.c.h.b16 %v1896
    %v2110 = vunpack.c.l.b16 %v1897
    %v2111 = vunpack.c.h.b16 %v1897
    %v2112 = vunpack.c.l.b16 %v1898
    %v2113 = vunpack.c.h.b16 %v1898
    %v2114 = vunpack.c.l.b16 %v1899
    %v2115 = vunpack.c.h.b16 %v1899
    %v2116 = vunpack.c.l.b16 %v1900
    %v2117 = vunpack.c.h.b16 %v1900
    %v2118 = vunpack.c.l.b16 %v1901
    %v2119 = vunpack.c.h.b16 %v1901
    %v2120 = vunpack.c.l.b16 %v1902
    %v2121 = vunpack.c.h.b16 %v1902
    %v2122 = vunpack.c.l.b16 %v1903
    %v2123 = vunpack.c.h.b16 %v1903
    %v2124 = vunpack.c.l.b16 %v1904
    %v2125 = vunpack.c.h.b16 %v1904
    %v2126 = vunpack.c.l.b16 %v1905
    %v2127 = vunpack.c.h.b16 %v1905
    %v2128 = vunpack.c.l.b16 %v1906
    %v2129 = vunpack.c.h.b16 %v1906
    %v2130 = vunpack.c.l.b16 %v1907
    %v2131 = vunpack.c.h.b16 %v1907
    %v2132 = vunpack.c.l.b16 %v1908
    %v2133 = vunpack.c.h.b16 %v1908
    %v2134 = vunpack.c.l.b16 %v1909
    %v2135 = vunpack.c.h.b16 %v1909
    %v2136 = vunpack.c.l.b16 %v1910
    %v2137 = vunpack.c.h.b16 %v1910
    %v2138 = vunpack.c.l.b16 %v1911
    %v2139 = vunpack.c.h.b16 %v1911
    %v2140 = vunpack.c.l.b16 %v1912
    %v2141 = vunpack.c.h.b16 %v1912
    %v2142 = vunpack.c.l.b16 %v1913
    %v2143 = vunpack.c.h.b16 %v1913
    %v2144 = vunpack.c.l.b16 %v1914
    %v2145 = vunpack.c.h.b16 %v1914
    %v2146 = vunpack.c.l.b16 %v1915
    %v2147 = vunpack.c.h.b16 %v1915
    %v2148 = vunpack.c.l.b16 %v1916
    %v2149 = vunpack.c.h.b16 %v1916
    %v2150 = vunpack.c.l.b16 %v1917
    %v2151 = vunpack.c.h.b16 %v1917
    %v2152 = vunpack.c.l.b16 %v1918
    %v2153 = vunpack.c.h.b16 %v1918
    %v2154 = vunpack.c.l.b16 %v1919
    %v2155 = vunpack.c.h.b16 %v1919
    %v2156 = vunpack.c.l.b16 %v1920
    %v2157 = vunpack.c.h.b16 %v1920
    %v2158 = vunpack.c.l.b16 %v1921
    %v2159 = vunpack.c.h.b16 %v1921
    %v2160 = vunpack.c.l.b16 %v1922
    %v2161 = vunpack.c.h.b16 %v1922
    %v2162 = vunpack.c.l.b16 %v1923
    %v2163 = vunpack.c.h.b16 %v1923
    %v2164 = vpack.c.b16 %v2014, %v2004
    %v2165 = vpack.c.b16 %v2015, %v2005
    %v2166 = vpack.c.b16 %v2016, %v2006
    %v2167 = vpack.c.b16 %v2017, %v2007
    %v2168 = vpack.c.b16 %v2018, %v2008
    %v2169 = vpack.c.b16 %v2019, %v2009
    %v2170 = vpack.c.b16 %v2020, %v2010
    %v2171 = vpack.c.b16 %v2021, %v2011
    %v2172 = vpack.c.b16 %v2022, %v2012
    %v2173 = vpack.c.b16 %v2023, %v2013
    %v2174 = vpack.c.b16 %v2034, %v2024
    %v2175 = vpack.c.b16 %v2035, %v2025
    %v2176 = vpack.c.b16 %v2036, %v2026
    %v2177 = vpack.c.b16 %v2037, %v2027
    %v2178 = vpack.c.b16 %v2038, %v2028
    %v2179 = vpack.c.b16 %v2039, %v2029
    %v2180 = vpack.c.b16 %v2040, %v2030
    %v2181 = vpack.c.b16 %v2041, %v2031
    %v2182 = vpack.c.b16 %v2042, %v2032
    %v2183 = vpack.c.b16 %v2043, %v2033
    %v2184 = vpack.c.b16 %v2054, %v2044
    %v2185 = vpack.c.b16 %v2055, %v2045
    %v2186 = vpack.c.b16 %v2056, %v2046
    %v2187 = vpack.c.b16 %v2057, %v2047
    %v2188 = vpack.c.b16 %v2058, %v2048
    %v2189 = vpack.c.b16 %v2059, %v2049
    %v2190 = vpack.c.b16 %v2060, %v2050
    %v2191 = vpack.c.b16 %v2061, %v2051
    %v2192 = vpack.c.b16 %v2062, %v2052
    %v2193 = vpack.c.b16 %v2063, %v2053
    %v2194 = vpack.c.b16 %v2074, %v2064
    %v2195 = vpack.c.b16 %v2075, %v2065
    %v2196 = vpack.c.b16 %v2076, %v2066
    %v2197 = vpack.c.b16 %v2077, %v2067
    %v2198 = vpack.c.b16 %v2078, %v2068
    %v2199 = vpack.c.b16 %v2079, %v2069
    %v2200 = vpack.c.b16 %v2080, %v2070
    %v2201 = vpack.c.b16 %v2081, %v2071
    %v2202 = vpack.c.b16 %v2082, %v2072
    %v2203 = vpack.c.b16 %v2083, %v2073
    %v2204 = vpack.c.b16 %v2094, %v2084
    %v2205 = vpack.c.b16 %v2095, %v2085
    %v2206 = vpack.c.b16 %v2096, %v2086
    %v2207 = vpack.c.b16 %v2097, %v2087
    %v2208 = vpack.c.b16 %v2098, %v2088
    %v2209 = vpack.c.b16 %v2099, %v2089
    %v2210 = vpack.c.b16 %v2100, %v2090
    %v2211 = vpack.c.b16 %v2101, %v2091
    %v2212 = vpack.c.b16 %v2102, %v2092
    %v2213 = vpack.c.b16 %v2103, %v2093
    %v2214 = vpack.c.b16 %v2114, %v2104
    %v2215 = vpack.c.b16 %v2115, %v2105
    %v2216 = vpack.c.b16 %v2116, %v2106
    %v2217 = vpack.c.b16 %v2117, %v2107
    %v2218 = vpack.c.b16 %v2118, %v2108
    %v2219 = vpack.c.b16 %v2119, %v2109
    %v2220 = vpack.c.b16 %v2120, %v2110
    %v2221 = vpack.c.b16 %v2121, %v2111
    %v2222 = vpack.c.b16 %v2122, %v2112
    %v2223 = vpack.c.b16 %v2123, %v2113
    %v2224 = vpack.c.b16 %v2134, %v2124
    %v2225 = vpack.c.b16 %v2135, %v2125
    %v2226 = vpack.c.b16 %v2136, %v2126
    %v2227 = vpack.c.b16 %v2137, %v2127
    %v2228 = vpack.c.b16 %v2138, %v2128
    %v2229 = vpack.c.b16 %v2139, %v2129
    %v2230 = vpack.c.b16 %v2140, %v2130
    %v2231 = vpack.c.b16 %v2141, %v2131
    %v2232 = vpack.c.b16 %v2142, %v2132
    %v2233 = vpack.c.b16 %v2143, %v2133
    %v2234 = vpack.c.b16 %v2154, %v2144
    %v2235 = vpack.c.b16 %v2155, %v2145
    %v2236 = vpack.c.b16 %v2156, %v2146
    %v2237 = vpack.c.b16 %v2157, %v2147
    %v2238 = vpack.c.b16 %v2158, %v2148
    %v2239 = vpack.c.b16 %v2159, %v2149
    %v2240 = vpack.c.b16 %v2160, %v2150
    %v2241 = vpack.c.b16 %v2161, %v2151
    %v2242 = vpack.c.b16 %v2162, %v2152
    %v2243 = vpack.c.b16 %v2163, %v2153
    %2324 = vmatpush.bf16.msra.mxu0 %v2234
    %2325 = vmatpush.bf16.msra.mxu0 %v2224
    %2326 = vmatpush.bf16.msra.mxu0 %v2214
    %2327 = vmatpush.bf16.msra.mxu0 %v2204
    %2328 = vmatpush.bf16.msra.mxu0 %v2194
    %2329 = vmatpush.bf16.msra.mxu0 %v2184
    %2330 = vmatpush.bf16.msra.mxu0 %v2174
    %2331 = vmatpush.bf16.msra.mxu0 %v2164
    %2332 = vmatmul.bf16.gmra.mxu0 %v1842
    %v2333 = vpop.f32.mrf.mxu0
    %v2334 = vadd.f32 0.0, %v2333
    %v2335 = vpop.f32.mrf.mxu0
    %v2336 = vadd.f32 0.0, %v2335
    %2337 = vmatmul.bf16.gmra.mxu0 %v1843
    %v2338 = vpop.f32.mrf.mxu0
    %v2339 = vadd.f32 0.0, %v2338
    %v2340 = vpop.f32.mrf.mxu0
    %v2341 = vadd.f32 0.0, %v2340
    %2342 = vdwg.mxu0
    %2343 = vmatpush.bf16.msra.mxu0 %v2235
    %2344 = vmatpush.bf16.msra.mxu0 %v2225
    %2345 = vmatpush.bf16.msra.mxu0 %v2215
    %2346 = vmatpush.bf16.msra.mxu0 %v2205
    %2347 = vmatpush.bf16.msra.mxu0 %v2195
    %2348 = vmatpush.bf16.msra.mxu0 %v2185
    %2349 = vmatpush.bf16.msra.mxu0 %v2175
    %2350 = vmatpush.bf16.msra.mxu0 %v2165
    %2351 = vmatmul.bf16.gmra.mxu0 %v1842
    %v2352 = vpop.f32.mrf.mxu0
    %v2353 = vadd.f32 0.0, %v2352
    %v2354 = vpop.f32.mrf.mxu0
    %v2355 = vadd.f32 0.0, %v2354
    %2356 = vmatmul.bf16.gmra.mxu0 %v1843
    %v2357 = vpop.f32.mrf.mxu0
    %v2358 = vadd.f32 0.0, %v2357
    %v2359 = vpop.f32.mrf.mxu0
    %v2360 = vadd.f32 0.0, %v2359
    %2361 = vdwg.mxu0
    %2362 = vmatpush.bf16.msra.mxu0 %v2236
    %2363 = vmatpush.bf16.msra.mxu0 %v2226
    %2364 = vmatpush.bf16.msra.mxu0 %v2216
    %2365 = vmatpush.bf16.msra.mxu0 %v2206
    %2366 = vmatpush.bf16.msra.mxu0 %v2196
    %2367 = vmatpush.bf16.msra.mxu0 %v2186
    %2368 = vmatpush.bf16.msra.mxu0 %v2176
    %2369 = vmatpush.bf16.msra.mxu0 %v2166
    %2370 = vmatmul.bf16.gmra.mxu0 %v1842
    %v2371 = vpop.f32.mrf.mxu0
    %v2372 = vadd.f32 0.0, %v2371
    %v2373 = vpop.f32.mrf.mxu0
    %v2374 = vadd.f32 0.0, %v2373
    %2375 = vmatmul.bf16.gmra.mxu0 %v1843
    %v2376 = vpop.f32.mrf.mxu0
    %v2377 = vadd.f32 0.0, %v2376
    %v2378 = vpop.f32.mrf.mxu0
    %v2379 = vadd.f32 0.0, %v2378
    %2380 = vdwg.mxu0
    %2381 = vmatpush.bf16.msra.mxu0 %v2237
    %2382 = vmatpush.bf16.msra.mxu0 %v2227
    %2383 = vmatpush.bf16.msra.mxu0 %v2217
    %2384 = vmatpush.bf16.msra.mxu0 %v2207
    %2385 = vmatpush.bf16.msra.mxu0 %v2197
    %2386 = vmatpush.bf16.msra.mxu0 %v2187
    %2387 = vmatpush.bf16.msra.mxu0 %v2177
    %2388 = vmatpush.bf16.msra.mxu0 %v2167
    %2389 = vmatmul.bf16.gmra.mxu0 %v1842
    %v2390 = vpop.f32.mrf.mxu0
    %v2391 = vadd.f32 0.0, %v2390
    %v2392 = vpop.f32.mrf.mxu0
    %v2393 = vadd.f32 0.0, %v2392
    %2394 = vmatmul.bf16.gmra.mxu0 %v1843
    %v2395 = vpop.f32.mrf.mxu0
    %v2396 = vadd.f32 0.0, %v2395
    %v2397 = vpop.f32.mrf.mxu0
    %v2398 = vadd.f32 0.0, %v2397
    %2399 = vdwg.mxu0
    %2400 = vmatpush.bf16.msra.mxu0 %v2238
    %2401 = vmatpush.bf16.msra.mxu0 %v2228
    %2402 = vmatpush.bf16.msra.mxu0 %v2218
    %2403 = vmatpush.bf16.msra.mxu0 %v2208
    %2404 = vmatpush.bf16.msra.mxu0 %v2198
    %2405 = vmatpush.bf16.msra.mxu0 %v2188
    %2406 = vmatpush.bf16.msra.mxu0 %v2178
    %2407 = vmatpush.bf16.msra.mxu0 %v2168
    %2408 = vmatmul.bf16.gmra.mxu0 %v1842
    %v2409 = vpop.f32.mrf.mxu0
    %v2410 = vadd.f32 0.0, %v2409
    %v2411 = vpop.f32.mrf.mxu0
    %v2412 = vadd.f32 0.0, %v2411
    %2413 = vmatmul.bf16.gmra.mxu0 %v1843
    %v2414 = vpop.f32.mrf.mxu0
    %v2415 = vadd.f32 0.0, %v2414
    %v2416 = vpop.f32.mrf.mxu0
    %v2417 = vadd.f32 0.0, %v2416
    %2418 = vdwg.mxu0
    %2419 = vmatpush.bf16.msra.mxu0 %v2239
    %2420 = vmatpush.bf16.msra.mxu0 %v2229
    %2421 = vmatpush.bf16.msra.mxu0 %v2219
    %2422 = vmatpush.bf16.msra.mxu0 %v2209
    %2423 = vmatpush.bf16.msra.mxu0 %v2199
    %2424 = vmatpush.bf16.msra.mxu0 %v2189
    %2425 = vmatpush.bf16.msra.mxu0 %v2179
    %2426 = vmatpush.bf16.msra.mxu0 %v2169
    %2427 = vmatmul.bf16.gmra.mxu0 %v1842
    %v2428 = vpop.f32.mrf.mxu0
    %v2429 = vadd.f32 0.0, %v2428
    %v2430 = vpop.f32.mrf.mxu0
    %v2431 = vadd.f32 0.0, %v2430
    %2432 = vmatmul.bf16.gmra.mxu0 %v1843
    %v2433 = vpop.f32.mrf.mxu0
    %v2434 = vadd.f32 0.0, %v2433
    %v2435 = vpop.f32.mrf.mxu0
    %v2436 = vadd.f32 0.0, %v2435
    %2437 = vdwg.mxu0
    %2438 = vmatpush.bf16.msra.mxu0 %v2240
    %2439 = vmatpush.bf16.msra.mxu0 %v2230
    %2440 = vmatpush.bf16.msra.mxu0 %v2220
    %2441 = vmatpush.bf16.msra.mxu0 %v2210
    %2442 = vmatpush.bf16.msra.mxu0 %v2200
    %2443 = vmatpush.bf16.msra.mxu0 %v2190
    %2444 = vmatpush.bf16.msra.mxu0 %v2180
    %2445 = vmatpush.bf16.msra.mxu0 %v2170
    %2446 = vmatmul.bf16.gmra.mxu0 %v1842
    %v2447 = vpop.f32.mrf.mxu0
    %v2448 = vadd.f32 0.0, %v2447
    %v2449 = vpop.f32.mrf.mxu0
    %v2450 = vadd.f32 0.0, %v2449
    %2451 = vmatmul.bf16.gmra.mxu0 %v1843
    %v2452 = vpop.f32.mrf.mxu0
    %v2453 = vadd.f32 0.0, %v2452
    %v2454 = vpop.f32.mrf.mxu0
    %v2455 = vadd.f32 0.0, %v2454
    %2456 = vdwg.mxu0
    %2457 = vmatpush.bf16.msra.mxu0 %v2241
    %2458 = vmatpush.bf16.msra.mxu0 %v2231
    %2459 = vmatpush.bf16.msra.mxu0 %v2221
    %2460 = vmatpush.bf16.msra.mxu0 %v2211
    %2461 = vmatpush.bf16.msra.mxu0 %v2201
    %2462 = vmatpush.bf16.msra.mxu0 %v2191
    %2463 = vmatpush.bf16.msra.mxu0 %v2181
    %2464 = vmatpush.bf16.msra.mxu0 %v2171
    %2465 = vmatmul.bf16.gmra.mxu0 %v1842
    %v2466 = vpop.f32.mrf.mxu0
    %v2467 = vadd.f32 0.0, %v2466
    %v2468 = vpop.f32.mrf.mxu0
    %v2469 = vadd.f32 0.0, %v2468
    %2470 = vmatmul.bf16.gmra.mxu0 %v1843
    %v2471 = vpop.f32.mrf.mxu0
    %v2472 = vadd.f32 0.0, %v2471
    %v2473 = vpop.f32.mrf.mxu0
    %v2474 = vadd.f32 0.0, %v2473
    %2475 = vdwg.mxu0
    %2476 = vmatpush.bf16.msra.mxu0 %v2242
    %2477 = vmatpush.bf16.msra.mxu0 %v2232
    %2478 = vmatpush.bf16.msra.mxu0 %v2222
    %2479 = vmatpush.bf16.msra.mxu0 %v2212
    %2480 = vmatpush.bf16.msra.mxu0 %v2202
    %2481 = vmatpush.bf16.msra.mxu0 %v2192
    %2482 = vmatpush.bf16.msra.mxu0 %v2182
    %2483 = vmatpush.bf16.msra.mxu0 %v2172
    %2484 = vmatmul.bf16.gmra.mxu0 %v1842
    %v2485 = vpop.f32.mrf.mxu0
    %v2486 = vadd.f32 0.0, %v2485
    %v2487 = vpop.f32.mrf.mxu0
    %v2488 = vadd.f32 0.0, %v2487
    %2489 = vmatmul.bf16.gmra.mxu0 %v1843
    %v2490 = vpop.f32.mrf.mxu0
    %v2491 = vadd.f32 0.0, %v2490
    %v2492 = vpop.f32.mrf.mxu0
    %v2493 = vadd.f32 0.0, %v2492
    %2494 = vdwg.mxu0
    %2495 = vmatpush.bf16.msra.mxu0 %v2243
    %2496 = vmatpush.bf16.msra.mxu0 %v2233
    %2497 = vmatpush.bf16.msra.mxu0 %v2223
    %2498 = vmatpush.bf16.msra.mxu0 %v2213
    %2499 = vmatpush.bf16.msra.mxu0 %v2203
    %2500 = vmatpush.bf16.msra.mxu0 %v2193
    %2501 = vmatpush.bf16.msra.mxu0 %v2183
    %2502 = vmatpush.bf16.msra.mxu0 %v2173
    %2503 = vmatmul.bf16.gmra.mxu0 %v1842
    %v2504 = vpop.f32.mrf.mxu0
    %v2505 = vadd.f32 0.0, %v2504
    %v2506 = vpop.f32.mrf.mxu0
    %v2507 = vadd.f32 0.0, %v2506
    %2508 = vmatmul.bf16.gmra.mxu0 %v1843
    %v2509 = vpop.f32.mrf.mxu0
    %v2510 = vadd.f32 0.0, %v2509
    %v2511 = vpop.f32.mrf.mxu0
    %v2512 = vadd.f32 0.0, %v2511
    %2513 = vdwg.mxu0
    %v2514 = vrot.slane %v2372, 1
    %v2515 = vrot.slane %v2391, 1
    %v2516 = vrot.slane %v2374, 1
    %v2517 = vrot.slane %v2393, 1
    %v2518 = vrot.slane %v2377, 1
    %v2519 = vrot.slane %v2396, 1
    %v2520 = vrot.slane %v2379, 1
    %v2521 = vrot.slane %v2398, 1
    %v2522 = vsel %vm1728, %v2518, %v2520
    %v2523 = vsel %vm1728, %v2519, %v2521
    %v2524 = vsel %vm1728, %v2516, %v2518
    %v2525 = vsel %vm1728, %v2517, %v2519
    %v2526 = vsel %vm1728, %v2514, %v2516
    %v2527 = vsel %vm1728, %v2515, %v2517
    %v2528 = vsel %vm1728, %v2520, %v2514
    %v2529 = vsel %vm1728, %v2521, %v2515
    %v2530 = vadd.f32 %v2334, %v2526
    %v2531 = vadd.f32 %v2353, %v2527
    %v2532 = vadd.f32 %v2336, %v2524
    %v2533 = vadd.f32 %v2355, %v2525
    %v2534 = vadd.f32 %v2339, %v2522
    %v2535 = vadd.f32 %v2358, %v2523
    %v2536 = vadd.f32 %v2341, %v2528
    %v2537 = vadd.f32 %v2360, %v2529
    %v2538 = vrot.slane %v2410, 2
    %v2539 = vrot.slane %v2429, 2
    %v2540 = vrot.slane %v2412, 2
    %v2541 = vrot.slane %v2431, 2
    %v2542 = vrot.slane %v2415, 2
    %v2543 = vrot.slane %v2434, 2
    %v2544 = vrot.slane %v2417, 2
    %v2545 = vrot.slane %v2436, 2
    %v2546 = vsel %vm1753, %v2542, %v2544
    %v2547 = vsel %vm1753, %v2543, %v2545
    %v2548 = vsel %vm1753, %v2540, %v2542
    %v2549 = vsel %vm1753, %v2541, %v2543
    %v2550 = vsel %vm1753, %v2538, %v2540
    %v2551 = vsel %vm1753, %v2539, %v2541
    %v2552 = vsel %vm1753, %v2544, %v2538
    %v2553 = vsel %vm1753, %v2545, %v2539
    %v2554 = vadd.f32 %v2530, %v2550
    %v2555 = vadd.f32 %v2531, %v2551
    %v2556 = vadd.f32 %v2532, %v2548
    %v2557 = vadd.f32 %v2533, %v2549
    %v2558 = vadd.f32 %v2534, %v2546
    %v2559 = vadd.f32 %v2535, %v2547
    %v2560 = vadd.f32 %v2536, %v2552
    %v2561 = vadd.f32 %v2537, %v2553
    %v2562 = vrot.slane %v2448, 3
    %v2563 = vrot.slane %v2467, 3
    %v2564 = vrot.slane %v2450, 3
    %v2565 = vrot.slane %v2469, 3
    %v2566 = vrot.slane %v2453, 3
    %v2567 = vrot.slane %v2472, 3
    %v2568 = vrot.slane %v2455, 3
    %v2569 = vrot.slane %v2474, 3
    %vm2570 = vcmp.lt.s32.totalorder %v1727, 5
    %v2571 = vsel %vm2570, %v2566, %v2568
    %v2572 = vsel %vm2570, %v2567, %v2569
    %v2573 = vsel %vm2570, %v2564, %v2566
    %v2574 = vsel %vm2570, %v2565, %v2567
    %v2575 = vsel %vm2570, %v2562, %v2564
    %v2576 = vsel %vm2570, %v2563, %v2565
    %v2577 = vsel %vm2570, %v2568, %v2562
    %v2578 = vsel %vm2570, %v2569, %v2563
    %v2579 = vadd.f32 %v2554, %v2575
    %v2580 = vadd.f32 %v2555, %v2576
    %v2581 = vadd.f32 %v2556, %v2573
    %v2582 = vadd.f32 %v2557, %v2574
    %v2583 = vadd.f32 %v2558, %v2571
    %v2584 = vadd.f32 %v2559, %v2572
    %v2585 = vadd.f32 %v2560, %v2577
    %v2586 = vadd.f32 %v2561, %v2578
    %v2587 = vrot.slane %v2486, 4
    %v2588 = vrot.slane %v2505, 4
    %v2589 = vrot.slane %v2488, 4
    %v2590 = vrot.slane %v2507, 4
    %v2591 = vrot.slane %v2491, 4
    %v2592 = vrot.slane %v2510, 4
    %v2593 = vrot.slane %v2493, 4
    %v2594 = vrot.slane %v2512, 4
    %vm2595 = vcmp.lt.s32.totalorder %v1727, 4
    %v2596 = vsel %vm2595, %v2591, %v2593
    %v2597 = vsel %vm2595, %v2592, %v2594
    %v2598 = vsel %vm2595, %v2589, %v2591
    %v2599 = vsel %vm2595, %v2590, %v2592
    %v2600 = vsel %vm2595, %v2587, %v2589
    %v2601 = vsel %vm2595, %v2588, %v2590
    %v2602 = vsel %vm2595, %v2593, %v2587
    %v2603 = vsel %vm2595, %v2594, %v2588
    %v2604 = vadd.f32 %v2579, %v2600
    %v2605 = vadd.f32 %v2580, %v2601
    %v2606 = vadd.f32 %v2581, %v2598
    %v2607 = vadd.f32 %v2582, %v2599
    %v2608 = vadd.f32 %v2583, %v2596
    %v2609 = vadd.f32 %v2584, %v2597
    %v2610 = vadd.f32 %v2585, %v2602
    %v2611 = vadd.f32 %v2586, %v2603
    %v2612 = vrot.slane %v2604, 1
    %v2613 = vrot.slane %v2605, 1
    %v2614 = vrot.slane %v2606, 1
    %v2615 = vrot.slane %v2607, 1
    %v2616 = vrot.slane %v2608, 1
    %v2617 = vrot.slane %v2609, 1
    %v2618 = vrot.slane %v2610, 1
    %v2619 = vrot.slane %v2611, 1
    %v2620 = vsel %vm1728, %v2616, %v2618
    %v2621 = vsel %vm1728, %v2617, %v2619
    %v2622 = vsel %vm1728, %v2614, %v2616
    %v2623 = vsel %vm1728, %v2615, %v2617
    %v2624 = vsel %vm1728, %v2612, %v2614
    %v2625 = vsel %vm1728, %v2613, %v2615
    %v2626 = vsel %vm1728, %v2618, %v2612
    %v2627 = vsel %vm1728, %v2619, %v2613
    %v2628 = vmax.f32 %v2604, %v2624
    %v2629 = vmax.f32 %v2605, %v2625
    %v2630 = vmax.f32 %v2606, %v2622
    %v2631 = vmax.f32 %v2607, %v2623
    %v2632 = vmax.f32 %v2608, %v2620
    %v2633 = vmax.f32 %v2609, %v2621
    %v2634 = vmax.f32 %v2610, %v2626
    %v2635 = vmax.f32 %v2611, %v2627
    %v2636 = vmax.f32 %v2628, %v2629
    %v2637 = vmax.f32 %v2630, %v2631
    %v2638 = vmax.f32 %v2632, %v2633
    %v2639 = vmax.f32 %v2634, %v2635
    %v2640 = vld [vmem:[%s4] sm:$0x1]
    %v2642 = vperm.slane %v2640, 0
    %v2644 = vadd.f32 %v2636, %v2642
    %v2645 = vadd.f32 %v2637, %v2642
    %v2646 = vadd.f32 %v2638, %v2642
    %v2647 = vadd.f32 %v2639, %v2642
    %v2648 = vmax.f32 %v2644, 0.0
    %v2649 = vmax.f32 %v2645, 0.0
    %v2650 = vmax.f32 %v2646, 0.0
    %v2651 = vmax.f32 %v2647, 0.0
    %v2653 = vrot.slane %v2648, 2
    %v2655 = vrot.slane %v2648, 4
    %v2657 = vrot.slane %v2648, 6
    %v2660 = vrot.slane %v2650, 2
    %v2661 = vrot.slane %v2650, 4
    %v2662 = vrot.slane %v2650, 6
    %v2664 = vrot.slane %v2650, 7
    %v2665 = vrot.slane %v2660, 7
    %v2666 = vrot.slane %v2661, 7
    %v2667 = vrot.slane %v2662, 7
    %v2668 = vrot.slane %v2651, 7
    %vm2674 = vcmask 1040384
    %v2675 = vsel %vm2674, %v2648, %v2664
    %v2676 = vsel %vm2674, %v2653, %v2665
    %v2677 = vsel %vm2674, %v2655, %v2666
    %v2678 = vsel %vm2674, %v2657, %v2667
    %v2679 = vsel %vm2674, %v2649, %v2668
    %v2680 = vpack.c.bf16 %v2675, %v2675
    %v2681 = vpack.c.bf16 %v2676, %v2676
    %v2682 = vpack.c.bf16 %v2677, %v2677
    %v2683 = vpack.c.bf16 %v2678, %v2678
    %v2684 = vpack.c.bf16 %v2679, %v2679
    %v2685 = vld [vmem:[#allocation5] sm:$0xff]
    %v2686 = vld [vmem:[#allocation5 + $0x8] sm:$0xff]
    %v2687 = vld [vmem:[#allocation5 + $0x10] sm:$0xff]
    %v2688 = vld [vmem:[#allocation5 + $0x18] sm:$0xff]
    %v2689 = vld [vmem:[#allocation5 + $0x20] sm:$0xff]
    %v2690 = vld [vmem:[#allocation5 + $0x28] sm:$0xff]
    %v2691 = vld [vmem:[#allocation5 + $0x30] sm:$0xff]
    %v2692 = vld [vmem:[#allocation5 + $0x38] sm:$0xff]
    %v2693 = vld [vmem:[#allocation5 + $0x40] sm:$0xff]
    %v2694 = vld [vmem:[#allocation5 + $0x48] sm:$0xff]
    %v2695 = vld [vmem:[#allocation5 + $0x50] sm:$0xff]
    %v2696 = vld [vmem:[#allocation5 + $0x58] sm:$0xff]
    %v2697 = vld [vmem:[#allocation5 + $0x60] sm:$0xff]
    %v2698 = vld [vmem:[#allocation5 + $0x68] sm:$0xff]
    %v2699 = vld [vmem:[#allocation5 + $0x70] sm:$0xff]
    %v2700 = vld [vmem:[#allocation5 + $0x78] sm:$0xff]
    %v2701 = vld [vmem:[#allocation5 + $0x80] sm:$0xff]
    %v2702 = vld [vmem:[#allocation5 + $0x88] sm:$0xff]
    %v2703 = vld [vmem:[#allocation5 + $0x90] sm:$0xff]
    %v2704 = vld [vmem:[#allocation5 + $0x98] sm:$0xff]
    %v2705 = vld [vmem:[#allocation5 + $0xa0] sm:$0xff]
    %v2706 = vld [vmem:[#allocation5 + $0xa8] sm:$0xff]
    %v2707 = vld [vmem:[#allocation5 + $0xb0] sm:$0xff]
    %v2708 = vld [vmem:[#allocation5 + $0xb8] sm:$0xff]
    %v2709 = vld [vmem:[#allocation5 + $0xc0] sm:$0xff]
    %v2710 = vld [vmem:[#allocation5 + $0xc8] sm:$0xff]
    %v2711 = vld [vmem:[#allocation5 + $0xd0] sm:$0xff]
    %v2712 = vld [vmem:[#allocation5 + $0xd8] sm:$0xff]
    %v2713 = vld [vmem:[#allocation5 + $0xe0] sm:$0xff]
    %v2714 = vld [vmem:[#allocation5 + $0xe8] sm:$0xff]
    %v2715 = vld [vmem:[#allocation5 + $0xf0] sm:$0xff]
    %v2716 = vld [vmem:[#allocation5 + $0xf8] sm:$0xff]
    %v2717 = vld [vmem:[#allocation5 + $0x100] sm:$0xff]
    %v2718 = vld [vmem:[#allocation5 + $0x108] sm:$0xff]
    %v2719 = vld [vmem:[#allocation5 + $0x110] sm:$0xff]
    %v2720 = vld [vmem:[#allocation5 + $0x118] sm:$0xff]
    %v2721 = vld [vmem:[#allocation5 + $0x120] sm:$0xff]
    %v2722 = vld [vmem:[#allocation5 + $0x128] sm:$0xff]
    %v2723 = vld [vmem:[#allocation5 + $0x130] sm:$0xff]
    %v2724 = vld [vmem:[#allocation5 + $0x138] sm:$0xff]
    %v2725 = vld [vmem:[#allocation5 + $0x140] sm:$0xff]
    %v2726 = vld [vmem:[#allocation5 + $0x148] sm:$0xff]
    %v2727 = vld [vmem:[#allocation5 + $0x150] sm:$0xff]
    %v2728 = vld [vmem:[#allocation5 + $0x158] sm:$0xff]
    %v2729 = vld [vmem:[#allocation5 + $0x160] sm:$0xff]
    %v2730 = vld [vmem:[#allocation5 + $0x168] sm:$0xff]
    %v2731 = vld [vmem:[#allocation5 + $0x170] sm:$0xff]
    %v2732 = vld [vmem:[#allocation5 + $0x178] sm:$0xff]
    %v2733 = vld [vmem:[#allocation5 + $0x180] sm:$0xff]
    %v2734 = vld [vmem:[#allocation5 + $0x188] sm:$0xff]
    %v2735 = vld [vmem:[#allocation5 + $0x190] sm:$0xff]
    %v2736 = vld [vmem:[#allocation5 + $0x198] sm:$0xff]
    %v2737 = vld [vmem:[#allocation5 + $0x1a0] sm:$0xff]
    %v2738 = vld [vmem:[#allocation5 + $0x1a8] sm:$0xff]
    %v2739 = vld [vmem:[#allocation5 + $0x1b0] sm:$0xff]
    %v2740 = vld [vmem:[#allocation5 + $0x1b8] sm:$0xff]
    %v2741 = vld [vmem:[#allocation5 + $0x1c0] sm:$0xff]
    %v2742 = vld [vmem:[#allocation5 + $0x1c8] sm:$0xff]
    %v2743 = vld [vmem:[#allocation5 + $0x1d0] sm:$0xff]
    %v2744 = vld [vmem:[#allocation5 + $0x1d8] sm:$0xff]
    %v2745 = vld [vmem:[#allocation5 + $0x1e0] sm:$0xff]
    %v2746 = vld [vmem:[#allocation5 + $0x1e8] sm:$0xff]
    %v2747 = vld [vmem:[#allocation5 + $0x1f0] sm:$0xff]
    %v2748 = vld [vmem:[#allocation5 + $0x1f8] sm:$0xff]
    %v2749 = vld [vmem:[#allocation5 + $0x200] sm:$0xff]
    %v2750 = vld [vmem:[#allocation5 + $0x208] sm:$0xff]
    %v2751 = vld [vmem:[#allocation5 + $0x210] sm:$0xff]
    %v2752 = vld [vmem:[#allocation5 + $0x218] sm:$0xff]
    %v2753 = vld [vmem:[#allocation5 + $0x220] sm:$0xff]
    %v2754 = vld [vmem:[#allocation5 + $0x228] sm:$0xff]
    %v2755 = vld [vmem:[#allocation5 + $0x230] sm:$0xff]
    %v2756 = vld [vmem:[#allocation5 + $0x238] sm:$0xff]
    %v2757 = vld [vmem:[#allocation5 + $0x240] sm:$0xff]
    %v2758 = vld [vmem:[#allocation5 + $0x248] sm:$0xff]
    %v2759 = vld [vmem:[#allocation5 + $0x250] sm:$0xff]
    %v2760 = vld [vmem:[#allocation5 + $0x258] sm:$0xff]
    %v2761 = vld [vmem:[#allocation5 + $0x260] sm:$0xff]
    %v2762 = vld [vmem:[#allocation5 + $0x268] sm:$0xff]
    %v2763 = vld [vmem:[#allocation5 + $0x270] sm:$0xff]
    %v2764 = vld [vmem:[#allocation5 + $0x278] sm:$0xff]
    %v2765 = vld [vmem:[%s6] sm:$0x3]
    %v2767 = vperm.slane %v2765, 0
    %v2768 = vperm.slane %v2765, 1
    %v2851 = vunpack.c.l.b16 %v2685
    %v2852 = vunpack.c.h.b16 %v2685
    %v2853 = vunpack.c.l.b16 %v2686
    %v2854 = vunpack.c.h.b16 %v2686
    %v2855 = vunpack.c.l.b16 %v2687
    %v2856 = vunpack.c.h.b16 %v2687
    %v2857 = vunpack.c.l.b16 %v2688
    %v2858 = vunpack.c.h.b16 %v2688
    %v2859 = vunpack.c.l.b16 %v2689
    %v2860 = vunpack.c.h.b16 %v2689
    %v2861 = vunpack.c.l.b16 %v2690
    %v2862 = vunpack.c.h.b16 %v2690
    %v2863 = vunpack.c.l.b16 %v2691
    %v2864 = vunpack.c.h.b16 %v2691
    %v2865 = vunpack.c.l.b16 %v2692
    %v2866 = vunpack.c.h.b16 %v2692
    %v2867 = vunpack.c.l.b16 %v2693
    %v2868 = vunpack.c.h.b16 %v2693
    %v2869 = vunpack.c.l.b16 %v2694
    %v2870 = vunpack.c.h.b16 %v2694
    %v2871 = vunpack.c.l.b16 %v2695
    %v2872 = vunpack.c.h.b16 %v2695
    %v2873 = vunpack.c.l.b16 %v2696
    %v2874 = vunpack.c.h.b16 %v2696
    %v2875 = vunpack.c.l.b16 %v2697
    %v2876 = vunpack.c.h.b16 %v2697
    %v2877 = vunpack.c.l.b16 %v2698
    %v2878 = vunpack.c.h.b16 %v2698
    %v2879 = vunpack.c.l.b16 %v2699
    %v2880 = vunpack.c.h.b16 %v2699
    %v2881 = vunpack.c.l.b16 %v2700
    %v2882 = vunpack.c.h.b16 %v2700
    %v2883 = vunpack.c.l.b16 %v2701
    %v2884 = vunpack.c.h.b16 %v2701
    %v2885 = vunpack.c.l.b16 %v2702
    %v2886 = vunpack.c.h.b16 %v2702
    %v2887 = vunpack.c.l.b16 %v2703
    %v2888 = vunpack.c.h.b16 %v2703
    %v2889 = vunpack.c.l.b16 %v2704
    %v2890 = vunpack.c.h.b16 %v2704
    %v2891 = vunpack.c.l.b16 %v2705
    %v2892 = vunpack.c.h.b16 %v2705
    %v2893 = vunpack.c.l.b16 %v2706
    %v2894 = vunpack.c.h.b16 %v2706
    %v2895 = vunpack.c.l.b16 %v2707
    %v2896 = vunpack.c.h.b16 %v2707
    %v2897 = vunpack.c.l.b16 %v2708
    %v2898 = vunpack.c.h.b16 %v2708
    %v2899 = vunpack.c.l.b16 %v2709
    %v2900 = vunpack.c.h.b16 %v2709
    %v2901 = vunpack.c.l.b16 %v2710
    %v2902 = vunpack.c.h.b16 %v2710
    %v2903 = vunpack.c.l.b16 %v2711
    %v2904 = vunpack.c.h.b16 %v2711
    %v2905 = vunpack.c.l.b16 %v2712
    %v2906 = vunpack.c.h.b16 %v2712
    %v2907 = vunpack.c.l.b16 %v2713
    %v2908 = vunpack.c.h.b16 %v2713
    %v2909 = vunpack.c.l.b16 %v2714
    %v2910 = vunpack.c.h.b16 %v2714
    %v2911 = vunpack.c.l.b16 %v2715
    %v2912 = vunpack.c.h.b16 %v2715
    %v2913 = vunpack.c.l.b16 %v2716
    %v2914 = vunpack.c.h.b16 %v2716
    %v2915 = vunpack.c.l.b16 %v2717
    %v2916 = vunpack.c.h.b16 %v2717
    %v2917 = vunpack.c.l.b16 %v2718
    %v2918 = vunpack.c.h.b16 %v2718
    %v2919 = vunpack.c.l.b16 %v2719
    %v2920 = vunpack.c.h.b16 %v2719
    %v2921 = vunpack.c.l.b16 %v2720
    %v2922 = vunpack.c.h.b16 %v2720
    %v2923 = vunpack.c.l.b16 %v2721
    %v2924 = vunpack.c.h.b16 %v2721
    %v2925 = vunpack.c.l.b16 %v2722
    %v2926 = vunpack.c.h.b16 %v2722
    %v2927 = vunpack.c.l.b16 %v2723
    %v2928 = vunpack.c.h.b16 %v2723
    %v2929 = vunpack.c.l.b16 %v2724
    %v2930 = vunpack.c.h.b16 %v2724
    %v2931 = vunpack.c.l.b16 %v2725
    %v2932 = vunpack.c.h.b16 %v2725
    %v2933 = vunpack.c.l.b16 %v2726
    %v2934 = vunpack.c.h.b16 %v2726
    %v2935 = vunpack.c.l.b16 %v2727
    %v2936 = vunpack.c.h.b16 %v2727
    %v2937 = vunpack.c.l.b16 %v2728
    %v2938 = vunpack.c.h.b16 %v2728
    %v2939 = vunpack.c.l.b16 %v2729
    %v2940 = vunpack.c.h.b16 %v2729
    %v2941 = vunpack.c.l.b16 %v2730
    %v2942 = vunpack.c.h.b16 %v2730
    %v2943 = vunpack.c.l.b16 %v2731
    %v2944 = vunpack.c.h.b16 %v2731
    %v2945 = vunpack.c.l.b16 %v2732
    %v2946 = vunpack.c.h.b16 %v2732
    %v2947 = vunpack.c.l.b16 %v2733
    %v2948 = vunpack.c.h.b16 %v2733
    %v2949 = vunpack.c.l.b16 %v2734
    %v2950 = vunpack.c.h.b16 %v2734
    %v2951 = vunpack.c.l.b16 %v2735
    %v2952 = vunpack.c.h.b16 %v2735
    %v2953 = vunpack.c.l.b16 %v2736
    %v2954 = vunpack.c.h.b16 %v2736
    %v2955 = vunpack.c.l.b16 %v2737
    %v2956 = vunpack.c.h.b16 %v2737
    %v2957 = vunpack.c.l.b16 %v2738
    %v2958 = vunpack.c.h.b16 %v2738
    %v2959 = vunpack.c.l.b16 %v2739
    %v2960 = vunpack.c.h.b16 %v2739
    %v2961 = vunpack.c.l.b16 %v2740
    %v2962 = vunpack.c.h.b16 %v2740
    %v2963 = vunpack.c.l.b16 %v2741
    %v2964 = vunpack.c.h.b16 %v2741
    %v2965 = vunpack.c.l.b16 %v2742
    %v2966 = vunpack.c.h.b16 %v2742
    %v2967 = vunpack.c.l.b16 %v2743
    %v2968 = vunpack.c.h.b16 %v2743
    %v2969 = vunpack.c.l.b16 %v2744
    %v2970 = vunpack.c.h.b16 %v2744
    %v2971 = vunpack.c.l.b16 %v2745
    %v2972 = vunpack.c.h.b16 %v2745
    %v2973 = vunpack.c.l.b16 %v2746
    %v2974 = vunpack.c.h.b16 %v2746
    %v2975 = vunpack.c.l.b16 %v2747
    %v2976 = vunpack.c.h.b16 %v2747
    %v2977 = vunpack.c.l.b16 %v2748
    %v2978 = vunpack.c.h.b16 %v2748
    %v2979 = vunpack.c.l.b16 %v2749
    %v2980 = vunpack.c.h.b16 %v2749
    %v2981 = vunpack.c.l.b16 %v2750
    %v2982 = vunpack.c.h.b16 %v2750
    %v2983 = vunpack.c.l.b16 %v2751
    %v2984 = vunpack.c.h.b16 %v2751
    %v2985 = vunpack.c.l.b16 %v2752
    %v2986 = vunpack.c.h.b16 %v2752
    %v2987 = vunpack.c.l.b16 %v2753
    %v2988 = vunpack.c.h.b16 %v2753
    %v2989 = vunpack.c.l.b16 %v2754
    %v2990 = vunpack.c.h.b16 %v2754
    %v2991 = vunpack.c.l.b16 %v2755
    %v2992 = vunpack.c.h.b16 %v2755
    %v2993 = vunpack.c.l.b16 %v2756
    %v2994 = vunpack.c.h.b16 %v2756
    %v2995 = vunpack.c.l.b16 %v2757
    %v2996 = vunpack.c.h.b16 %v2757
    %v2997 = vunpack.c.l.b16 %v2758
    %v2998 = vunpack.c.h.b16 %v2758
    %v2999 = vunpack.c.l.b16 %v2759
    %v3000 = vunpack.c.h.b16 %v2759
    %v3001 = vunpack.c.l.b16 %v2760
    %v3002 = vunpack.c.h.b16 %v2760
    %v3003 = vunpack.c.l.b16 %v2761
    %v3004 = vunpack.c.h.b16 %v2761
    %v3005 = vunpack.c.l.b16 %v2762
    %v3006 = vunpack.c.h.b16 %v2762
    %v3007 = vunpack.c.l.b16 %v2763
    %v3008 = vunpack.c.h.b16 %v2763
    %v3009 = vunpack.c.l.b16 %v2764
    %v3010 = vunpack.c.h.b16 %v2764
    %v3011 = vpack.c.b16 %v2853, %v2851
    %v3012 = vpack.c.b16 %v2854, %v2852
    %v3013 = vpack.c.b16 %v2857, %v2855
    %v3014 = vpack.c.b16 %v2858, %v2856
    %v3015 = vpack.c.b16 %v2861, %v2859
    %v3016 = vpack.c.b16 %v2862, %v2860
    %v3017 = vpack.c.b16 %v2865, %v2863
    %v3018 = vpack.c.b16 %v2866, %v2864
    %v3019 = vpack.c.b16 %v2869, %v2867
    %v3020 = vpack.c.b16 %v2870, %v2868
    %v3021 = vpack.c.b16 %v2873, %v2871
    %v3022 = vpack.c.b16 %v2874, %v2872
    %v3023 = vpack.c.b16 %v2877, %v2875
    %v3024 = vpack.c.b16 %v2878, %v2876
    %v3025 = vpack.c.b16 %v2881, %v2879
    %v3026 = vpack.c.b16 %v2882, %v2880
    %v3027 = vpack.c.b16 %v2885, %v2883
    %v3028 = vpack.c.b16 %v2886, %v2884
    %v3029 = vpack.c.b16 %v2889, %v2887
    %v3030 = vpack.c.b16 %v2890, %v2888
    %v3031 = vpack.c.b16 %v2893, %v2891
    %v3032 = vpack.c.b16 %v2894, %v2892
    %v3033 = vpack.c.b16 %v2897, %v2895
    %v3034 = vpack.c.b16 %v2898, %v2896
    %v3035 = vpack.c.b16 %v2901, %v2899
    %v3036 = vpack.c.b16 %v2902, %v2900
    %v3037 = vpack.c.b16 %v2905, %v2903
    %v3038 = vpack.c.b16 %v2906, %v2904
    %v3039 = vpack.c.b16 %v2909, %v2907
    %v3040 = vpack.c.b16 %v2910, %v2908
    %v3041 = vpack.c.b16 %v2913, %v2911
    %v3042 = vpack.c.b16 %v2914, %v2912
    %v3043 = vpack.c.b16 %v2917, %v2915
    %v3044 = vpack.c.b16 %v2918, %v2916
    %v3045 = vpack.c.b16 %v2921, %v2919
    %v3046 = vpack.c.b16 %v2922, %v2920
    %v3047 = vpack.c.b16 %v2925, %v2923
    %v3048 = vpack.c.b16 %v2926, %v2924
    %v3049 = vpack.c.b16 %v2929, %v2927
    %v3050 = vpack.c.b16 %v2930, %v2928
    %v3051 = vpack.c.b16 %v2933, %v2931
    %v3052 = vpack.c.b16 %v2934, %v2932
    %v3053 = vpack.c.b16 %v2937, %v2935
    %v3054 = vpack.c.b16 %v2938, %v2936
    %v3055 = vpack.c.b16 %v2941, %v2939
    %v3056 = vpack.c.b16 %v2942, %v2940
    %v3057 = vpack.c.b16 %v2945, %v2943
    %v3058 = vpack.c.b16 %v2946, %v2944
    %v3059 = vpack.c.b16 %v2949, %v2947
    %v3060 = vpack.c.b16 %v2950, %v2948
    %v3061 = vpack.c.b16 %v2953, %v2951
    %v3062 = vpack.c.b16 %v2954, %v2952
    %v3063 = vpack.c.b16 %v2957, %v2955
    %v3064 = vpack.c.b16 %v2958, %v2956
    %v3065 = vpack.c.b16 %v2961, %v2959
    %v3066 = vpack.c.b16 %v2962, %v2960
    %v3067 = vpack.c.b16 %v2965, %v2963
    %v3068 = vpack.c.b16 %v2966, %v2964
    %v3069 = vpack.c.b16 %v2969, %v2967
    %v3070 = vpack.c.b16 %v2970, %v2968
    %v3071 = vpack.c.b16 %v2973, %v2971
    %v3072 = vpack.c.b16 %v2974, %v2972
    %v3073 = vpack.c.b16 %v2977, %v2975
    %v3074 = vpack.c.b16 %v2978, %v2976
    %v3075 = vpack.c.b16 %v2981, %v2979
    %v3076 = vpack.c.b16 %v2982, %v2980
    %v3077 = vpack.c.b16 %v2985, %v2983
    %v3078 = vpack.c.b16 %v2986, %v2984
    %v3079 = vpack.c.b16 %v2989, %v2987
    %v3080 = vpack.c.b16 %v2990, %v2988
    %v3081 = vpack.c.b16 %v2993, %v2991
    %v3082 = vpack.c.b16 %v2994, %v2992
    %v3083 = vpack.c.b16 %v2997, %v2995
    %v3084 = vpack.c.b16 %v2998, %v2996
    %v3085 = vpack.c.b16 %v3001, %v2999
    %v3086 = vpack.c.b16 %v3002, %v3000
    %v3087 = vpack.c.b16 %v3005, %v3003
    %v3088 = vpack.c.b16 %v3006, %v3004
    %v3089 = vpack.c.b16 %v3009, %v3007
    %v3090 = vpack.c.b16 %v3010, %v3008
    %3171 = vmatpush.bf16.msra.mxu0 %v3025
    %3172 = vmatpush.bf16.msra.mxu0 %v3023
    %3173 = vmatpush.bf16.msra.mxu0 %v3021
    %3174 = vmatpush.bf16.msra.mxu0 %v3019
    %3175 = vmatpush.bf16.msra.mxu0 %v3017
    %3176 = vmatpush.bf16.msra.mxu0 %v3015
    %3177 = vmatpush.bf16.msra.mxu0 %v3013
    %3178 = vmatpush.bf16.msra.mxu0 %v3011
    %3179 = vmatmul.bf16.gmra.mxu0 %v2680
    %v3180 = vpop.f32.mrf.mxu0
    %v3181 = vadd.f32 %v2767, %v3180
    %v3182 = vpop.f32.mrf.mxu0
    %3183 = vdwg.mxu0
    %3184 = vmatpush.bf16.msra.mxu0 %v3041
    %3185 = vmatpush.bf16.msra.mxu0 %v3039
    %3186 = vmatpush.bf16.msra.mxu0 %v3037
    %3187 = vmatpush.bf16.msra.mxu0 %v3035
    %3188 = vmatpush.bf16.msra.mxu0 %v3033
    %3189 = vmatpush.bf16.msra.mxu0 %v3031
    %3190 = vmatpush.bf16.msra.mxu0 %v3029
    %3191 = vmatpush.bf16.msra.mxu0 %v3027
    %3192 = vmatmul.bf16.gmra.mxu0 %v2681
    %v3193 = vpop.f32.mrf.mxu0
    %v3194 = vadd.f32 %v3181, %v3193
    %v3195 = vpop.f32.mrf.mxu0
    %3196 = vdwg.mxu0
    %3197 = vmatpush.bf16.msra.mxu0 %v3057
    %3198 = vmatpush.bf16.msra.mxu0 %v3055
    %3199 = vmatpush.bf16.msra.mxu0 %v3053
    %3200 = vmatpush.bf16.msra.mxu0 %v3051
    %3201 = vmatpush.bf16.msra.mxu0 %v3049
    %3202 = vmatpush.bf16.msra.mxu0 %v3047
    %3203 = vmatpush.bf16.msra.mxu0 %v3045
    %3204 = vmatpush.bf16.msra.mxu0 %v3043
    %3205 = vmatmul.bf16.gmra.mxu0 %v2682
    %v3206 = vpop.f32.mrf.mxu0
    %v3207 = vadd.f32 %v3194, %v3206
    %v3208 = vpop.f32.mrf.mxu0
    %3209 = vdwg.mxu0
    %3210 = vmatpush.bf16.msra.mxu0 %v3073
    %3211 = vmatpush.bf16.msra.mxu0 %v3071
    %3212 = vmatpush.bf16.msra.mxu0 %v3069
    %3213 = vmatpush.bf16.msra.mxu0 %v3067
    %3214 = vmatpush.bf16.msra.mxu0 %v3065
    %3215 = vmatpush.bf16.msra.mxu0 %v3063
    %3216 = vmatpush.bf16.msra.mxu0 %v3061
    %3217 = vmatpush.bf16.msra.mxu0 %v3059
    %3218 = vmatmul.bf16.gmra.mxu0 %v2683
    %v3219 = vpop.f32.mrf.mxu0
    %v3220 = vadd.f32 %v3207, %v3219
    %v3221 = vpop.f32.mrf.mxu0
    %3222 = vdwg.mxu0
    %3223 = vmatpush.bf16.msra.mxu0 %v3089
    %3224 = vmatpush.bf16.msra.mxu0 %v3087
    %3225 = vmatpush.bf16.msra.mxu0 %v3085
    %3226 = vmatpush.bf16.msra.mxu0 %v3083
    %3227 = vmatpush.bf16.msra.mxu0 %v3081
    %3228 = vmatpush.bf16.msra.mxu0 %v3079
    %3229 = vmatpush.bf16.msra.mxu0 %v3077
    %3230 = vmatpush.bf16.msra.mxu0 %v3075
    %3231 = vmatmul.bf16.gmra.mxu0 %v2684
    %v3232 = vpop.f32.mrf.mxu0
    %v3233 = vadd.f32 %v3220, %v3232
    %v3234 = vpop.f32.mrf.mxu0
    %3235 = vdwg.mxu0
    %3236 = vmatpush.bf16.msra.mxu0 %v3026
    %3237 = vmatpush.bf16.msra.mxu0 %v3024
    %3238 = vmatpush.bf16.msra.mxu0 %v3022
    %3239 = vmatpush.bf16.msra.mxu0 %v3020
    %3240 = vmatpush.bf16.msra.mxu0 %v3018
    %3241 = vmatpush.bf16.msra.mxu0 %v3016
    %3242 = vmatpush.bf16.msra.mxu0 %v3014
    %3243 = vmatpush.bf16.msra.mxu0 %v3012
    %3244 = vmatmul.bf16.gmra.mxu0 %v2680
    %v3245 = vpop.f32.mrf.mxu0
    %v3246 = vadd.f32 %v2768, %v3245
    %v3247 = vpop.f32.mrf.mxu0
    %3248 = vdwg.mxu0
    %3249 = vmatpush.bf16.msra.mxu0 %v3042
    %3250 = vmatpush.bf16.msra.mxu0 %v3040
    %3251 = vmatpush.bf16.msra.mxu0 %v3038
    %3252 = vmatpush.bf16.msra.mxu0 %v3036
    %3253 = vmatpush.bf16.msra.mxu0 %v3034
    %3254 = vmatpush.bf16.msra.mxu0 %v3032
    %3255 = vmatpush.bf16.msra.mxu0 %v3030
    %3256 = vmatpush.bf16.msra.mxu0 %v3028
    %3257 = vmatmul.bf16.gmra.mxu0 %v2681
    %v3258 = vpop.f32.mrf.mxu0
    %v3259 = vadd.f32 %v3246, %v3258
    %v3260 = vpop.f32.mrf.mxu0
    %3261 = vdwg.mxu0
    %3262 = vmatpush.bf16.msra.mxu0 %v3058
    %3263 = vmatpush.bf16.msra.mxu0 %v3056
    %3264 = vmatpush.bf16.msra.mxu0 %v3054
    %3265 = vmatpush.bf16.msra.mxu0 %v3052
    %3266 = vmatpush.bf16.msra.mxu0 %v3050
    %3267 = vmatpush.bf16.msra.mxu0 %v3048
    %3268 = vmatpush.bf16.msra.mxu0 %v3046
    %3269 = vmatpush.bf16.msra.mxu0 %v3044
    %3270 = vmatmul.bf16.gmra.mxu0 %v2682
    %v3271 = vpop.f32.mrf.mxu0
    %v3272 = vadd.f32 %v3259, %v3271
    %v3273 = vpop.f32.mrf.mxu0
    %3274 = vdwg.mxu0
    %3275 = vmatpush.bf16.msra.mxu0 %v3074
    %3276 = vmatpush.bf16.msra.mxu0 %v3072
    %3277 = vmatpush.bf16.msra.mxu0 %v3070
    %3278 = vmatpush.bf16.msra.mxu0 %v3068
    %3279 = vmatpush.bf16.msra.mxu0 %v3066
    %3280 = vmatpush.bf16.msra.mxu0 %v3064
    %3281 = vmatpush.bf16.msra.mxu0 %v3062
    %3282 = vmatpush.bf16.msra.mxu0 %v3060
    %3283 = vmatmul.bf16.gmra.mxu0 %v2683
    %v3284 = vpop.f32.mrf.mxu0
    %v3285 = vadd.f32 %v3272, %v3284
    %v3286 = vpop.f32.mrf.mxu0
    %3287 = vdwg.mxu0
    %3288 = vmatpush.bf16.msra.mxu0 %v3090
    %3289 = vmatpush.bf16.msra.mxu0 %v3088
    %3290 = vmatpush.bf16.msra.mxu0 %v3086
    %3291 = vmatpush.bf16.msra.mxu0 %v3084
    %3292 = vmatpush.bf16.msra.mxu0 %v3082
    %3293 = vmatpush.bf16.msra.mxu0 %v3080
    %3294 = vmatpush.bf16.msra.mxu0 %v3078
    %3295 = vmatpush.bf16.msra.mxu0 %v3076
    %3296 = vmatmul.bf16.gmra.mxu0 %v2684
    %v3297 = vpop.f32.mrf.mxu0
    %v3298 = vadd.f32 %v3285, %v3297
    %v3299 = vpop.f32.mrf.mxu0
    %3300 = vdwg.mxu0
    %v3301 = vmax.f32 %v3233, 0.0
    %v3302 = vmax.f32 %v3298, 0.0
    %v3303 = vpack.c.bf16 %v3301, %v3301
    %v3304 = vpack.c.bf16 %v3302, %v3302
    %v3305 = vld [vmem:[#allocation7] sm:$0xf]
    %v3306 = vld [vmem:[#allocation7 + $0x4] sm:$0xf]
    %v3307 = vld [vmem:[#allocation7 + $0x8] sm:$0xf]
    %v3308 = vld [vmem:[#allocation7 + $0xc] sm:$0xf]
    %v3309 = vld [vmem:[#allocation7 + $0x10] sm:$0xf]
    %v3310 = vld [vmem:[#allocation7 + $0x14] sm:$0xf]
    %v3311 = vld [vmem:[#allocation7 + $0x18] sm:$0xf]
    %v3312 = vld [vmem:[#allocation7 + $0x1c] sm:$0xf]
    %v3313 = vld [vmem:[#allocation7 + $0x20] sm:$0xf]
    %v3314 = vld [vmem:[#allocation7 + $0x24] sm:$0xf]
    %v3315 = vld [vmem:[#allocation7 + $0x28] sm:$0xf]
    %v3316 = vld [vmem:[#allocation7 + $0x2c] sm:$0xf]
    %v3317 = vld [vmem:[#allocation7 + $0x30] sm:$0xf]
    %v3318 = vld [vmem:[#allocation7 + $0x34] sm:$0xf]
    %v3319 = vld [vmem:[#allocation7 + $0x38] sm:$0xf]
    %v3320 = vld [vmem:[#allocation7 + $0x3c] sm:$0xf]
    %v3321 = vld [vmem:[#allocation7 + $0x40] sm:$0xf]
    %v3322 = vld [vmem:[#allocation7 + $0x44] sm:$0xf]
    %v3323 = vld [vmem:[#allocation7 + $0x48] sm:$0xf]
    %v3324 = vld [vmem:[#allocation7 + $0x4c] sm:$0xf]
    %v3325 = vld [vmem:[#allocation7 + $0x50] sm:$0xf]
    %v3326 = vld [vmem:[#allocation7 + $0x54] sm:$0xf]
    %v3327 = vld [vmem:[#allocation7 + $0x58] sm:$0xf]
    %v3328 = vld [vmem:[#allocation7 + $0x5c] sm:$0xf]
    %v3329 = vld [vmem:[#allocation7 + $0x60] sm:$0xf]
    %v3330 = vld [vmem:[#allocation7 + $0x64] sm:$0xf]
    %v3331 = vld [vmem:[#allocation7 + $0x68] sm:$0xf]
    %v3332 = vld [vmem:[#allocation7 + $0x6c] sm:$0xf]
    %v3333 = vld [vmem:[#allocation7 + $0x70] sm:$0xf]
    %v3334 = vld [vmem:[#allocation7 + $0x74] sm:$0xf]
    %v3335 = vld [vmem:[#allocation7 + $0x78] sm:$0xf]
    %v3336 = vld [vmem:[#allocation7 + $0x7c] sm:$0xf]
    %v3337 = vld [vmem:[%s8] sm:$0x1]
    %v3339 = vperm.slane %v3337, 0
    %v3373 = vunpack.c.l.b16 %v3305
    %v3374 = vunpack.c.l.b16 %v3306
    %v3375 = vunpack.c.l.b16 %v3307
    %v3376 = vunpack.c.l.b16 %v3308
    %v3377 = vunpack.c.l.b16 %v3309
    %v3378 = vunpack.c.l.b16 %v3310
    %v3379 = vunpack.c.l.b16 %v3311
    %v3380 = vunpack.c.l.b16 %v3312
    %v3381 = vunpack.c.l.b16 %v3313
    %v3382 = vunpack.c.l.b16 %v3314
    %v3383 = vunpack.c.l.b16 %v3315
    %v3384 = vunpack.c.l.b16 %v3316
    %v3385 = vunpack.c.l.b16 %v3317
    %v3386 = vunpack.c.l.b16 %v3318
    %v3387 = vunpack.c.l.b16 %v3319
    %v3388 = vunpack.c.l.b16 %v3320
    %v3389 = vunpack.c.l.b16 %v3321
    %v3390 = vunpack.c.l.b16 %v3322
    %v3391 = vunpack.c.l.b16 %v3323
    %v3392 = vunpack.c.l.b16 %v3324
    %v3393 = vunpack.c.l.b16 %v3325
    %v3394 = vunpack.c.l.b16 %v3326
    %v3395 = vunpack.c.l.b16 %v3327
    %v3396 = vunpack.c.l.b16 %v3328
    %v3397 = vunpack.c.l.b16 %v3329
    %v3398 = vunpack.c.l.b16 %v3330
    %v3399 = vunpack.c.l.b16 %v3331
    %v3400 = vunpack.c.l.b16 %v3332
    %v3401 = vunpack.c.l.b16 %v3333
    %v3402 = vunpack.c.l.b16 %v3334
    %v3403 = vunpack.c.l.b16 %v3335
    %v3404 = vunpack.c.l.b16 %v3336
    %v3405 = vpack.c.b16 %v3374, %v3373
    %v3406 = vpack.c.b16 %v3376, %v3375
    %v3407 = vpack.c.b16 %v3378, %v3377
    %v3408 = vpack.c.b16 %v3380, %v3379
    %v3409 = vpack.c.b16 %v3382, %v3381
    %v3410 = vpack.c.b16 %v3384, %v3383
    %v3411 = vpack.c.b16 %v3386, %v3385
    %v3412 = vpack.c.b16 %v3388, %v3387
    %v3413 = vpack.c.b16 %v3390, %v3389
    %v3414 = vpack.c.b16 %v3392, %v3391
    %v3415 = vpack.c.b16 %v3394, %v3393
    %v3416 = vpack.c.b16 %v3396, %v3395
    %v3417 = vpack.c.b16 %v3398, %v3397
    %v3418 = vpack.c.b16 %v3400, %v3399
    %v3419 = vpack.c.b16 %v3402, %v3401
    %v3420 = vpack.c.b16 %v3404, %v3403
    %3437 = vmatpush.bf16.msra.mxu0 %v3412
    %3438 = vmatpush.bf16.msra.mxu0 %v3411
    %3439 = vmatpush.bf16.msra.mxu0 %v3410
    %3440 = vmatpush.bf16.msra.mxu0 %v3409
    %3441 = vmatpush.bf16.msra.mxu0 %v3408
    %3442 = vmatpush.bf16.msra.mxu0 %v3407
    %3443 = vmatpush.bf16.msra.mxu0 %v3406
    %3444 = vmatpush.bf16.msra.mxu0 %v3405
    %3445 = vmatmul.bf16.gmra.mxu0 %v3303
    %v3446 = vpop.f32.mrf.mxu0
    %v3447 = vadd.f32 %v3339, %v3446
    %v3448 = vpop.f32.mrf.mxu0
    %3449 = vdwg.mxu0
    %3450 = vmatpush.bf16.msra.mxu0 %v3420
    %3451 = vmatpush.bf16.msra.mxu0 %v3419
    %3452 = vmatpush.bf16.msra.mxu0 %v3418
    %3453 = vmatpush.bf16.msra.mxu0 %v3417
    %3454 = vmatpush.bf16.msra.mxu0 %v3416
    %3455 = vmatpush.bf16.msra.mxu0 %v3415
    %3456 = vmatpush.bf16.msra.mxu0 %v3414
    %3457 = vmatpush.bf16.msra.mxu0 %v3413
    %3458 = vmatmul.bf16.gmra.mxu0 %v3304
    %v3459 = vpop.f32.mrf.mxu0
    %v3460 = vadd.f32 %v3447, %v3459
    %v3461 = vpop.f32.mrf.mxu0
    %3462 = vdwg.mxu0
    %v3463 = vmax.f32 %v3460, 0.0
    %v3464 = vpack.c.bf16 %v3463, %v3463
    %v3465 = vld [vmem:[%s9] sm:$0xf]
    %v3466 = vld [vmem:[%s9 + $0x4] sm:$0xf]
    %v3467 = vld [vmem:[%s9 + $0x8] sm:$0xf]
    %v3468 = vld [vmem:[%s9 + $0xc] sm:$0xf]
    %v3469 = vld [vmem:[%s9 + $0x10] sm:$0xf]
    %v3470 = vld [vmem:[%s9 + $0x14] sm:$0xf]
    %v3471 = vld [vmem:[%s9 + $0x18] sm:$0xf]
    %v3472 = vld [vmem:[%s9 + $0x1c] sm:$0xf]
    %v3473 = vld [vmem:[%s9 + $0x20] sm:$0xf]
    %v3474 = vld [vmem:[%s9 + $0x24] sm:$0xf]
    %v3475 = vld [vmem:[%s9 + $0x28] sm:$0xf]
    %v3476 = vld [vmem:[%s9 + $0x2c] sm:$0xf]
    %v3477 = vld [vmem:[%s9 + $0x30] sm:$0xf]
    %v3478 = vld [vmem:[%s9 + $0x34] sm:$0xf]
    %v3479 = vld [vmem:[%s9 + $0x38] sm:$0xf]
    %v3480 = vld [vmem:[%s9 + $0x3c] sm:$0xf]
    %v3481 = vld [vmem:[%s10] sm:$0x1]
    %v3483 = vperm.slane %v3481, 0
    %v3501 = vunpack.c.l.b16 %v3465
    %v3502 = vunpack.c.l.b16 %v3466
    %v3503 = vunpack.c.l.b16 %v3467
    %v3504 = vunpack.c.l.b16 %v3468
    %v3505 = vunpack.c.l.b16 %v3469
    %v3506 = vunpack.c.l.b16 %v3470
    %v3507 = vunpack.c.l.b16 %v3471
    %v3508 = vunpack.c.l.b16 %v3472
    %v3509 = vunpack.c.l.b16 %v3473
    %v3510 = vunpack.c.l.b16 %v3474
    %v3511 = vunpack.c.l.b16 %v3475
    %v3512 = vunpack.c.l.b16 %v3476
    %v3513 = vunpack.c.l.b16 %v3477
    %v3514 = vunpack.c.l.b16 %v3478
    %v3515 = vunpack.c.l.b16 %v3479
    %v3516 = vunpack.c.l.b16 %v3480
    %v3517 = vpack.c.b16 %v3502, %v3501
    %v3518 = vpack.c.b16 %v3504, %v3503
    %v3519 = vpack.c.b16 %v3506, %v3505
    %v3520 = vpack.c.b16 %v3508, %v3507
    %v3521 = vpack.c.b16 %v3510, %v3509
    %v3522 = vpack.c.b16 %v3512, %v3511
    %v3523 = vpack.c.b16 %v3514, %v3513
    %v3524 = vpack.c.b16 %v3516, %v3515
    %3533 = vmatpush.bf16.msra.mxu0 %v3524
    %3534 = vmatpush.bf16.msra.mxu0 %v3523
    %3535 = vmatpush.bf16.msra.mxu0 %v3522
    %3536 = vmatpush.bf16.msra.mxu0 %v3521
    %3537 = vmatpush.bf16.msra.mxu0 %v3520
    %3538 = vmatpush.bf16.msra.mxu0 %v3519
    %3539 = vmatpush.bf16.msra.mxu0 %v3518
    %3540 = vmatpush.bf16.msra.mxu0 %v3517
    %3541 = vmatmul.bf16.gmra.mxu0 %v3464
    %v3542 = vpop.f32.mrf.mxu0
    %v3543 = vadd.f32 %v3483, %v3542
    %v3544 = vpop.f32.mrf.mxu0
    %3545 = vdwg.mxu0
    %3546 = vst [vmem:[#allocation8] sm:$0x3] %v3543
    // Predicated region
    $region58: #{_lenet_logits.1} parent=1 // pred_check
      _
    $region59: #{_lenet_logits.1} parent=1 // pred_check_branch
      %3548 = sbr.rel (0) target = $region61
    $region60: #{_lenet_logits.1} parent=1 // pred_region
      %3550 = vsyncadd [#allocation4], 0
      %s3552 = sshll.u32 [#allocation8], 4
      %s3553 = int_to_ptr.vmem [resolvable:$true] %s3552
      %s3554 = sshll.u32 %s11, 4
      %s3555 = int_to_ptr.hbm [resolvable:$true] %s3554
      %3557 = dma.vmem_to_hbm [thread:$0]  %s3553, 32, %s3555, [#allocation4]
    $region61: #{_lenet_logits.1} parent=1 // pred_fallthru
      _
    // Predicated region
    $region62: #{_lenet_logits.1} parent=1 // pred_check
      _
    $region63: #{_lenet_logits.1} parent=1 // pred_check_branch
      %3559 = sbr.rel (0) target = $region65
    $region64: #{_lenet_logits.1} parent=1 // pred_region
      %3561 = dma.done [#allocation4], 32
    $region65: #{_lenet_logits.1} parent=1 // pred_fallthru
      _
    %3562 = vsyncpa [#allocation3], 1
    %3563 = vsyncpa [#allocation6], 1
    %3564 = vsyncpa [#allocation4], 1

</llo_original>
